<compile_context>
chip_gen: v5e
topology: v5e:2x2
jax: 0.10.0
libtpu: 0.0.40
codegen_flags: <defaults>
</compile_context>

<pallas_src>
import functools

import jax
import jax.numpy as jnp
from jax import lax
from jax.experimental import pallas as pl
from jax.experimental.pallas import tpu as pltpu

NEG_SLOPE = 0.01                 # nn.LeakyReLU default
BN_EPS = 1e-5                    # nn.BatchNorm2d default
LANE = 128


def _vmem_limit_bytes():
    # ~5/8 of per-core physical VMEM: v5e/v6e 128 MiB -> 80 MiB, v7x 64 -> 40.
    cap = 64 * 1024 * 1024
    try:
        info = pltpu.get_tpu_info()
        cap = int(getattr(info, "vmem_capacity_bytes", cap)) or cap
    except Exception:
        pass
    return (cap * 5) // 8


def _pick_h_tile(H, W, C2):
    # Bound the (1, th, 2, W, C2) bf16 output block to ~2 MiB per buffer.
    budget = 2 * 1024 * 1024
    th = max(1, min(H, budget // max(1, 4 * W * C2)))
    while H % th:
        th -= 1
    return th


def _deconv_phase_kernel(x_ref, w_ref, y_ref, ysum_ref, ysq_ref, *, h_tiles):
    """One (batch, H-tile) block.

    x_ref: (1, H+2, W, 3*Ci) bf16 — column taps pre-folded into the lane dim.
    w_ref: (2, 2, 3*Ci, C2)  bf16 — [row phase ph][row tap dh], both column
           phases packed side by side in the C2 = 2*co_pad output columns.
    Per row phase: 2 matmuls (K = 3*Ci) + 1 add -> one full-C2 lane-dense
    store into the phase-interleaved layout, plus fused BN partial stats.
    """
    th = y_ref.shape[1]
    W = y_ref.shape[3]
    C2 = y_ref.shape[4]
    kc = x_ref.shape[3]                               # 3*Ci

    # Static slices when there is a single H tile; dynamic row offset otherwise
    # (the +2-row halo is covered by the resident full-row input block).
    row0 = 0 if h_tiles == 1 else pl.program_id(1) * th

    s = jnp.zeros((1, C2), jnp.float32)
    ss = jnp.zeros((1, C2), jnp.float32)
    for ph in range(2):                               # output row phase
        r0 = x_ref[0, pl.ds(row0 + ph, th), :, :].reshape(th * W, kc)
        r1 = x_ref[0, pl.ds(row0 + ph + 1, th), :, :].reshape(th * W, kc)
        acc = (jnp.dot(r0, w_ref[ph, 0], preferred_element_type=jnp.float32) +
               jnp.dot(r1, w_ref[ph, 1], preferred_element_type=jnp.float32))
        # fused BatchNorm partial statistics (column phases kept in the two
        # co_pad halves; folded per channel in the wrapper).
        s = s + jnp.sum(acc, axis=0, keepdims=True)
        ss = ss + jnp.sum(acc * acc, axis=0, keepdims=True)
        # one full-lane (C2-wide) unmasked store into the interleaved layout
        y_ref[0, :, ph, :, :] = acc.reshape(th, W, C2).astype(y_ref.dtype)
    ysum_ref[0, 0, :, :] = s
    ysq_ref[0, 0, :, :] = ss


def _bn_lrelu_kernel(y_ref, scale_ref, shift_ref, o_ref):
    # y = gamma*(x-mean)*invstd + beta  ==  x*scale + shift, then LeakyReLU.
    z = y_ref[...].astype(jnp.float32) * scale_ref[...] + shift_ref[...]
    o_ref[...] = jnp.where(z >= 0, z, NEG_SLOPE * z)


@jax.jit
def deconv4x4_forward(x, w, gamma, beta):
    """x: (N, Ci, H, W) f32; w: (Ci, Co, 4, 4) PyTorch ConvTranspose2d layout."""
    N, Ci, H, W = x.shape
    Co = w.shape[1]
    Ho, Wo = 2 * H, 2 * W
    co_pad = ((Co + LANE - 1) // LANE) * LANE
    C2 = 2 * co_pad
    vmem_limit = _vmem_limit_bytes()

    # bf16 BEFORE transpose/pad so XLA moves half the bytes; fold the 3 column
    # taps into the channel dim (small 3x slab; the kernel then needs no
    # window copies or lane concats at all).
    # TODO(synk): for Ci far below 128 this still underfills lanes; packing W
    # into lanes would fix it but needs a different output relayout.
    x_pad = jnp.pad(jnp.transpose(x.astype(jnp.bfloat16), (0, 2, 3, 1)),
                    ((0, 0), (1, 1), (1, 1), (0, 0)))        # (N, H+2, W+2, Ci)
    x_cat = jnp.concatenate([x_pad[:, :, dx:dx + W, :] for dx in range(3)],
                            axis=-1)                          # (N, H+2, W, 3*Ci)

    # Weights: w_mats[ph, dh, dx*Ci:(dx+1)*Ci, pw*co_pad:(pw+1)*co_pad]
    #   = w[:, :, 3-ph-2*dh, 3-pw-2*(dx-pw)]  if dx-pw in {0,1}, else 0.
    # (Zero K rows where a column offset does not feed that column phase; the
    #  padded-Co columns are zero so they contribute nothing.)
    # TODO(synk): an unpaired K=2*Ci variant avoids the zero-row 1.5x FLOPs
    # when Ci*Co is large enough to be MXU-bound.
    w_b = w.astype(jnp.bfloat16)
    zeros_tap = jnp.zeros((Ci, co_pad), jnp.bfloat16)
    ph_blocks = []
    for ph in range(2):
        dh_blocks = []
        for dh in range(2):
            rows = []
            for dx in range(3):
                cols = []
                for pw in range(2):
                    dw = dx - pw
                    if dw in (0, 1):
                        tap = jnp.pad(w_b[:, :, 3 - ph - 2 * dh, 3 - pw - 2 * dw],
                                      ((0, 0), (0, co_pad - Co)))
                    else:
                        tap = zeros_tap
                    cols.append(tap)
                rows.append(jnp.concatenate(cols, axis=1))     # (Ci, C2)
            dh_blocks.append(jnp.concatenate(rows, axis=0))    # (3*Ci, C2)
        ph_blocks.append(jnp.stack(dh_blocks, axis=0))         # (2, 3*Ci, C2)
    w_mats = jnp.stack(ph_blocks, axis=0)                      # (2, 2, 3*Ci, C2)

    th = _pick_h_tile(H, W, C2)
    HT = H // th

    # ---- Pass 1: phase-decomposed deconv matmuls + fused BN partial stats.
    y, ysum, ysq = pl.pallas_call(
        functools.partial(_deconv_phase_kernel, h_tiles=HT),
        out_shape=(jax.ShapeDtypeStruct((N, H, 2, W, C2), jnp.bfloat16),
                   jax.ShapeDtypeStruct((N, HT, 1, C2), jnp.float32),
                   jax.ShapeDtypeStruct((N, HT, 1, C2), jnp.float32)),
        grid_spec=pltpu.PrefetchScalarGridSpec(
            num_scalar_prefetch=0,
            grid=(N, HT),
            in_specs=[
                # full padded rows stay resident across the H tiles of one
                # batch element (block index does not change with i).
                # TODO(synk): for huge (H+2)*W*3*Ci, switch to pl.ANY + manual
                # halo DMA instead of a full-row resident block.
                pl.BlockSpec((1, H + 2, W, 3 * Ci), lambda n, i: (n, 0, 0, 0)),
                # TODO(synk): for very large Ci*co_pad stage the constant
                # weights once via a manual copy (avoids the 2nd buffer).
                pl.BlockSpec((2, 2, 3 * Ci, C2), lambda n, i: (0, 0, 0, 0)),
            ],
            out_specs=[
                pl.BlockSpec((1, th, 2, W, C2), lambda n, i: (n, i, 0, 0, 0)),
                pl.BlockSpec((1, 1, 1, C2), lambda n, i: (n, i, 0, 0)),
                pl.BlockSpec((1, 1, 1, C2), lambda n, i: (n, i, 0, 0)),
            ]),
        compiler_params=pltpu.CompilerParams(
            dimension_semantics=("parallel", "parallel"),
            vmem_limit_bytes=vmem_limit),
    )(x_cat, w_mats)

    # ---- Combine partial stats (tiny, XLA): biased batch variance, as
    # BatchNorm2d uses for training-mode normalization.
    # TODO(synk): for very large N*Ho*Wo, use mean-shifted/Welford partials to
    # avoid E[x^2]-E[x]^2 cancellation; fine at these magnitudes.
    m_total = N * Ho * Wo
    ssum = jnp.sum(ysum, axis=(0, 1)).reshape(2, co_pad).sum(axis=0)[:Co]
    ssq = jnp.sum(ysq, axis=(0, 1)).reshape(2, co_pad).sum(axis=0)[:Co]
    mean = ssum / m_total
    var = jnp.maximum(ssq / m_total - mean * mean, 0.0)
    scale = gamma * lax.rsqrt(var + BN_EPS)
    shift = beta - mean * scale
    scale2 = jnp.tile(jnp.pad(scale, (0, co_pad - Co)), 2).reshape(1, C2)
    shift2 = jnp.tile(jnp.pad(shift, (0, co_pad - Co)), 2).reshape(1, C2)

    # ---- Pass 2: tiled normalize + LeakyReLU over the lane-dense bf16 slab.
    # cdiv grid handles a ragged last block — no jnp.pad copy of the slab.
    y2 = y.reshape(N * H * 2 * W, C2)            # free reshape (contiguous)
    R = y2.shape[0]
    tr = 1024 if R >= 1024 else R
    out2 = pl.pallas_call(
        _bn_lrelu_kernel,
        out_shape=jax.ShapeDtypeStruct((R, C2), jnp.float32),
        grid_spec=pltpu.PrefetchScalarGridSpec(
            num_scalar_prefetch=0,
            grid=(pl.cdiv(R, tr),),
            in_specs=[pl.BlockSpec((tr, C2), lambda i: (i, 0)),
                      pl.BlockSpec((1, C2), lambda i: (0, 0)),
                      pl.BlockSpec((1, C2), lambda i: (0, 0))],
            out_specs=pl.BlockSpec((tr, C2), lambda i: (i, 0))),
        compiler_params=pltpu.CompilerParams(
            dimension_semantics=("parallel",),
            vmem_limit_bytes=vmem_limit),
    )(y2, scale2, shift2)

    # (N, H, 2, W, 2, co_pad) is a free reinterpretation of interleaved NHWC;
    # slice off the channel pad and transpose to NCHW (PyTorch convention).
    # TODO(synk): an NHWC consumer could take the output before this transpose.
    out = out2.reshape(N, H, 2, W, 2, co_pad)[..., :Co]
    return out.transpose(0, 5, 1, 2, 3, 4).reshape(N, Co, Ho, Wo)


def _reference(x, w, gamma, beta):
    # Independent reference: dilated-lhs conv == ConvTranspose2d(k4, s2, p1).
    w_conv = jnp.transpose(w[:, :, ::-1, ::-1], (1, 0, 2, 3))   # (Co, Ci, 4, 4)
    y = lax.conv_general_dilated(
        x, w_conv, window_strides=(1, 1), padding=((2, 2), (2, 2)),
        lhs_dilation=(2, 2), dimension_numbers=("NCHW", "OIHW", "NCHW"))
    mean = y.mean(axis=(0, 2, 3), keepdims=True)
    var = ((y - mean) ** 2).mean(axis=(0, 2, 3), keepdims=True)
    yn = (y - mean) * lax.rsqrt(var + BN_EPS)
    yn = yn * gamma.reshape(1, -1, 1, 1) + beta.reshape(1, -1, 1, 1)
    return jnp.where(yn >= 0, yn, NEG_SLOPE * yn)


if __name__ == "__main__":
    N, Ci, Co, H, W = 2, 4, 8, 16, 16

    key = jax.random.PRNGKey(0)
    kx, kw = jax.random.split(key)
    x = jax.random.normal(kx, (N, Ci, H, W), dtype=jnp.float32)
    w = 0.1 * jax.random.normal(kw, (Ci, Co, 4, 4), dtype=jnp.float32)
    gamma = jnp.ones((Co,), jnp.float32)     # nn.BatchNorm2d default init
    beta = jnp.zeros((Co,), jnp.float32)

    out = jax.block_until_ready(deconv4x4_forward(x, w, gamma, beta))
    assert out.shape == (N, Co, 2 * H, 2 * W), out.shape

    # The kernel feeds the MXU bf16 operands; compare against a reference that
    # sees the same bf16-rounded inputs (f32 accumulation on both sides).
    x_q = x.astype(jnp.bfloat16).astype(jnp.float32)
    w_q = w.astype(jnp.bfloat16).astype(jnp.float32)
    ref = _reference(x_q, w_q, gamma, beta)
    max_err = float(jnp.abs(out - ref).max())
    assert jnp.allclose(out, ref, rtol=5e-3, atol=5e-3), max_err

    print("KERNEL_OK")
</pallas_src>

<mosaic_0001>
module attributes {stable_mosaic.version = 11 : i64} {
  func.func @_deconv_phase_kernel(%arg0: i32, %arg1: i32, %arg2: memref<1x18x16x12xbf16, #tpu.memory_space<vmem>>, %arg3: memref<2x2x12x256xbf16, #tpu.memory_space<vmem>>, %arg4: memref<1x16x2x16x256xbf16, #tpu.memory_space<vmem>>, %arg5: memref<1x1x1x256xf32, #tpu.memory_space<vmem>>, %arg6: memref<1x1x1x256xf32, #tpu.memory_space<vmem>>) attributes {dimension_semantics = [#tpu.dimension_semantics<parallel>, #tpu.dimension_semantics<parallel>], iteration_bounds = array<i64: 2, 1>, scalar_prefetch = 0 : i64, scratch_operands = 0 : i64, tpu.core_type = #tpu.core_type<tc>, window_params = [{transform_indices = @transform_0, window_bounds = array<i64: 1, 18, 16, 12>}, {pipeline_mode = #tpu.pipeline_mode<synchronous>, transform_indices = @transform_1, window_bounds = array<i64: 2, 2, 12, 256>}, {transform_indices = @transform_2, window_bounds = array<i64: 1, 16, 2, 16, 256>}, {transform_indices = @transform_3, window_bounds = array<i64: 1, 1, 1, 256>}, {transform_indices = @transform_4, window_bounds = array<i64: 1, 1, 1, 256>}]} {
    %cst = arith.constant 0.000000e+00 : f32
    %0 = vector.broadcast %cst : f32 to vector<1x256xf32>
    %cst_0 = arith.constant 0.000000e+00 : f32
    %1 = vector.broadcast %cst_0 : f32 to vector<1x256xf32>
    %c0 = arith.constant 0 : index
    %c0_1 = arith.constant 0 : index
    %c0_2 = arith.constant 0 : index
    %c0_3 = arith.constant 0 : index
    %2 = vector.load %arg2[%c0, %c0_1, %c0_2, %c0_3] : memref<1x18x16x12xbf16, #tpu.memory_space<vmem>>, vector<1x16x16x12xbf16>
    %3 = vector.shape_cast %2 : vector<1x16x16x12xbf16> to vector<16x16x12xbf16>
    %4 = vector.shape_cast %3 : vector<16x16x12xbf16> to vector<256x12xbf16>
    %c0_4 = arith.constant 0 : index
    %c1 = arith.constant 1 : index
    %c0_5 = arith.constant 0 : index
    %c0_6 = arith.constant 0 : index
    %5 = vector.load %arg2[%c0_4, %c1, %c0_5, %c0_6] : memref<1x18x16x12xbf16, #tpu.memory_space<vmem>>, vector<1x16x16x12xbf16>
    %6 = vector.shape_cast %5 : vector<1x16x16x12xbf16> to vector<16x16x12xbf16>
    %7 = vector.shape_cast %6 : vector<16x16x12xbf16> to vector<256x12xbf16>
    %c0_7 = arith.constant 0 : index
    %c0_8 = arith.constant 0 : index
    %c0_9 = arith.constant 0 : index
    %c0_10 = arith.constant 0 : index
    %8 = vector.load %arg3[%c0_7, %c0_8, %c0_9, %c0_10] : memref<2x2x12x256xbf16, #tpu.memory_space<vmem>>, vector<1x1x12x256xbf16>
    %9 = vector.shape_cast %8 : vector<1x1x12x256xbf16> to vector<12x256xbf16>
    %cst_11 = arith.constant dense<0.000000e+00> : vector<256x256xf32>
    %10 = tpu.matmul %4, %9, %cst_11 {dimension_numbers = #tpu.dot_dimension_numbers<[1], [0], [0], [1], [0, 0, 1, 1], [], []>} : vector<256x12xbf16>, vector<12x256xbf16>, vector<256x256xf32> -> vector<256x256xf32>
    %c0_12 = arith.constant 0 : index
    %c1_13 = arith.constant 1 : index
    %c0_14 = arith.constant 0 : index
    %c0_15 = arith.constant 0 : index
    %11 = vector.load %arg3[%c0_12, %c1_13, %c0_14, %c0_15] : memref<2x2x12x256xbf16, #tpu.memory_space<vmem>>, vector<1x1x12x256xbf16>
    %12 = vector.shape_cast %11 : vector<1x1x12x256xbf16> to vector<12x256xbf16>
    %cst_16 = arith.constant dense<0.000000e+00> : vector<256x256xf32>
    %13 = tpu.matmul %7, %12, %cst_16 {dimension_numbers = #tpu.dot_dimension_numbers<[1], [0], [0], [1], [0, 0, 1, 1], [], []>} : vector<256x12xbf16>, vector<12x256xbf16>, vector<256x256xf32> -> vector<256x256xf32>
    %14 = arith.addf %10, %13 : vector<256x256xf32>
    %cst_17 = arith.constant dense<0.000000e+00> : vector<256xf32>
    %15 = vector.multi_reduction <add>, %14, %cst_17 [0] : vector<256x256xf32> to vector<256xf32>
    %16 = vector.shape_cast %15 : vector<256xf32> to vector<1x256xf32>
    %17 = arith.addf %0, %16 : vector<1x256xf32>
    %18 = arith.mulf %14, %14 : vector<256x256xf32>
    %cst_18 = arith.constant dense<0.000000e+00> : vector<256xf32>
    %19 = vector.multi_reduction <add>, %18, %cst_18 [0] : vector<256x256xf32> to vector<256xf32>
    %20 = vector.shape_cast %19 : vector<256xf32> to vector<1x256xf32>
    %21 = arith.addf %1, %20 : vector<1x256xf32>
    %22 = vector.shape_cast %14 : vector<256x256xf32> to vector<16x16x256xf32>
    %23 = arith.truncf %22 : vector<16x16x256xf32> to vector<16x16x256xbf16>
    %c0_19 = arith.constant 0 : index
    %c0_20 = arith.constant 0 : index
    %c0_21 = arith.constant 0 : index
    %c0_22 = arith.constant 0 : index
    %c0_23 = arith.constant 0 : index
    %24 = vector.load %arg4[%c0_19, %c0_20, %c0_21, %c0_22, %c0_23] : memref<1x16x2x16x256xbf16, #tpu.memory_space<vmem>>, vector<1x16x1x16x256xbf16>
    %25 = vector.shape_cast %24 : vector<1x16x1x16x256xbf16> to vector<16x16x256xbf16>
    %26 = vector.shape_cast %23 : vector<16x16x256xbf16> to vector<1x16x1x16x256xbf16>
    tpu.vector_store %arg4[%c0_19, %c0_20, %c0_21, %c0_22, %c0_23], %26 {strides = array<i32>} : memref<1x16x2x16x256xbf16, #tpu.memory_space<vmem>>, vector<1x16x1x16x256xbf16>,
    %c0_24 = arith.constant 0 : index
    %c1_25 = arith.constant 1 : index
    %c0_26 = arith.constant 0 : index
    %c0_27 = arith.constant 0 : index
    %27 = vector.load %arg2[%c0_24, %c1_25, %c0_26, %c0_27] : memref<1x18x16x12xbf16, #tpu.memory_space<vmem>>, vector<1x16x16x12xbf16>
    %28 = vector.shape_cast %27 : vector<1x16x16x12xbf16> to vector<16x16x12xbf16>
    %29 = vector.shape_cast %28 : vector<16x16x12xbf16> to vector<256x12xbf16>
    %c0_28 = arith.constant 0 : index
    %c2 = arith.constant 2 : index
    %c0_29 = arith.constant 0 : index
    %c0_30 = arith.constant 0 : index
    %30 = vector.load %arg2[%c0_28, %c2, %c0_29, %c0_30] : memref<1x18x16x12xbf16, #tpu.memory_space<vmem>>, vector<1x16x16x12xbf16>
    %31 = vector.shape_cast %30 : vector<1x16x16x12xbf16> to vector<16x16x12xbf16>
    %32 = vector.shape_cast %31 : vector<16x16x12xbf16> to vector<256x12xbf16>
    %c1_31 = arith.constant 1 : index
    %c0_32 = arith.constant 0 : index
    %c0_33 = arith.constant 0 : index
    %c0_34 = arith.constant 0 : index
    %33 = vector.load %arg3[%c1_31, %c0_32, %c0_33, %c0_34] : memref<2x2x12x256xbf16, #tpu.memory_space<vmem>>, vector<1x1x12x256xbf16>
    %34 = vector.shape_cast %33 : vector<1x1x12x256xbf16> to vector<12x256xbf16>
    %cst_35 = arith.constant dense<0.000000e+00> : vector<256x256xf32>
    %35 = tpu.matmul %29, %34, %cst_35 {dimension_numbers = #tpu.dot_dimension_numbers<[1], [0], [0], [1], [0, 0, 1, 1], [], []>} : vector<256x12xbf16>, vector<12x256xbf16>, vector<256x256xf32> -> vector<256x256xf32>
    %c1_36 = arith.constant 1 : index
    %c1_37 = arith.constant 1 : index
    %c0_38 = arith.constant 0 : index
    %c0_39 = arith.constant 0 : index
    %36 = vector.load %arg3[%c1_36, %c1_37, %c0_38, %c0_39] : memref<2x2x12x256xbf16, #tpu.memory_space<vmem>>, vector<1x1x12x256xbf16>
    %37 = vector.shape_cast %36 : vector<1x1x12x256xbf16> to vector<12x256xbf16>
    %cst_40 = arith.constant dense<0.000000e+00> : vector<256x256xf32>
    %38 = tpu.matmul %32, %37, %cst_40 {dimension_numbers = #tpu.dot_dimension_numbers<[1], [0], [0], [1], [0, 0, 1, 1], [], []>} : vector<256x12xbf16>, vector<12x256xbf16>, vector<256x256xf32> -> vector<256x256xf32>
    %39 = arith.addf %35, %38 : vector<256x256xf32>
    %cst_41 = arith.constant dense<0.000000e+00> : vector<256xf32>
    %40 = vector.multi_reduction <add>, %39, %cst_41 [0] : vector<256x256xf32> to vector<256xf32>
    %41 = vector.shape_cast %40 : vector<256xf32> to vector<1x256xf32>
    %42 = arith.addf %17, %41 : vector<1x256xf32>
    %43 = arith.mulf %39, %39 : vector<256x256xf32>
    %cst_42 = arith.constant dense<0.000000e+00> : vector<256xf32>
    %44 = vector.multi_reduction <add>, %43, %cst_42 [0] : vector<256x256xf32> to vector<256xf32>
    %45 = vector.shape_cast %44 : vector<256xf32> to vector<1x256xf32>
    %46 = arith.addf %21, %45 : vector<1x256xf32>
    %47 = vector.shape_cast %39 : vector<256x256xf32> to vector<16x16x256xf32>
    %48 = arith.truncf %47 : vector<16x16x256xf32> to vector<16x16x256xbf16>
    %c0_43 = arith.constant 0 : index
    %c0_44 = arith.constant 0 : index
    %c1_45 = arith.constant 1 : index
    %c0_46 = arith.constant 0 : index
    %c0_47 = arith.constant 0 : index
    %49 = vector.load %arg4[%c0_43, %c0_44, %c1_45, %c0_46, %c0_47] : memref<1x16x2x16x256xbf16, #tpu.memory_space<vmem>>, vector<1x16x1x16x256xbf16>
    %50 = vector.shape_cast %49 : vector<1x16x1x16x256xbf16> to vector<16x16x256xbf16>
    %51 = vector.shape_cast %48 : vector<16x16x256xbf16> to vector<1x16x1x16x256xbf16>
    tpu.vector_store %arg4[%c0_43, %c0_44, %c1_45, %c0_46, %c0_47], %51 {strides = array<i32>} : memref<1x16x2x16x256xbf16, #tpu.memory_space<vmem>>, vector<1x16x1x16x256xbf16>,
    %c0_48 = arith.constant 0 : index
    %c0_49 = arith.constant 0 : index
    %c0_50 = arith.constant 0 : index
    %c0_51 = arith.constant 0 : index
    %52 = vector.load %arg5[%c0_48, %c0_49, %c0_50, %c0_51] : memref<1x1x1x256xf32, #tpu.memory_space<vmem>>, vector<1x1x1x256xf32>
    %53 = vector.shape_cast %52 : vector<1x1x1x256xf32> to vector<1x256xf32>
    %54 = vector.shape_cast %42 : vector<1x256xf32> to vector<1x1x1x256xf32>
    tpu.vector_store %arg5[%c0_48, %c0_49, %c0_50, %c0_51], %54 {strides = array<i32>} : memref<1x1x1x256xf32, #tpu.memory_space<vmem>>, vector<1x1x1x256xf32>,
    %c0_52 = arith.constant 0 : index
    %c0_53 = arith.constant 0 : index
    %c0_54 = arith.constant 0 : index
    %c0_55 = arith.constant 0 : index
    %55 = vector.load %arg6[%c0_52, %c0_53, %c0_54, %c0_55] : memref<1x1x1x256xf32, #tpu.memory_space<vmem>>, vector<1x1x1x256xf32>
    %56 = vector.shape_cast %55 : vector<1x1x1x256xf32> to vector<1x256xf32>
    %57 = vector.shape_cast %46 : vector<1x256xf32> to vector<1x1x1x256xf32>
    tpu.vector_store %arg6[%c0_52, %c0_53, %c0_54, %c0_55], %57 {strides = array<i32>} : memref<1x1x1x256xf32, #tpu.memory_space<vmem>>, vector<1x1x1x256xf32>,
    return
  }
  func.func @transform_0(%arg0: i32, %arg1: i32) -> (i32, i32, i32, i32) {
    %c0_i32 = arith.constant 0 : i32
    %c0_i32_0 = arith.constant 0 : i32
    %c0_i32_1 = arith.constant 0 : i32
    %c0_i32_2 = arith.constant 0 : i32
    return %arg0, %c0_i32, %c0_i32_0, %c0_i32_1 : i32, i32, i32, i32
  }
  func.func @transform_1(%arg0: i32, %arg1: i32) -> (i32, i32, i32, i32) {
    %c0_i32 = arith.constant 0 : i32
    %c0_i32_0 = arith.constant 0 : i32
    %c0_i32_1 = arith.constant 0 : i32
    %c0_i32_2 = arith.constant 0 : i32
    %c0_i32_3 = arith.constant 0 : i32
    return %c0_i32, %c0_i32_0, %c0_i32_1, %c0_i32_2 : i32, i32, i32, i32
  }
  func.func @transform_2(%arg0: i32, %arg1: i32) -> (i32, i32, i32, i32, i32) {
    %c0_i32 = arith.constant 0 : i32
    %c0_i32_0 = arith.constant 0 : i32
    %c0_i32_1 = arith.constant 0 : i32
    %c0_i32_2 = arith.constant 0 : i32
    return %arg0, %arg1, %c0_i32, %c0_i32_0, %c0_i32_1 : i32, i32, i32, i32, i32
  }
  func.func @transform_3(%arg0: i32, %arg1: i32) -> (i32, i32, i32, i32) {
    %c0_i32 = arith.constant 0 : i32
    %c0_i32_0 = arith.constant 0 : i32
    %c0_i32_1 = arith.constant 0 : i32
    return %arg0, %arg1, %c0_i32, %c0_i32_0 : i32, i32, i32, i32
  }
  func.func @transform_4(%arg0: i32, %arg1: i32) -> (i32, i32, i32, i32) {
    %c0_i32 = arith.constant 0 : i32
    %c0_i32_0 = arith.constant 0 : i32
    %c0_i32_1 = arith.constant 0 : i32
    return %arg0, %arg1, %c0_i32, %c0_i32_0 : i32, i32, i32, i32
  }
}

module attributes {stable_mosaic.version = 11 : i64} {
  func.func @_bn_lrelu_kernel(%arg0: i32, %arg1: memref<1024x256xbf16, #tpu.memory_space<vmem>>, %arg2: memref<1x256xf32, #tpu.memory_space<vmem>>, %arg3: memref<1x256xf32, #tpu.memory_space<vmem>>, %arg4: memref<1024x256xf32, #tpu.memory_space<vmem>>) attributes {dimension_semantics = [#tpu.dimension_semantics<parallel>], iteration_bounds = array<i64: 1>, scalar_prefetch = 0 : i64, scratch_operands = 0 : i64, tpu.core_type = #tpu.core_type<tc>, window_params = [{transform_indices = @transform_0, window_bounds = array<i64: 1024, 256>}, {pipeline_mode = #tpu.pipeline_mode<synchronous>, transform_indices = @transform_1, window_bounds = array<i64: 1, 256>}, {pipeline_mode = #tpu.pipeline_mode<synchronous>, transform_indices = @transform_2, window_bounds = array<i64: 1, 256>}, {transform_indices = @transform_3, window_bounds = array<i64: 1024, 256>}]} {
    %c0 = arith.constant 0 : index
    %c0_0 = arith.constant 0 : index
    %0 = vector.load %arg1[%c0, %c0_0] : memref<1024x256xbf16, #tpu.memory_space<vmem>>, vector<1024x256xbf16>
    %1 = arith.extf %0 : vector<1024x256xbf16> to vector<1024x256xf32>
    %c0_1 = arith.constant 0 : index
    %c0_2 = arith.constant 0 : index
    %2 = vector.load %arg2[%c0_1, %c0_2] : memref<1x256xf32, #tpu.memory_space<vmem>>, vector<1x256xf32>
    %3 = vector.broadcast %2 : vector<1x256xf32> to vector<1024x256xf32>
    %4 = arith.mulf %1, %3 : vector<1024x256xf32>
    %c0_3 = arith.constant 0 : index
    %c0_4 = arith.constant 0 : index
    %5 = vector.load %arg3[%c0_3, %c0_4] : memref<1x256xf32, #tpu.memory_space<vmem>>, vector<1x256xf32>
    %6 = vector.broadcast %5 : vector<1x256xf32> to vector<1024x256xf32>
    %7 = arith.addf %4, %6 : vector<1024x256xf32>
    %cst = arith.constant 0.000000e+00 : f32
    %8 = vector.broadcast %cst : f32 to vector<1024x256xf32>
    %9 = arith.cmpf oge, %7, %8 : vector<1024x256xf32>
    %cst_5 = arith.constant 0.00999999977 : f32
    %10 = vector.broadcast %cst_5 : f32 to vector<1024x256xf32>
    %11 = arith.mulf %10, %7 : vector<1024x256xf32>
    %12 = arith.select %9, %7, %11 : vector<1024x256xi1>, vector<1024x256xf32>
    %c0_6 = arith.constant 0 : index
    %c0_7 = arith.constant 0 : index
    %13 = vector.load %arg4[%c0_6, %c0_7] : memref<1024x256xf32, #tpu.memory_space<vmem>>, vector<1024x256xf32>
    tpu.vector_store %arg4[%c0_6, %c0_7], %12 {strides = array<i32>} : memref<1024x256xf32, #tpu.memory_space<vmem>>, vector<1024x256xf32>,
    return
  }
  func.func @transform_0(%arg0: i32) -> (i32, i32) {
    %c0_i32 = arith.constant 0 : i32
    %c0_i32_0 = arith.constant 0 : i32
    return %arg0, %c0_i32 : i32, i32
  }
  func.func @transform_1(%arg0: i32) -> (i32, i32) {
    %c0_i32 = arith.constant 0 : i32
    %c0_i32_0 = arith.constant 0 : i32
    %c0_i32_1 = arith.constant 0 : i32
    return %c0_i32, %c0_i32_0 : i32, i32
  }
  func.func @transform_2(%arg0: i32) -> (i32, i32) {
    %c0_i32 = arith.constant 0 : i32
    %c0_i32_0 = arith.constant 0 : i32
    %c0_i32_1 = arith.constant 0 : i32
    return %c0_i32, %c0_i32_0 : i32, i32
  }
  func.func @transform_3(%arg0: i32) -> (i32, i32) {
    %c0_i32 = arith.constant 0 : i32
    %c0_i32_0 = arith.constant 0 : i32
    return %arg0, %c0_i32 : i32, i32
  }
}

</mosaic_0001>

<llo_original>
// kernel: tile.13
$region0: #{tile.13}
  #allocation0 [shape = 's32[1]{0}', space=sflag, size = 0x4, scoped, tag = 'scoped memory for tile.13']
  %s0 = inlined_call_operand.vmem [shape: f32[128], index: 0, kind: input, shape index: {}]
  %s1 = inlined_call_operand.vmem [shape: f32[2,128], index: 1, kind: output, shape index: {}]
  // Predicated region
  $region2: #{tile.13} parent=0 // pred_check
    _
  $region3: #{tile.13} parent=0 // pred_check_branch
    %3 = sbr.rel (0) target = $region5
  $region4: #{tile.13} parent=0 // pred_region
    _
  $region5: #{tile.13} parent=0 // pred_fallthru
    _
  %v4 = vld [vmem:[%s0] ss:$0 sm:$0xff]
  %5 = vst [vmem:[%s1] sm:$0x3] %v4

// kernel: deconv4x4_forward.2
$region0: #{deconv4x4_forward.2}
  #allocation0 [shape = 'u32[]', space=smem, size = 0x4, offset = 0x4, fixed_abs, tag = 'smem constant byte address 0x4 - core index']
  #allocation1 [shape = 'u32[72,128]{1,0:T(1,128)}', space=vmem, size = 0x9000, scoped, tag = 'internal scratch']
  %s0 = inlined_call_operand.vmem [shape: bf16[2,18,16,12], index: 0, kind: input, shape index: {}]
  %s1 = inlined_call_operand.vmem [shape: bf16[2,2,12,256], index: 1, kind: input, shape index: {}]
  %s2 = inlined_call_operand.vmem [shape: bf16[2,16,2,16,256], index: 2, kind: output, shape index: {0}]
  %s3 = inlined_call_operand.vmem [shape: f32[2,1,1,256], index: 3, kind: output, shape index: {1}]
  %s4 = inlined_call_operand.vmem [shape: f32[2,1,1,256], index: 4, kind: output, shape index: {2}]
  %5 = xla_tuple %s2, %s3, %s4
  %s6 = sld [smem:[#allocation0]]
  $region57: #{deconv4x4_forward.2} parent=0
    _
  %s8 = ssub.s32 1, %s6
  %s9 = scalar_select 0, %s8, %s6
  loop: start=0, step=1, limit=4
  $region2: #{deconv4x4_forward.2} parent=0 // loop_pre_header
    _
  $region3: #{deconv4x4_forward.2} parent=0 // loop_header
    %s11 = sphi 0, %s15
    %p12 = scmp.ge.s32.totalorder %s11, 4
    %s18 = sphi 0, %s30
    %s19 = sphi 0, %s26
    %s20 = sphi 0, %s18
    %s21 = sphi 0, %s19
    %s22 = sphi 0, %s20
    %s23 = sphi 0, %s21
    %s33 = sphi 0, %s35
    %s36 = sphi 0, %s33
    %s37 = sphi 0, %s36
    %s53 = sphi 0, %s37
    %s57 = sphi 0, %s57
    %s59 = sphi 0, %s57
    %s60 = sphi 0, %s59
    %s74 = sphi 0, %s60
    %s82 = sphi 0, %s84
    %s85 = sphi 0, %s82
    %s86 = sphi 0, %s85
    %s102 = sphi 0, %s86
    %s110 = sphi 0, %s112
    %s113 = sphi 0, %s110
    %s114 = sphi 0, %s113
    %s130 = sphi 0, %s114
    %s138 = sphi 0, %s140
    %s141 = sphi 0, %s138
    %s142 = sphi 0, %s141
    %s158 = sphi 0, %s142
  $region4: #{deconv4x4_forward.2} parent=0 // loop_header_branch
    %14 = sbr.rel (%p12) target = $region8
  $region5: #{deconv4x4_forward.2} parent=0 // loop_body
    %s16 = ssub.s32 %s11, 1
    %s17 = ssub.s32 %s11, 2
    %s24 = sadd.s32 1, %s19
    %p25 = scmp.ge.s32.totalorder %s24, 1
    %s26 = scalar_select %p25, 0, %s24
    %s27 = sadd.s32 1, %s18
    %s28 = scalar_select %p25, %s27, %s18
    %p29 = scmp.ge.s32.totalorder %s28, 2
    %s30 = scalar_select %p29, 0, %s28
    %s31 = ssub.s32 %s18, %s30
    %p32 = scmp.eq.s32.totalorder %s31, 0
    %s34 = sadd.s32 %s33, 1
    %s35 = scalar_select %p32, %s33, %s34
    %p38 = pneg %p32
    %p39 = scmp.eq.s32.totalorder %s11, 1
    %p40 = por %p38, %p39
    %p41 = scmp.ne.s32.totalorder %s33, %s36
    %p42 = scmp.eq.s32.totalorder %s11, 0
    %p43 = por %p41, %p42
    %p44 = scmp.ne.s32.totalorder %s33, %s36
    %p45 = scmp.eq.s32.totalorder %s16, 1
    %p46 = por %p44, %p45
    %p47 = scmp.ne.s32.totalorder %s36, %s37
    %p48 = scmp.eq.s32.totalorder %s16, 0
    %p49 = por %p47, %p48
    %p50 = scmp.ne.s32.totalorder %s36, %s37
    %p51 = scmp.eq.s32.totalorder %s17, 1
    %p52 = por %p50, %p51
    %p54 = scmp.ne.s32.totalorder %s37, %s53
    %p55 = scmp.eq.s32.totalorder %s17, 0
    %p56 = por %p54, %p55
    %s58 = sadd.s32 %s57, 1
    %p61 = scmp.eq.s32.totalorder %s11, 1
    %p62 = scmp.ne.s32.totalorder %s57, %s59
    %p63 = scmp.eq.s32.totalorder %s11, 0
    %p64 = por %p62, %p63
    %p65 = scmp.ne.s32.totalorder %s57, %s59
    %p66 = scmp.eq.s32.totalorder %s16, 1
    %p67 = por %p65, %p66
    %p68 = scmp.ne.s32.totalorder %s59, %s60
    %p69 = scmp.eq.s32.totalorder %s16, 0
    %p70 = por %p68, %p69
    %p71 = scmp.ne.s32.totalorder %s59, %s60
    %p72 = scmp.eq.s32.totalorder %s17, 1
    %p73 = por %p71, %p72
    %p75 = scmp.ne.s32.totalorder %s60, %s74
    %p76 = scmp.eq.s32.totalorder %s17, 0
    %p77 = por %p75, %p76
    %s78 = ssub.s32 %s18, %s30
    %s79 = ssub.s32 %s19, %s26
    %s80 = sor.u32 %s78, %s79
    %p81 = scmp.eq.s32.totalorder %s80, 0
    %s83 = sadd.s32 %s82, 1
    %s84 = scalar_select %p81, %s82, %s83
    %p87 = pneg %p81
    %p88 = scmp.eq.s32.totalorder %s11, 1
    %p89 = por %p87, %p88
    %p90 = scmp.ne.s32.totalorder %s82, %s85
    %p91 = scmp.eq.s32.totalorder %s11, 0
    %p92 = por %p90, %p91
    %p93 = scmp.ne.s32.totalorder %s82, %s85
    %p94 = scmp.eq.s32.totalorder %s16, 1
    %p95 = por %p93, %p94
    %p96 = scmp.ne.s32.totalorder %s85, %s86
    %p97 = scmp.eq.s32.totalorder %s16, 0
    %p98 = por %p96, %p97
    %p99 = scmp.ne.s32.totalorder %s85, %s86
    %p100 = scmp.eq.s32.totalorder %s17, 1
    %p101 = por %p99, %p100
    %p103 = scmp.ne.s32.totalorder %s86, %s102
    %p104 = scmp.eq.s32.totalorder %s17, 0
    %p105 = por %p103, %p104
    %s106 = ssub.s32 %s18, %s30
    %s107 = ssub.s32 %s19, %s26
    %s108 = sor.u32 %s106, %s107
    %p109 = scmp.eq.s32.totalorder %s108, 0
    %s111 = sadd.s32 %s110, 1
    %s112 = scalar_select %p109, %s110, %s111
    %p115 = pneg %p109
    %p116 = scmp.eq.s32.totalorder %s11, 1
    %p117 = por %p115, %p116
    %p118 = scmp.ne.s32.totalorder %s110, %s113
    %p119 = scmp.eq.s32.totalorder %s11, 0
    %p120 = por %p118, %p119
    %p121 = scmp.ne.s32.totalorder %s110, %s113
    %p122 = scmp.eq.s32.totalorder %s16, 1
    %p123 = por %p121, %p122
    %p124 = scmp.ne.s32.totalorder %s113, %s114
    %p125 = scmp.eq.s32.totalorder %s16, 0
    %p126 = por %p124, %p125
    %p127 = scmp.ne.s32.totalorder %s113, %s114
    %p128 = scmp.eq.s32.totalorder %s17, 1
    %p129 = por %p127, %p128
    %p131 = scmp.ne.s32.totalorder %s114, %s130
    %p132 = scmp.eq.s32.totalorder %s17, 0
    %p133 = por %p131, %p132
    %s134 = ssub.s32 %s18, %s30
    %s135 = ssub.s32 %s19, %s26
    %s136 = sor.u32 %s134, %s135
    %p137 = scmp.eq.s32.totalorder %s136, 0
    %s139 = sadd.s32 %s138, 1
    %s140 = scalar_select %p137, %s138, %s139
    %p143 = pneg %p137
    %p144 = scmp.eq.s32.totalorder %s11, 1
    %p145 = por %p143, %p144
    %p146 = scmp.ne.s32.totalorder %s138, %s141
    %p147 = scmp.eq.s32.totalorder %s11, 0
    %p148 = por %p146, %p147
    %p149 = scmp.ne.s32.totalorder %s138, %s141
    %p150 = scmp.eq.s32.totalorder %s16, 1
    %p151 = por %p149, %p150
    %p152 = scmp.ne.s32.totalorder %s141, %s142
    %p153 = scmp.eq.s32.totalorder %s16, 0
    %p154 = por %p152, %p153
    %p155 = scmp.ne.s32.totalorder %s141, %s142
    %p156 = scmp.eq.s32.totalorder %s17, 1
    %p157 = por %p155, %p156
    %p159 = scmp.ne.s32.totalorder %s142, %s158
    %p160 = scmp.eq.s32.totalorder %s17, 0
    %p161 = por %p159, %p160
    %p162 = scmp.le.s32.totalorder 1, %s11
    %p163 = scmp.lt.s32.totalorder %s11, 3
    %p164 = pnand %p162, %p163
    %p165 = pneg %p164
    // Predicated region
    $region9: #{deconv4x4_forward.2} parent=5 // pred_check
      _
    $region10: #{deconv4x4_forward.2} parent=5 // pred_check_branch
      %167 = sbr.rel (%p164) target = $region12
    $region11: #{deconv4x4_forward.2} parent=5 // pred_region
      %s168 = ssub.s32 %s11, 1
      // Predicated region
      $region13: #{deconv4x4_forward.2} parent=11 // pred_check
        %p169 = pneg %p70
      $region14: #{deconv4x4_forward.2} parent=11 // pred_check_branch
        %171 = sbr.rel (%p169) target = $region16
      $region15: #{deconv4x4_forward.2} parent=11 // pred_region
        _
      $region16: #{deconv4x4_forward.2} parent=11 // pred_fallthru
        _
    $region12: #{deconv4x4_forward.2} parent=5 // pred_fallthru
      _
    %p172 = scmp.lt.s32.totalorder %s11, 2
    // Predicated region
    $region17: #{deconv4x4_forward.2} parent=5 // pred_check
      %p173 = pneg %p172
    $region18: #{deconv4x4_forward.2} parent=5 // pred_check_branch
      %175 = sbr.rel (%p173) target = $region20
    $region19: #{deconv4x4_forward.2} parent=5 // pred_region
      // Predicated region
      $region21: #{deconv4x4_forward.2} parent=19 // pred_check
        %p176 = pneg %p43
      $region22: #{deconv4x4_forward.2} parent=19 // pred_check_branch
        %178 = sbr.rel (%p176) target = $region24
      $region23: #{deconv4x4_forward.2} parent=19 // pred_region
        %p179 = scmp.lt.s32.totalorder %s18, 1
        %s180 = scalar_select %p179, %s18, 1
        %s181 = smul.addr %s180, 36
        %s182 = smul.addr %s181, 4
        %s183 = scalar_lea.vmem %s0, %s182
      $region24: #{deconv4x4_forward.2} parent=19 // pred_fallthru
        _
    $region20: #{deconv4x4_forward.2} parent=5 // pred_fallthru
      _
    %p184 = scmp.le.s32.totalorder 1, %s11
    %p185 = scmp.lt.s32.totalorder %s11, 3
    %p186 = pnand %p184, %p185
    %p187 = pneg %p186
    // Predicated region
    $region25: #{deconv4x4_forward.2} parent=5 // pred_check
      _
    $region26: #{deconv4x4_forward.2} parent=5 // pred_check_branch
      %189 = sbr.rel (%p186) target = $region28
    $region27: #{deconv4x4_forward.2} parent=5 // pred_region
      %s190 = ssub.s32 %s11, 1
      %p191 = scmp.lt.s32.totalorder %s20, 1
      %s192 = scalar_select %p191, %s20, 1
      %s193 = smul.addr %s192, 36
      %s194 = smul.addr %s193, 4
      %s195 = scalar_lea.vmem %s0, %s194
      %p196 = pneg %p49
      %p197 = pneg %p46
      %p198 = pneg %p70
      %p199 = pneg %p67
      %p200 = pneg %p98
      %p201 = pneg %p95
      %s202 = smul.u32 16, %s21
      %p203 = scmp.lt.s32.totalorder %s20, 1
      %s204 = scalar_select %p203, %s20, 1
      %p205 = scmp.lt.s32.totalorder %s202, 15
      %s206 = scalar_select %p205, %s202, 15
      %s207 = smul.addr %s206, 8
      %s208 = smul.addr %s204, 128
      %s209 = sadd.s32 %s207, %s208
      %s210 = smul.addr %s209, 4
      %s211 = scalar_lea.vmem %s2, %s210
      %p212 = pneg %p126
      %p213 = pneg %p123
      %p214 = scmp.lt.s32.totalorder %s20, 1
      %s215 = scalar_select %p214, %s20, 1
      %p216 = scmp.lt.s32.totalorder %s21, 0
      %s217 = scalar_select %p216, %s21, 0
      %s218 = smul.addr %s217, 2
      %s219 = smul.addr %s215, 2
      %s220 = sadd.s32 %s218, %s219
      %s221 = scalar_lea.vmem %s3, %s220
      %p222 = pneg %p154
      %p223 = pneg %p151
      %p224 = scmp.lt.s32.totalorder %s20, 1
      %s225 = scalar_select %p224, %s20, 1
      %p226 = scmp.lt.s32.totalorder %s21, 0
      %s227 = scalar_select %p226, %s21, 0
      %s228 = smul.addr %s227, 2
      %s229 = smul.addr %s225, 2
      %s230 = sadd.s32 %s228, %s229
      %s231 = scalar_lea.vmem %s4, %s230
      %p232 = scmp.lt.s32.totalorder %s20, 1
      %s233 = scalar_select %p232, %s20, 1
      %s234 = smul.addr %s233, 36
      %s235 = smul.addr %s234, 4
      %s236 = scalar_lea.vmem %s0, %s235
      %s237 = smul.u32 16, %s21
      %p238 = scmp.lt.s32.totalorder %s20, 1
      %s239 = scalar_select %p238, %s20, 1
      %p240 = scmp.lt.s32.totalorder %s237, 15
      %s241 = scalar_select %p240, %s237, 15
      %s242 = smul.addr %s241, 8
      %s243 = smul.addr %s239, 128
      %s244 = sadd.s32 %s242, %s243
      %s245 = smul.addr %s244, 4
      %s246 = scalar_lea.vmem %s2, %s245
      %s247 = smul.u32 16, %s21
      %p248 = scmp.lt.s32.totalorder %s20, 1
      %s249 = scalar_select %p248, %s20, 1
      %p250 = scmp.lt.s32.totalorder %s21, 0
      %s251 = scalar_select %p250, %s21, 0
      %s252 = smul.addr %s251, 2
      %s253 = smul.addr %s249, 2
      %s254 = sadd.s32 %s252, %s253
      %s255 = scalar_lea.vmem %s3, %s254
      %p256 = scmp.lt.s32.totalorder %s20, 1
      %s257 = scalar_select %p256, %s20, 1
      %p258 = scmp.lt.s32.totalorder %s21, 0
      %s259 = scalar_select %p258, %s21, 0
      %s260 = smul.addr %s259, 2
      %s261 = smul.addr %s257, 2
      %s262 = sadd.s32 %s260, %s261
      %s263 = scalar_lea.vmem %s4, %s262
      %v265 = vld [vmem:[%s236] sm:$0xf]
      %v266 = vld [vmem:[%s236 + $0x4] sm:$0xf]
      %v267 = vld [vmem:[%s236 + $0x8] sm:$0xf]
      %v268 = vld [vmem:[%s236 + $0xc] sm:$0xf]
      %v269 = vld [vmem:[%s236 + $0x10] sm:$0xf]
      %v270 = vld [vmem:[%s236 + $0x14] sm:$0xf]
      %v271 = vld [vmem:[%s236 + $0x18] sm:$0xf]
      %v272 = vld [vmem:[%s236 + $0x1c] sm:$0xf]
      %v273 = vld [vmem:[%s236 + $0x20] sm:$0xf]
      %v274 = vld [vmem:[%s236 + $0x24] sm:$0xf]
      %v275 = vld [vmem:[%s236 + $0x28] sm:$0xf]
      %v276 = vld [vmem:[%s236 + $0x2c] sm:$0xf]
      %v277 = vld [vmem:[%s236 + $0x30] sm:$0xf]
      %v278 = vld [vmem:[%s236 + $0x34] sm:$0xf]
      %v279 = vld [vmem:[%s236 + $0x38] sm:$0xf]
      %v280 = vld [vmem:[%s236 + $0x3c] sm:$0xf]
      %v281 = vld [vmem:[%s236 + $0x40] sm:$0xf]
      %v282 = vld [vmem:[%s236 + $0x44] sm:$0xf]
      %v283 = vld [vmem:[%s236 + $0x48] sm:$0xf]
      %v284 = vld [vmem:[%s236 + $0x4c] sm:$0xf]
      %v285 = vld [vmem:[%s236 + $0x50] sm:$0xf]
      %v286 = vld [vmem:[%s236 + $0x54] sm:$0xf]
      %v287 = vld [vmem:[%s236 + $0x58] sm:$0xf]
      %v288 = vld [vmem:[%s236 + $0x5c] sm:$0xf]
      %v289 = vld [vmem:[%s236 + $0x60] sm:$0xf]
      %v290 = vld [vmem:[%s236 + $0x64] sm:$0xf]
      %v291 = vld [vmem:[%s236 + $0x68] sm:$0xf]
      %v292 = vld [vmem:[%s236 + $0x6c] sm:$0xf]
      %v293 = vld [vmem:[%s236 + $0x70] sm:$0xf]
      %v294 = vld [vmem:[%s236 + $0x74] sm:$0xf]
      %v295 = vld [vmem:[%s236 + $0x78] sm:$0xf]
      %v296 = vld [vmem:[%s236 + $0x7c] sm:$0xf]
      %s297 = scalar_lea.vmem %s236, 8
      %v298 = vld [vmem:[%s297] sm:$0xf]
      %v299 = vld [vmem:[%s297 + $0x4] sm:$0xf]
      %v300 = vld [vmem:[%s297 + $0x8] sm:$0xf]
      %v301 = vld [vmem:[%s297 + $0xc] sm:$0xf]
      %v302 = vld [vmem:[%s297 + $0x10] sm:$0xf]
      %v303 = vld [vmem:[%s297 + $0x14] sm:$0xf]
      %v304 = vld [vmem:[%s297 + $0x18] sm:$0xf]
      %v305 = vld [vmem:[%s297 + $0x1c] sm:$0xf]
      %v306 = vld [vmem:[%s297 + $0x20] sm:$0xf]
      %v307 = vld [vmem:[%s297 + $0x24] sm:$0xf]
      %v308 = vld [vmem:[%s297 + $0x28] sm:$0xf]
      %v309 = vld [vmem:[%s297 + $0x2c] sm:$0xf]
      %v310 = vld [vmem:[%s297 + $0x30] sm:$0xf]
      %v311 = vld [vmem:[%s297 + $0x34] sm:$0xf]
      %v312 = vld [vmem:[%s297 + $0x38] sm:$0xf]
      %v313 = vld [vmem:[%s297 + $0x3c] sm:$0xf]
      %v314 = vld [vmem:[%s297 + $0x40] sm:$0xf]
      %v315 = vld [vmem:[%s297 + $0x44] sm:$0xf]
      %v316 = vld [vmem:[%s297 + $0x48] sm:$0xf]
      %v317 = vld [vmem:[%s297 + $0x4c] sm:$0xf]
      %v318 = vld [vmem:[%s297 + $0x50] sm:$0xf]
      %v319 = vld [vmem:[%s297 + $0x54] sm:$0xf]
      %v320 = vld [vmem:[%s297 + $0x58] sm:$0xf]
      %v321 = vld [vmem:[%s297 + $0x5c] sm:$0xf]
      %v322 = vld [vmem:[%s297 + $0x60] sm:$0xf]
      %v323 = vld [vmem:[%s297 + $0x64] sm:$0xf]
      %v324 = vld [vmem:[%s297 + $0x68] sm:$0xf]
      %v325 = vld [vmem:[%s297 + $0x6c] sm:$0xf]
      %v326 = vld [vmem:[%s297 + $0x70] sm:$0xf]
      %v327 = vld [vmem:[%s297 + $0x74] sm:$0xf]
      %v328 = vld [vmem:[%s297 + $0x78] sm:$0xf]
      %v329 = vld [vmem:[%s297 + $0x7c] sm:$0xf]
      %v330 = vld [vmem:[%s1] sm:$0xff]
      %v331 = vld [vmem:[%s1 + $0x8] sm:$0x33]
      %s332 = scalar_lea.vmem %s1, 16
      %v333 = vld [vmem:[%s332] sm:$0xff]
      %v334 = vld [vmem:[%s332 + $0x8] sm:$0x33]
      %v367 = vunpack.c.l.b16 %v298
      %v368 = vunpack.c.l.b16 %v299
      %v369 = vunpack.c.l.b16 %v300
      %v370 = vunpack.c.l.b16 %v301
      %v371 = vunpack.c.l.b16 %v302
      %v372 = vunpack.c.l.b16 %v303
      %v373 = vunpack.c.l.b16 %v304
      %v374 = vunpack.c.l.b16 %v305
      %v375 = vunpack.c.l.b16 %v306
      %v376 = vunpack.c.l.b16 %v307
      %v377 = vunpack.c.l.b16 %v308
      %v378 = vunpack.c.l.b16 %v309
      %v379 = vunpack.c.l.b16 %v310
      %v380 = vunpack.c.l.b16 %v311
      %v381 = vunpack.c.l.b16 %v312
      %v382 = vunpack.c.l.b16 %v313
      %v383 = vunpack.c.l.b16 %v314
      %v384 = vunpack.c.l.b16 %v315
      %v385 = vunpack.c.l.b16 %v316
      %v386 = vunpack.c.l.b16 %v317
      %v387 = vunpack.c.l.b16 %v318
      %v388 = vunpack.c.l.b16 %v319
      %v389 = vunpack.c.l.b16 %v320
      %v390 = vunpack.c.l.b16 %v321
      %v391 = vunpack.c.l.b16 %v322
      %v392 = vunpack.c.l.b16 %v323
      %v393 = vunpack.c.l.b16 %v324
      %v394 = vunpack.c.l.b16 %v325
      %v395 = vunpack.c.l.b16 %v326
      %v396 = vunpack.c.l.b16 %v327
      %v397 = vunpack.c.l.b16 %v328
      %v398 = vunpack.c.l.b16 %v329
      %v399 = vpack.c.b16 %v368, %v367
      %v400 = vpack.c.b16 %v370, %v369
      %v401 = vpack.c.b16 %v372, %v371
      %v402 = vpack.c.b16 %v374, %v373
      %v403 = vpack.c.b16 %v376, %v375
      %v404 = vpack.c.b16 %v378, %v377
      %v405 = vpack.c.b16 %v380, %v379
      %v406 = vpack.c.b16 %v382, %v381
      %v407 = vpack.c.b16 %v384, %v383
      %v408 = vpack.c.b16 %v386, %v385
      %v409 = vpack.c.b16 %v388, %v387
      %v410 = vpack.c.b16 %v390, %v389
      %v411 = vpack.c.b16 %v392, %v391
      %v412 = vpack.c.b16 %v394, %v393
      %v413 = vpack.c.b16 %v396, %v395
      %v414 = vpack.c.b16 %v398, %v397
      %v417 = vunpack.c.l.b16 %v333
      %v418 = vunpack.c.h.b16 %v333
      %v419 = vunpack.c.l.b16 %v334
      %v420 = vunpack.c.h.b16 %v334
      %v421 = vpack.c.b16 %v419, %v417
      %v422 = vpack.c.b16 %v420, %v418
      %vm423 = vcmask 97280
      %v425 = vsel %vm423, %v399, 0
      %v428 = vsel %vm423, %v400, 0
      %v431 = vsel %vm423, %v401, 0
      %v434 = vsel %vm423, %v402, 0
      %v437 = vsel %vm423, %v403, 0
      %v440 = vsel %vm423, %v404, 0
      %v443 = vsel %vm423, %v405, 0
      %v446 = vsel %vm423, %v406, 0
      %v449 = vsel %vm423, %v407, 0
      %v452 = vsel %vm423, %v408, 0
      %v455 = vsel %vm423, %v409, 0
      %v458 = vsel %vm423, %v410, 0
      %v461 = vsel %vm423, %v411, 0
      %v464 = vsel %vm423, %v412, 0
      %v467 = vsel %vm423, %v413, 0
      %v470 = vsel %vm423, %v414, 0
      %vm472 = vcmask 1045504
      %v474 = vsel %vm472, %v421, 0
      %v477 = vsel %vm472, %v422, 0
      %479 = vmatpush.bf16.msra.mxu0 0
      %480 = vmatpush.bf16.msra.mxu0 0
      %481 = vmatpush.bf16.msra.mxu0 0
      %482 = vmatpush.bf16.msra.mxu0 0
      %483 = vmatpush.bf16.msra.mxu0 0
      %484 = vmatpush.bf16.msra.mxu0 0
      %485 = vmatpush.bf16.msra.mxu0 0
      %486 = vmatpush.bf16.msra.mxu0 %v474
      %487 = vmatmul.bf16.gmra.mxu0 %v425
      %v488 = vpop.f32.mrf.mxu0
      %v489 = vadd.f32 0.0, %v488
      %v490 = vpop.f32.mrf.mxu0
      %v491 = vadd.f32 0.0, %v490
      %492 = vmatmul.bf16.gmra.mxu0 %v428
      %v493 = vpop.f32.mrf.mxu0
      %v494 = vadd.f32 0.0, %v493
      %v495 = vpop.f32.mrf.mxu0
      %v496 = vadd.f32 0.0, %v495
      %497 = vmatmul.bf16.gmra.mxu0 %v431
      %v498 = vpop.f32.mrf.mxu0
      %v499 = vadd.f32 0.0, %v498
      %v500 = vpop.f32.mrf.mxu0
      %v501 = vadd.f32 0.0, %v500
      %502 = vmatmul.bf16.gmra.mxu0 %v434
      %v503 = vpop.f32.mrf.mxu0
      %v504 = vadd.f32 0.0, %v503
      %v505 = vpop.f32.mrf.mxu0
      %v506 = vadd.f32 0.0, %v505
      %507 = vmatmul.bf16.gmra.mxu0 %v437
      %v508 = vpop.f32.mrf.mxu0
      %v509 = vadd.f32 0.0, %v508
      %v510 = vpop.f32.mrf.mxu0
      %v511 = vadd.f32 0.0, %v510
      %512 = vmatmul.bf16.gmra.mxu0 %v440
      %v513 = vpop.f32.mrf.mxu0
      %v514 = vadd.f32 0.0, %v513
      %v515 = vpop.f32.mrf.mxu0
      %v516 = vadd.f32 0.0, %v515
      %517 = vmatmul.bf16.gmra.mxu0 %v443
      %v518 = vpop.f32.mrf.mxu0
      %v519 = vadd.f32 0.0, %v518
      %v520 = vpop.f32.mrf.mxu0
      %v521 = vadd.f32 0.0, %v520
      %522 = vmatmul.bf16.gmra.mxu0 %v446
      %v523 = vpop.f32.mrf.mxu0
      %v524 = vadd.f32 0.0, %v523
      %v525 = vpop.f32.mrf.mxu0
      %v526 = vadd.f32 0.0, %v525
      %527 = vmatmul.bf16.gmra.mxu0 %v449
      %v528 = vpop.f32.mrf.mxu0
      %v529 = vadd.f32 0.0, %v528
      %v530 = vpop.f32.mrf.mxu0
      %v531 = vadd.f32 0.0, %v530
      %532 = vmatmul.bf16.gmra.mxu0 %v452
      %v533 = vpop.f32.mrf.mxu0
      %v534 = vadd.f32 0.0, %v533
      %v535 = vpop.f32.mrf.mxu0
      %v536 = vadd.f32 0.0, %v535
      %537 = vmatmul.bf16.gmra.mxu0 %v455
      %v538 = vpop.f32.mrf.mxu0
      %v539 = vadd.f32 0.0, %v538
      %v540 = vpop.f32.mrf.mxu0
      %v541 = vadd.f32 0.0, %v540
      %542 = vmatmul.bf16.gmra.mxu0 %v458
      %v543 = vpop.f32.mrf.mxu0
      %v544 = vadd.f32 0.0, %v543
      %v545 = vpop.f32.mrf.mxu0
      %v546 = vadd.f32 0.0, %v545
      %547 = vmatmul.bf16.gmra.mxu0 %v461
      %v548 = vpop.f32.mrf.mxu0
      %v549 = vadd.f32 0.0, %v548
      %v550 = vpop.f32.mrf.mxu0
      %v551 = vadd.f32 0.0, %v550
      %552 = vmatmul.bf16.gmra.mxu0 %v464
      %v553 = vpop.f32.mrf.mxu0
      %v554 = vadd.f32 0.0, %v553
      %v555 = vpop.f32.mrf.mxu0
      %v556 = vadd.f32 0.0, %v555
      %557 = vmatmul.bf16.gmra.mxu0 %v467
      %v558 = vpop.f32.mrf.mxu0
      %v559 = vadd.f32 0.0, %v558
      %v560 = vpop.f32.mrf.mxu0
      %v561 = vadd.f32 0.0, %v560
      %562 = vmatmul.bf16.gmra.mxu0 %v470
      %v563 = vpop.f32.mrf.mxu0
      %v564 = vadd.f32 0.0, %v563
      %v565 = vpop.f32.mrf.mxu0
      %v566 = vadd.f32 0.0, %v565
      %567 = vdwg.mxu0
      %568 = vmatpush.bf16.msra.mxu0 0
      %569 = vmatpush.bf16.msra.mxu0 0
      %570 = vmatpush.bf16.msra.mxu0 0
      %571 = vmatpush.bf16.msra.mxu0 0
      %572 = vmatpush.bf16.msra.mxu0 0
      %573 = vmatpush.bf16.msra.mxu0 0
      %574 = vmatpush.bf16.msra.mxu0 0
      %575 = vmatpush.bf16.msra.mxu0 %v477
      %576 = vmatmul.bf16.gmra.mxu0 %v425
      %v577 = vpop.f32.mrf.mxu0
      %v578 = vadd.f32 0.0, %v577
      %v579 = vpop.f32.mrf.mxu0
      %v580 = vadd.f32 0.0, %v579
      %581 = vmatmul.bf16.gmra.mxu0 %v428
      %v582 = vpop.f32.mrf.mxu0
      %v583 = vadd.f32 0.0, %v582
      %v584 = vpop.f32.mrf.mxu0
      %v585 = vadd.f32 0.0, %v584
      %586 = vmatmul.bf16.gmra.mxu0 %v431
      %v587 = vpop.f32.mrf.mxu0
      %v588 = vadd.f32 0.0, %v587
      %v589 = vpop.f32.mrf.mxu0
      %v590 = vadd.f32 0.0, %v589
      %591 = vmatmul.bf16.gmra.mxu0 %v434
      %v592 = vpop.f32.mrf.mxu0
      %v593 = vadd.f32 0.0, %v592
      %v594 = vpop.f32.mrf.mxu0
      %v595 = vadd.f32 0.0, %v594
      %596 = vmatmul.bf16.gmra.mxu0 %v437
      %v597 = vpop.f32.mrf.mxu0
      %v598 = vadd.f32 0.0, %v597
      %v599 = vpop.f32.mrf.mxu0
      %v600 = vadd.f32 0.0, %v599
      %601 = vmatmul.bf16.gmra.mxu0 %v440
      %v602 = vpop.f32.mrf.mxu0
      %v603 = vadd.f32 0.0, %v602
      %v604 = vpop.f32.mrf.mxu0
      %v605 = vadd.f32 0.0, %v604
      %606 = vmatmul.bf16.gmra.mxu0 %v443
      %v607 = vpop.f32.mrf.mxu0
      %v608 = vadd.f32 0.0, %v607
      %v609 = vpop.f32.mrf.mxu0
      %v610 = vadd.f32 0.0, %v609
      %611 = vmatmul.bf16.gmra.mxu0 %v446
      %v612 = vpop.f32.mrf.mxu0
      %v613 = vadd.f32 0.0, %v612
      %v614 = vpop.f32.mrf.mxu0
      %v615 = vadd.f32 0.0, %v614
      %616 = vmatmul.bf16.gmra.mxu0 %v449
      %v617 = vpop.f32.mrf.mxu0
      %v618 = vadd.f32 0.0, %v617
      %v619 = vpop.f32.mrf.mxu0
      %v620 = vadd.f32 0.0, %v619
      %621 = vmatmul.bf16.gmra.mxu0 %v452
      %v622 = vpop.f32.mrf.mxu0
      %v623 = vadd.f32 0.0, %v622
      %v624 = vpop.f32.mrf.mxu0
      %v625 = vadd.f32 0.0, %v624
      %626 = vmatmul.bf16.gmra.mxu0 %v455
      %v627 = vpop.f32.mrf.mxu0
      %v628 = vadd.f32 0.0, %v627
      %v629 = vpop.f32.mrf.mxu0
      %v630 = vadd.f32 0.0, %v629
      %631 = vmatmul.bf16.gmra.mxu0 %v458
      %v632 = vpop.f32.mrf.mxu0
      %v633 = vadd.f32 0.0, %v632
      %v634 = vpop.f32.mrf.mxu0
      %v635 = vadd.f32 0.0, %v634
      %636 = vmatmul.bf16.gmra.mxu0 %v461
      %v637 = vpop.f32.mrf.mxu0
      %v638 = vadd.f32 0.0, %v637
      %v639 = vpop.f32.mrf.mxu0
      %v640 = vadd.f32 0.0, %v639
      %641 = vmatmul.bf16.gmra.mxu0 %v464
      %v642 = vpop.f32.mrf.mxu0
      %v643 = vadd.f32 0.0, %v642
      %v644 = vpop.f32.mrf.mxu0
      %v645 = vadd.f32 0.0, %v644
      %646 = vmatmul.bf16.gmra.mxu0 %v467
      %v647 = vpop.f32.mrf.mxu0
      %v648 = vadd.f32 0.0, %v647
      %v649 = vpop.f32.mrf.mxu0
      %v650 = vadd.f32 0.0, %v649
      %651 = vmatmul.bf16.gmra.mxu0 %v470
      %v652 = vpop.f32.mrf.mxu0
      %v653 = vadd.f32 0.0, %v652
      %v654 = vpop.f32.mrf.mxu0
      %v655 = vadd.f32 0.0, %v654
      %656 = vdwg.mxu0
      %v689 = vunpack.c.l.b16 %v265
      %v690 = vunpack.c.l.b16 %v266
      %v691 = vunpack.c.l.b16 %v267
      %v692 = vunpack.c.l.b16 %v268
      %v693 = vunpack.c.l.b16 %v269
      %v694 = vunpack.c.l.b16 %v270
      %v695 = vunpack.c.l.b16 %v271
      %v696 = vunpack.c.l.b16 %v272
      %v697 = vunpack.c.l.b16 %v273
      %v698 = vunpack.c.l.b16 %v274
      %v699 = vunpack.c.l.b16 %v275
      %v700 = vunpack.c.l.b16 %v276
      %v701 = vunpack.c.l.b16 %v277
      %v702 = vunpack.c.l.b16 %v278
      %v703 = vunpack.c.l.b16 %v279
      %v704 = vunpack.c.l.b16 %v280
      %v705 = vunpack.c.l.b16 %v281
      %v706 = vunpack.c.l.b16 %v282
      %v707 = vunpack.c.l.b16 %v283
      %v708 = vunpack.c.l.b16 %v284
      %v709 = vunpack.c.l.b16 %v285
      %v710 = vunpack.c.l.b16 %v286
      %v711 = vunpack.c.l.b16 %v287
      %v712 = vunpack.c.l.b16 %v288
      %v713 = vunpack.c.l.b16 %v289
      %v714 = vunpack.c.l.b16 %v290
      %v715 = vunpack.c.l.b16 %v291
      %v716 = vunpack.c.l.b16 %v292
      %v717 = vunpack.c.l.b16 %v293
      %v718 = vunpack.c.l.b16 %v294
      %v719 = vunpack.c.l.b16 %v295
      %v720 = vunpack.c.l.b16 %v296
      %v721 = vpack.c.b16 %v690, %v689
      %v722 = vpack.c.b16 %v692, %v691
      %v723 = vpack.c.b16 %v694, %v693
      %v724 = vpack.c.b16 %v696, %v695
      %v725 = vpack.c.b16 %v698, %v697
      %v726 = vpack.c.b16 %v700, %v699
      %v727 = vpack.c.b16 %v702, %v701
      %v728 = vpack.c.b16 %v704, %v703
      %v729 = vpack.c.b16 %v706, %v705
      %v730 = vpack.c.b16 %v708, %v707
      %v731 = vpack.c.b16 %v710, %v709
      %v732 = vpack.c.b16 %v712, %v711
      %v733 = vpack.c.b16 %v714, %v713
      %v734 = vpack.c.b16 %v716, %v715
      %v735 = vpack.c.b16 %v718, %v717
      %v736 = vpack.c.b16 %v720, %v719
      %v739 = vunpack.c.l.b16 %v330
      %v740 = vunpack.c.h.b16 %v330
      %v741 = vunpack.c.l.b16 %v331
      %v742 = vunpack.c.h.b16 %v331
      %v743 = vpack.c.b16 %v741, %v739
      %v744 = vpack.c.b16 %v742, %v740
      %v746 = vsel %vm423, %v721, 0
      %v749 = vsel %vm423, %v722, 0
      %v752 = vsel %vm423, %v723, 0
      %v755 = vsel %vm423, %v724, 0
      %v758 = vsel %vm423, %v725, 0
      %v761 = vsel %vm423, %v726, 0
      %v764 = vsel %vm423, %v727, 0
      %v767 = vsel %vm423, %v728, 0
      %v770 = vsel %vm423, %v729, 0
      %v773 = vsel %vm423, %v730, 0
      %v776 = vsel %vm423, %v731, 0
      %v779 = vsel %vm423, %v732, 0
      %v782 = vsel %vm423, %v733, 0
      %v785 = vsel %vm423, %v734, 0
      %v788 = vsel %vm423, %v735, 0
      %v791 = vsel %vm423, %v736, 0
      %v794 = vsel %vm472, %v743, 0
      %v797 = vsel %vm472, %v744, 0
      %799 = vmatpush.bf16.msra.mxu0 0
      %800 = vmatpush.bf16.msra.mxu0 0
      %801 = vmatpush.bf16.msra.mxu0 0
      %802 = vmatpush.bf16.msra.mxu0 0
      %803 = vmatpush.bf16.msra.mxu0 0
      %804 = vmatpush.bf16.msra.mxu0 0
      %805 = vmatpush.bf16.msra.mxu0 0
      %806 = vmatpush.bf16.msra.mxu0 %v794
      %807 = vmatmul.bf16.gmra.mxu0 %v746
      %v808 = vpop.f32.mrf.mxu0
      %v809 = vadd.f32 %v489, %v808
      %v810 = vpop.f32.mrf.mxu0
      %v811 = vadd.f32 %v491, %v810
      %812 = vmatmul.bf16.gmra.mxu0 %v749
      %v813 = vpop.f32.mrf.mxu0
      %v814 = vadd.f32 %v494, %v813
      %v815 = vpop.f32.mrf.mxu0
      %v816 = vadd.f32 %v496, %v815
      %817 = vmatmul.bf16.gmra.mxu0 %v752
      %v818 = vpop.f32.mrf.mxu0
      %v819 = vadd.f32 %v499, %v818
      %v820 = vpop.f32.mrf.mxu0
      %v821 = vadd.f32 %v501, %v820
      %822 = vmatmul.bf16.gmra.mxu0 %v755
      %v823 = vpop.f32.mrf.mxu0
      %v824 = vadd.f32 %v504, %v823
      %v825 = vpop.f32.mrf.mxu0
      %v826 = vadd.f32 %v506, %v825
      %827 = vmatmul.bf16.gmra.mxu0 %v758
      %v828 = vpop.f32.mrf.mxu0
      %v829 = vadd.f32 %v509, %v828
      %v830 = vpop.f32.mrf.mxu0
      %v831 = vadd.f32 %v511, %v830
      %832 = vmatmul.bf16.gmra.mxu0 %v761
      %v833 = vpop.f32.mrf.mxu0
      %v834 = vadd.f32 %v514, %v833
      %v835 = vpop.f32.mrf.mxu0
      %v836 = vadd.f32 %v516, %v835
      %837 = vmatmul.bf16.gmra.mxu0 %v764
      %v838 = vpop.f32.mrf.mxu0
      %v839 = vadd.f32 %v519, %v838
      %v840 = vpop.f32.mrf.mxu0
      %v841 = vadd.f32 %v521, %v840
      %842 = vmatmul.bf16.gmra.mxu0 %v767
      %v843 = vpop.f32.mrf.mxu0
      %v844 = vadd.f32 %v524, %v843
      %v845 = vpop.f32.mrf.mxu0
      %v846 = vadd.f32 %v526, %v845
      %847 = vmatmul.bf16.gmra.mxu0 %v770
      %v848 = vpop.f32.mrf.mxu0
      %v849 = vadd.f32 %v529, %v848
      %v850 = vpop.f32.mrf.mxu0
      %v851 = vadd.f32 %v531, %v850
      %852 = vmatmul.bf16.gmra.mxu0 %v773
      %v853 = vpop.f32.mrf.mxu0
      %v854 = vadd.f32 %v534, %v853
      %v855 = vpop.f32.mrf.mxu0
      %v856 = vadd.f32 %v536, %v855
      %857 = vmatmul.bf16.gmra.mxu0 %v776
      %v858 = vpop.f32.mrf.mxu0
      %v859 = vadd.f32 %v539, %v858
      %v860 = vpop.f32.mrf.mxu0
      %v861 = vadd.f32 %v541, %v860
      %862 = vmatmul.bf16.gmra.mxu0 %v779
      %v863 = vpop.f32.mrf.mxu0
      %v864 = vadd.f32 %v544, %v863
      %v865 = vpop.f32.mrf.mxu0
      %v866 = vadd.f32 %v546, %v865
      %867 = vmatmul.bf16.gmra.mxu0 %v782
      %v868 = vpop.f32.mrf.mxu0
      %v869 = vadd.f32 %v549, %v868
      %v870 = vpop.f32.mrf.mxu0
      %v871 = vadd.f32 %v551, %v870
      %872 = vmatmul.bf16.gmra.mxu0 %v785
      %v873 = vpop.f32.mrf.mxu0
      %v874 = vadd.f32 %v554, %v873
      %v875 = vpop.f32.mrf.mxu0
      %v876 = vadd.f32 %v556, %v875
      %877 = vmatmul.bf16.gmra.mxu0 %v788
      %v878 = vpop.f32.mrf.mxu0
      %v879 = vadd.f32 %v559, %v878
      %v880 = vpop.f32.mrf.mxu0
      %v881 = vadd.f32 %v561, %v880
      %882 = vmatmul.bf16.gmra.mxu0 %v791
      %v883 = vpop.f32.mrf.mxu0
      %v884 = vadd.f32 %v564, %v883
      %v885 = vpop.f32.mrf.mxu0
      %v886 = vadd.f32 %v566, %v885
      %887 = vdwg.mxu0
      %888 = vmatpush.bf16.msra.mxu0 0
      %889 = vmatpush.bf16.msra.mxu0 0
      %890 = vmatpush.bf16.msra.mxu0 0
      %891 = vmatpush.bf16.msra.mxu0 0
      %892 = vmatpush.bf16.msra.mxu0 0
      %893 = vmatpush.bf16.msra.mxu0 0
      %894 = vmatpush.bf16.msra.mxu0 0
      %895 = vmatpush.bf16.msra.mxu0 %v797
      %896 = vmatmul.bf16.gmra.mxu0 %v746
      %v897 = vpop.f32.mrf.mxu0
      %v898 = vadd.f32 %v578, %v897
      %v899 = vpop.f32.mrf.mxu0
      %v900 = vadd.f32 %v580, %v899
      %901 = vmatmul.bf16.gmra.mxu0 %v749
      %v902 = vpop.f32.mrf.mxu0
      %v903 = vadd.f32 %v583, %v902
      %v904 = vpop.f32.mrf.mxu0
      %v905 = vadd.f32 %v585, %v904
      %906 = vmatmul.bf16.gmra.mxu0 %v752
      %v907 = vpop.f32.mrf.mxu0
      %v908 = vadd.f32 %v588, %v907
      %v909 = vpop.f32.mrf.mxu0
      %v910 = vadd.f32 %v590, %v909
      %911 = vmatmul.bf16.gmra.mxu0 %v755
      %v912 = vpop.f32.mrf.mxu0
      %v913 = vadd.f32 %v593, %v912
      %v914 = vpop.f32.mrf.mxu0
      %v915 = vadd.f32 %v595, %v914
      %916 = vmatmul.bf16.gmra.mxu0 %v758
      %v917 = vpop.f32.mrf.mxu0
      %v918 = vadd.f32 %v598, %v917
      %v919 = vpop.f32.mrf.mxu0
      %v920 = vadd.f32 %v600, %v919
      %921 = vmatmul.bf16.gmra.mxu0 %v761
      %v922 = vpop.f32.mrf.mxu0
      %v923 = vadd.f32 %v603, %v922
      %v924 = vpop.f32.mrf.mxu0
      %v925 = vadd.f32 %v605, %v924
      %926 = vmatmul.bf16.gmra.mxu0 %v764
      %v927 = vpop.f32.mrf.mxu0
      %v928 = vadd.f32 %v608, %v927
      %v929 = vpop.f32.mrf.mxu0
      %v930 = vadd.f32 %v610, %v929
      %931 = vmatmul.bf16.gmra.mxu0 %v767
      %v932 = vpop.f32.mrf.mxu0
      %v933 = vadd.f32 %v613, %v932
      %v934 = vpop.f32.mrf.mxu0
      %v935 = vadd.f32 %v615, %v934
      %936 = vmatmul.bf16.gmra.mxu0 %v770
      %v937 = vpop.f32.mrf.mxu0
      %v938 = vadd.f32 %v618, %v937
      %v939 = vpop.f32.mrf.mxu0
      %v940 = vadd.f32 %v620, %v939
      %941 = vmatmul.bf16.gmra.mxu0 %v773
      %v942 = vpop.f32.mrf.mxu0
      %v943 = vadd.f32 %v623, %v942
      %v944 = vpop.f32.mrf.mxu0
      %v945 = vadd.f32 %v625, %v944
      %946 = vmatmul.bf16.gmra.mxu0 %v776
      %v947 = vpop.f32.mrf.mxu0
      %v948 = vadd.f32 %v628, %v947
      %v949 = vpop.f32.mrf.mxu0
      %v950 = vadd.f32 %v630, %v949
      %951 = vmatmul.bf16.gmra.mxu0 %v779
      %v952 = vpop.f32.mrf.mxu0
      %v953 = vadd.f32 %v633, %v952
      %v954 = vpop.f32.mrf.mxu0
      %v955 = vadd.f32 %v635, %v954
      %956 = vmatmul.bf16.gmra.mxu0 %v782
      %v957 = vpop.f32.mrf.mxu0
      %v958 = vadd.f32 %v638, %v957
      %v959 = vpop.f32.mrf.mxu0
      %v960 = vadd.f32 %v640, %v959
      %961 = vmatmul.bf16.gmra.mxu0 %v785
      %v962 = vpop.f32.mrf.mxu0
      %v963 = vadd.f32 %v643, %v962
      %v964 = vpop.f32.mrf.mxu0
      %v965 = vadd.f32 %v645, %v964
      %966 = vmatmul.bf16.gmra.mxu0 %v788
      %v967 = vpop.f32.mrf.mxu0
      %v968 = vadd.f32 %v648, %v967
      %v969 = vpop.f32.mrf.mxu0
      %v970 = vadd.f32 %v650, %v969
      %971 = vmatmul.bf16.gmra.mxu0 %v791
      %v972 = vpop.f32.mrf.mxu0
      %v973 = vadd.f32 %v653, %v972
      %v974 = vpop.f32.mrf.mxu0
      %v975 = vadd.f32 %v655, %v974
      %976 = vdwg.mxu0
      %v977 = vadd.f32 %v809, %v811
      %v978 = vadd.f32 %v977, %v814
      %v979 = vadd.f32 %v978, %v816
      %v980 = vadd.f32 %v979, %v819
      %v981 = vadd.f32 %v980, %v821
      %v982 = vadd.f32 %v981, %v824
      %v983 = vadd.f32 %v982, %v826
      %v984 = vadd.f32 %v983, %v829
      %v985 = vadd.f32 %v984, %v831
      %v986 = vadd.f32 %v985, %v834
      %v987 = vadd.f32 %v986, %v836
      %v988 = vadd.f32 %v987, %v839
      %v989 = vadd.f32 %v988, %v841
      %v990 = vadd.f32 %v989, %v844
      %v991 = vadd.f32 %v990, %v846
      %v992 = vadd.f32 %v991, %v849
      %v993 = vadd.f32 %v992, %v851
      %v994 = vadd.f32 %v993, %v854
      %v995 = vadd.f32 %v994, %v856
      %v996 = vadd.f32 %v995, %v859
      %v997 = vadd.f32 %v996, %v861
      %v998 = vadd.f32 %v997, %v864
      %v999 = vadd.f32 %v998, %v866
      %v1000 = vadd.f32 %v999, %v869
      %v1001 = vadd.f32 %v1000, %v871
      %v1002 = vadd.f32 %v1001, %v874
      %v1003 = vadd.f32 %v1002, %v876
      %v1004 = vadd.f32 %v1003, %v879
      %v1005 = vadd.f32 %v1004, %v881
      %v1006 = vadd.f32 %v1005, %v884
      %v1007 = vadd.f32 %v1006, %v886
      %v1008 = vrot.slane %v1007, 4
      %v1009 = vadd.f32 %v1007, %v1008
      %v1010 = vrot.slane %v1009, 2
      %v1011 = vadd.f32 %v1009, %v1010
      %v1012 = vrot.slane %v1011, 1
      %v1013 = vadd.f32 %v1011, %v1012
      %v1014 = vadd.f32 %v898, %v900
      %v1015 = vadd.f32 %v1014, %v903
      %v1016 = vadd.f32 %v1015, %v905
      %v1017 = vadd.f32 %v1016, %v908
      %v1018 = vadd.f32 %v1017, %v910
      %v1019 = vadd.f32 %v1018, %v913
      %v1020 = vadd.f32 %v1019, %v915
      %v1021 = vadd.f32 %v1020, %v918
      %v1022 = vadd.f32 %v1021, %v920
      %v1023 = vadd.f32 %v1022, %v923
      %v1024 = vadd.f32 %v1023, %v925
      %v1025 = vadd.f32 %v1024, %v928
      %v1026 = vadd.f32 %v1025, %v930
      %v1027 = vadd.f32 %v1026, %v933
      %v1028 = vadd.f32 %v1027, %v935
      %v1029 = vadd.f32 %v1028, %v938
      %v1030 = vadd.f32 %v1029, %v940
      %v1031 = vadd.f32 %v1030, %v943
      %v1032 = vadd.f32 %v1031, %v945
      %v1033 = vadd.f32 %v1032, %v948
      %v1034 = vadd.f32 %v1033, %v950
      %v1035 = vadd.f32 %v1034, %v953
      %v1036 = vadd.f32 %v1035, %v955
      %v1037 = vadd.f32 %v1036, %v958
      %v1038 = vadd.f32 %v1037, %v960
      %v1039 = vadd.f32 %v1038, %v963
      %v1040 = vadd.f32 %v1039, %v965
      %v1041 = vadd.f32 %v1040, %v968
      %v1042 = vadd.f32 %v1041, %v970
      %v1043 = vadd.f32 %v1042, %v973
      %v1044 = vadd.f32 %v1043, %v975
      %v1045 = vrot.slane %v1044, 4
      %v1046 = vadd.f32 %v1044, %v1045
      %v1047 = vrot.slane %v1046, 2
      %v1048 = vadd.f32 %v1046, %v1047
      %v1049 = vrot.slane %v1048, 1
      %v1050 = vadd.f32 %v1048, %v1049
      %v1051 = vadd.f32 %v1013, 0.0
      %v1052 = vadd.f32 %v1050, 0.0
      %v1053 = vmul.f32 %v809, %v809
      %v1054 = vmul.f32 %v898, %v898
      %v1055 = vmul.f32 %v811, %v811
      %v1056 = vmul.f32 %v900, %v900
      %v1057 = vmul.f32 %v814, %v814
      %v1058 = vmul.f32 %v903, %v903
      %v1059 = vmul.f32 %v816, %v816
      %v1060 = vmul.f32 %v905, %v905
      %v1061 = vmul.f32 %v819, %v819
      %v1062 = vmul.f32 %v908, %v908
      %v1063 = vmul.f32 %v821, %v821
      %v1064 = vmul.f32 %v910, %v910
      %v1065 = vmul.f32 %v824, %v824
      %v1066 = vmul.f32 %v913, %v913
      %v1067 = vmul.f32 %v826, %v826
      %v1068 = vmul.f32 %v915, %v915
      %v1069 = vmul.f32 %v829, %v829
      %v1070 = vmul.f32 %v918, %v918
      %v1071 = vmul.f32 %v831, %v831
      %v1072 = vmul.f32 %v920, %v920
      %v1073 = vmul.f32 %v834, %v834
      %v1074 = vmul.f32 %v923, %v923
      %v1075 = vmul.f32 %v836, %v836
      %v1076 = vmul.f32 %v925, %v925
      %v1077 = vmul.f32 %v839, %v839
      %v1078 = vmul.f32 %v928, %v928
      %v1079 = vmul.f32 %v841, %v841
      %v1080 = vmul.f32 %v930, %v930
      %v1081 = vmul.f32 %v844, %v844
      %v1082 = vmul.f32 %v933, %v933
      %v1083 = vmul.f32 %v846, %v846
      %v1084 = vmul.f32 %v935, %v935
      %v1085 = vmul.f32 %v849, %v849
      %v1086 = vmul.f32 %v938, %v938
      %v1087 = vmul.f32 %v851, %v851
      %v1088 = vmul.f32 %v940, %v940
      %v1089 = vmul.f32 %v854, %v854
      %v1090 = vmul.f32 %v943, %v943
      %v1091 = vmul.f32 %v856, %v856
      %v1092 = vmul.f32 %v945, %v945
      %v1093 = vmul.f32 %v859, %v859
      %v1094 = vmul.f32 %v948, %v948
      %v1095 = vmul.f32 %v861, %v861
      %v1096 = vmul.f32 %v950, %v950
      %v1097 = vmul.f32 %v864, %v864
      %v1098 = vmul.f32 %v953, %v953
      %v1099 = vmul.f32 %v866, %v866
      %v1100 = vmul.f32 %v955, %v955
      %v1101 = vmul.f32 %v869, %v869
      %v1102 = vmul.f32 %v958, %v958
      %v1103 = vmul.f32 %v871, %v871
      %v1104 = vmul.f32 %v960, %v960
      %v1105 = vmul.f32 %v874, %v874
      %v1106 = vmul.f32 %v963, %v963
      %v1107 = vmul.f32 %v876, %v876
      %v1108 = vmul.f32 %v965, %v965
      %v1109 = vmul.f32 %v879, %v879
      %v1110 = vmul.f32 %v968, %v968
      %v1111 = vmul.f32 %v881, %v881
      %v1112 = vmul.f32 %v970, %v970
      %v1113 = vmul.f32 %v884, %v884
      %v1114 = vmul.f32 %v973, %v973
      %v1115 = vmul.f32 %v886, %v886
      %v1116 = vmul.f32 %v975, %v975
      %v1117 = vadd.f32 %v1053, %v1055
      %v1118 = vadd.f32 %v1117, %v1057
      %v1119 = vadd.f32 %v1118, %v1059
      %v1120 = vadd.f32 %v1119, %v1061
      %v1121 = vadd.f32 %v1120, %v1063
      %v1122 = vadd.f32 %v1121, %v1065
      %v1123 = vadd.f32 %v1122, %v1067
      %v1124 = vadd.f32 %v1123, %v1069
      %v1125 = vadd.f32 %v1124, %v1071
      %v1126 = vadd.f32 %v1125, %v1073
      %v1127 = vadd.f32 %v1126, %v1075
      %v1128 = vadd.f32 %v1127, %v1077
      %v1129 = vadd.f32 %v1128, %v1079
      %v1130 = vadd.f32 %v1129, %v1081
      %v1131 = vadd.f32 %v1130, %v1083
      %v1132 = vadd.f32 %v1131, %v1085
      %v1133 = vadd.f32 %v1132, %v1087
      %v1134 = vadd.f32 %v1133, %v1089
      %v1135 = vadd.f32 %v1134, %v1091
      %v1136 = vadd.f32 %v1135, %v1093
      %v1137 = vadd.f32 %v1136, %v1095
      %v1138 = vadd.f32 %v1137, %v1097
      %v1139 = vadd.f32 %v1138, %v1099
      %v1140 = vadd.f32 %v1139, %v1101
      %v1141 = vadd.f32 %v1140, %v1103
      %v1142 = vadd.f32 %v1141, %v1105
      %v1143 = vadd.f32 %v1142, %v1107
      %v1144 = vadd.f32 %v1143, %v1109
      %v1145 = vadd.f32 %v1144, %v1111
      %v1146 = vadd.f32 %v1145, %v1113
      %v1147 = vadd.f32 %v1146, %v1115
      %v1148 = vrot.slane %v1147, 4
      %v1149 = vadd.f32 %v1147, %v1148
      %v1150 = vrot.slane %v1149, 2
      %v1151 = vadd.f32 %v1149, %v1150
      %v1152 = vrot.slane %v1151, 1
      %v1153 = vadd.f32 %v1151, %v1152
      %v1154 = vadd.f32 %v1054, %v1056
      %v1155 = vadd.f32 %v1154, %v1058
      %v1156 = vadd.f32 %v1155, %v1060
      %v1157 = vadd.f32 %v1156, %v1062
      %v1158 = vadd.f32 %v1157, %v1064
      %v1159 = vadd.f32 %v1158, %v1066
      %v1160 = vadd.f32 %v1159, %v1068
      %v1161 = vadd.f32 %v1160, %v1070
      %v1162 = vadd.f32 %v1161, %v1072
      %v1163 = vadd.f32 %v1162, %v1074
      %v1164 = vadd.f32 %v1163, %v1076
      %v1165 = vadd.f32 %v1164, %v1078
      %v1166 = vadd.f32 %v1165, %v1080
      %v1167 = vadd.f32 %v1166, %v1082
      %v1168 = vadd.f32 %v1167, %v1084
      %v1169 = vadd.f32 %v1168, %v1086
      %v1170 = vadd.f32 %v1169, %v1088
      %v1171 = vadd.f32 %v1170, %v1090
      %v1172 = vadd.f32 %v1171, %v1092
      %v1173 = vadd.f32 %v1172, %v1094
      %v1174 = vadd.f32 %v1173, %v1096
      %v1175 = vadd.f32 %v1174, %v1098
      %v1176 = vadd.f32 %v1175, %v1100
      %v1177 = vadd.f32 %v1176, %v1102
      %v1178 = vadd.f32 %v1177, %v1104
      %v1179 = vadd.f32 %v1178, %v1106
      %v1180 = vadd.f32 %v1179, %v1108
      %v1181 = vadd.f32 %v1180, %v1110
      %v1182 = vadd.f32 %v1181, %v1112
      %v1183 = vadd.f32 %v1182, %v1114
      %v1184 = vadd.f32 %v1183, %v1116
      %v1185 = vrot.slane %v1184, 4
      %v1186 = vadd.f32 %v1184, %v1185
      %v1187 = vrot.slane %v1186, 2
      %v1188 = vadd.f32 %v1186, %v1187
      %v1189 = vrot.slane %v1188, 1
      %v1190 = vadd.f32 %v1188, %v1189
      %v1191 = vadd.f32 %v1153, 0.0
      %v1192 = vadd.f32 %v1190, 0.0
      %v1193 = vpack.c.bf16 %v898, %v809
      %v1194 = vpack.c.bf16 %v900, %v811
      %v1195 = vpack.c.bf16 %v903, %v814
      %v1196 = vpack.c.bf16 %v905, %v816
      %v1197 = vpack.c.bf16 %v908, %v819
      %v1198 = vpack.c.bf16 %v910, %v821
      %v1199 = vpack.c.bf16 %v913, %v824
      %v1200 = vpack.c.bf16 %v915, %v826
      %v1201 = vpack.c.bf16 %v918, %v829
      %v1202 = vpack.c.bf16 %v920, %v831
      %v1203 = vpack.c.bf16 %v923, %v834
      %v1204 = vpack.c.bf16 %v925, %v836
      %v1205 = vpack.c.bf16 %v928, %v839
      %v1206 = vpack.c.bf16 %v930, %v841
      %v1207 = vpack.c.bf16 %v933, %v844
      %v1208 = vpack.c.bf16 %v935, %v846
      %v1209 = vpack.c.bf16 %v938, %v849
      %v1210 = vpack.c.bf16 %v940, %v851
      %v1211 = vpack.c.bf16 %v943, %v854
      %v1212 = vpack.c.bf16 %v945, %v856
      %v1213 = vpack.c.bf16 %v948, %v859
      %v1214 = vpack.c.bf16 %v950, %v861
      %v1215 = vpack.c.bf16 %v953, %v864
      %v1216 = vpack.c.bf16 %v955, %v866
      %v1217 = vpack.c.bf16 %v958, %v869
      %v1218 = vpack.c.bf16 %v960, %v871
      %v1219 = vpack.c.bf16 %v963, %v874
      %v1220 = vpack.c.bf16 %v965, %v876
      %v1221 = vpack.c.bf16 %v968, %v879
      %v1222 = vpack.c.bf16 %v970, %v881
      %v1223 = vpack.c.bf16 %v973, %v884
      %v1224 = vpack.c.bf16 %v975, %v886
      %1225 = vst [vmem:[%s246] sm:$0xff] %v1193
      %1226 = vst [vmem:[%s246 + $0x8] sm:$0xff] %v1194
      %1227 = vst [vmem:[%s246 + $0x20] sm:$0xff] %v1195
      %1228 = vst [vmem:[%s246 + $0x28] sm:$0xff] %v1196
      %1229 = vst [vmem:[%s246 + $0x40] sm:$0xff] %v1197
      %1230 = vst [vmem:[%s246 + $0x48] sm:$0xff] %v1198
      %1231 = vst [vmem:[%s246 + $0x60] sm:$0xff] %v1199
      %1232 = vst [vmem:[%s246 + $0x68] sm:$0xff] %v1200
      %1233 = vst [vmem:[%s246 + $0x80] sm:$0xff] %v1201
      %1234 = vst [vmem:[%s246 + $0x88] sm:$0xff] %v1202
      %1235 = vst [vmem:[%s246 + $0xa0] sm:$0xff] %v1203
      %1236 = vst [vmem:[%s246 + $0xa8] sm:$0xff] %v1204
      %1237 = vst [vmem:[%s246 + $0xc0] sm:$0xff] %v1205
      %1238 = vst [vmem:[%s246 + $0xc8] sm:$0xff] %v1206
      %1239 = vst [vmem:[%s246 + $0xe0] sm:$0xff] %v1207
      %1240 = vst [vmem:[%s246 + $0xe8] sm:$0xff] %v1208
      %1241 = vst [vmem:[%s246 + $0x100] sm:$0xff] %v1209
      %1242 = vst [vmem:[%s246 + $0x108] sm:$0xff] %v1210
      %1243 = vst [vmem:[%s246 + $0x120] sm:$0xff] %v1211
      %1244 = vst [vmem:[%s246 + $0x128] sm:$0xff] %v1212
      %1245 = vst [vmem:[%s246 + $0x140] sm:$0xff] %v1213
      %1246 = vst [vmem:[%s246 + $0x148] sm:$0xff] %v1214
      %1247 = vst [vmem:[%s246 + $0x160] sm:$0xff] %v1215
      %1248 = vst [vmem:[%s246 + $0x168] sm:$0xff] %v1216
      %1249 = vst [vmem:[%s246 + $0x180] sm:$0xff] %v1217
      %1250 = vst [vmem:[%s246 + $0x188] sm:$0xff] %v1218
      %1251 = vst [vmem:[%s246 + $0x1a0] sm:$0xff] %v1219
      %1252 = vst [vmem:[%s246 + $0x1a8] sm:$0xff] %v1220
      %1253 = vst [vmem:[%s246 + $0x1c0] sm:$0xff] %v1221
      %1254 = vst [vmem:[%s246 + $0x1c8] sm:$0xff] %v1222
      %1255 = vst [vmem:[%s246 + $0x1e0] sm:$0xff] %v1223
      %1256 = vst [vmem:[%s246 + $0x1e8] sm:$0xff] %v1224
      %v1257 = vld [vmem:[%s297] sm:$0xf]
      %v1258 = vld [vmem:[%s297 + $0x4] sm:$0xf]
      %v1259 = vld [vmem:[%s297 + $0x8] sm:$0xf]
      %v1260 = vld [vmem:[%s297 + $0xc] sm:$0xf]
      %v1261 = vld [vmem:[%s297 + $0x10] sm:$0xf]
      %v1262 = vld [vmem:[%s297 + $0x14] sm:$0xf]
      %v1263 = vld [vmem:[%s297 + $0x18] sm:$0xf]
      %v1264 = vld [vmem:[%s297 + $0x1c] sm:$0xf]
      %v1265 = vld [vmem:[%s297 + $0x20] sm:$0xf]
      %v1266 = vld [vmem:[%s297 + $0x24] sm:$0xf]
      %v1267 = vld [vmem:[%s297 + $0x28] sm:$0xf]
      %v1268 = vld [vmem:[%s297 + $0x2c] sm:$0xf]
      %v1269 = vld [vmem:[%s297 + $0x30] sm:$0xf]
      %v1270 = vld [vmem:[%s297 + $0x34] sm:$0xf]
      %v1271 = vld [vmem:[%s297 + $0x38] sm:$0xf]
      %v1272 = vld [vmem:[%s297 + $0x3c] sm:$0xf]
      %v1273 = vld [vmem:[%s297 + $0x40] sm:$0xf]
      %v1274 = vld [vmem:[%s297 + $0x44] sm:$0xf]
      %v1275 = vld [vmem:[%s297 + $0x48] sm:$0xf]
      %v1276 = vld [vmem:[%s297 + $0x4c] sm:$0xf]
      %v1277 = vld [vmem:[%s297 + $0x50] sm:$0xf]
      %v1278 = vld [vmem:[%s297 + $0x54] sm:$0xf]
      %v1279 = vld [vmem:[%s297 + $0x58] sm:$0xf]
      %v1280 = vld [vmem:[%s297 + $0x5c] sm:$0xf]
      %v1281 = vld [vmem:[%s297 + $0x60] sm:$0xf]
      %v1282 = vld [vmem:[%s297 + $0x64] sm:$0xf]
      %v1283 = vld [vmem:[%s297 + $0x68] sm:$0xf]
      %v1284 = vld [vmem:[%s297 + $0x6c] sm:$0xf]
      %v1285 = vld [vmem:[%s297 + $0x70] sm:$0xf]
      %v1286 = vld [vmem:[%s297 + $0x74] sm:$0xf]
      %v1287 = vld [vmem:[%s297 + $0x78] sm:$0xf]
      %v1288 = vld [vmem:[%s297 + $0x7c] sm:$0xf]
      %s1289 = scalar_lea.vmem %s236, 16
      %v1290 = vld [vmem:[%s1289] sm:$0xf]
      %v1291 = vld [vmem:[%s1289 + $0x4] sm:$0xf]
      %v1292 = vld [vmem:[%s1289 + $0x8] sm:$0xf]
      %v1293 = vld [vmem:[%s1289 + $0xc] sm:$0xf]
      %v1294 = vld [vmem:[%s1289 + $0x10] sm:$0xf]
      %v1295 = vld [vmem:[%s1289 + $0x14] sm:$0xf]
      %v1296 = vld [vmem:[%s1289 + $0x18] sm:$0xf]
      %v1297 = vld [vmem:[%s1289 + $0x1c] sm:$0xf]
      %v1298 = vld [vmem:[%s1289 + $0x20] sm:$0xf]
      %v1299 = vld [vmem:[%s1289 + $0x24] sm:$0xf]
      %v1300 = vld [vmem:[%s1289 + $0x28] sm:$0xf]
      %v1301 = vld [vmem:[%s1289 + $0x2c] sm:$0xf]
      %v1302 = vld [vmem:[%s1289 + $0x30] sm:$0xf]
      %v1303 = vld [vmem:[%s1289 + $0x34] sm:$0xf]
      %v1304 = vld [vmem:[%s1289 + $0x38] sm:$0xf]
      %v1305 = vld [vmem:[%s1289 + $0x3c] sm:$0xf]
      %v1306 = vld [vmem:[%s1289 + $0x40] sm:$0xf]
      %v1307 = vld [vmem:[%s1289 + $0x44] sm:$0xf]
      %v1308 = vld [vmem:[%s1289 + $0x48] sm:$0xf]
      %v1309 = vld [vmem:[%s1289 + $0x4c] sm:$0xf]
      %v1310 = vld [vmem:[%s1289 + $0x50] sm:$0xf]
      %v1311 = vld [vmem:[%s1289 + $0x54] sm:$0xf]
      %v1312 = vld [vmem:[%s1289 + $0x58] sm:$0xf]
      %v1313 = vld [vmem:[%s1289 + $0x5c] sm:$0xf]
      %v1314 = vld [vmem:[%s1289 + $0x60] sm:$0xf]
      %v1315 = vld [vmem:[%s1289 + $0x64] sm:$0xf]
      %v1316 = vld [vmem:[%s1289 + $0x68] sm:$0xf]
      %v1317 = vld [vmem:[%s1289 + $0x6c] sm:$0xf]
      %v1318 = vld [vmem:[%s1289 + $0x70] sm:$0xf]
      %v1319 = vld [vmem:[%s1289 + $0x74] sm:$0xf]
      %v1320 = vld [vmem:[%s1289 + $0x78] sm:$0xf]
      %v1321 = vld [vmem:[%s1289 + $0x7c] sm:$0xf]
      %s1322 = scalar_lea.vmem %s1, 32
      %v1323 = vld [vmem:[%s1322] sm:$0xff]
      %v1324 = vld [vmem:[%s1322 + $0x8] sm:$0x33]
      %s1325 = scalar_lea.vmem %s1, 48
      %v1326 = vld [vmem:[%s1325] sm:$0xff]
      %v1327 = vld [vmem:[%s1325 + $0x8] sm:$0x33]
      %v1360 = vunpack.c.l.b16 %v1290
      %v1361 = vunpack.c.l.b16 %v1291
      %v1362 = vunpack.c.l.b16 %v1292
      %v1363 = vunpack.c.l.b16 %v1293
      %v1364 = vunpack.c.l.b16 %v1294
      %v1365 = vunpack.c.l.b16 %v1295
      %v1366 = vunpack.c.l.b16 %v1296
      %v1367 = vunpack.c.l.b16 %v1297
      %v1368 = vunpack.c.l.b16 %v1298
      %v1369 = vunpack.c.l.b16 %v1299
      %v1370 = vunpack.c.l.b16 %v1300
      %v1371 = vunpack.c.l.b16 %v1301
      %v1372 = vunpack.c.l.b16 %v1302
      %v1373 = vunpack.c.l.b16 %v1303
      %v1374 = vunpack.c.l.b16 %v1304
      %v1375 = vunpack.c.l.b16 %v1305
      %v1376 = vunpack.c.l.b16 %v1306
      %v1377 = vunpack.c.l.b16 %v1307
      %v1378 = vunpack.c.l.b16 %v1308
      %v1379 = vunpack.c.l.b16 %v1309
      %v1380 = vunpack.c.l.b16 %v1310
      %v1381 = vunpack.c.l.b16 %v1311
      %v1382 = vunpack.c.l.b16 %v1312
      %v1383 = vunpack.c.l.b16 %v1313
      %v1384 = vunpack.c.l.b16 %v1314
      %v1385 = vunpack.c.l.b16 %v1315
      %v1386 = vunpack.c.l.b16 %v1316
      %v1387 = vunpack.c.l.b16 %v1317
      %v1388 = vunpack.c.l.b16 %v1318
      %v1389 = vunpack.c.l.b16 %v1319
      %v1390 = vunpack.c.l.b16 %v1320
      %v1391 = vunpack.c.l.b16 %v1321
      %v1392 = vpack.c.b16 %v1361, %v1360
      %v1393 = vpack.c.b16 %v1363, %v1362
      %v1394 = vpack.c.b16 %v1365, %v1364
      %v1395 = vpack.c.b16 %v1367, %v1366
      %v1396 = vpack.c.b16 %v1369, %v1368
      %v1397 = vpack.c.b16 %v1371, %v1370
      %v1398 = vpack.c.b16 %v1373, %v1372
      %v1399 = vpack.c.b16 %v1375, %v1374
      %v1400 = vpack.c.b16 %v1377, %v1376
      %v1401 = vpack.c.b16 %v1379, %v1378
      %v1402 = vpack.c.b16 %v1381, %v1380
      %v1403 = vpack.c.b16 %v1383, %v1382
      %v1404 = vpack.c.b16 %v1385, %v1384
      %v1405 = vpack.c.b16 %v1387, %v1386
      %v1406 = vpack.c.b16 %v1389, %v1388
      %v1407 = vpack.c.b16 %v1391, %v1390
      %v1410 = vunpack.c.l.b16 %v1326
      %v1411 = vunpack.c.h.b16 %v1326
      %v1412 = vunpack.c.l.b16 %v1327
      %v1413 = vunpack.c.h.b16 %v1327
      %v1414 = vpack.c.b16 %v1412, %v1410
      %v1415 = vpack.c.b16 %v1413, %v1411
      %v1417 = vsel %vm423, %v1392, 0
      %v1420 = vsel %vm423, %v1393, 0
      %v1423 = vsel %vm423, %v1394, 0
      %v1426 = vsel %vm423, %v1395, 0
      %v1429 = vsel %vm423, %v1396, 0
      %v1432 = vsel %vm423, %v1397, 0
      %v1435 = vsel %vm423, %v1398, 0
      %v1438 = vsel %vm423, %v1399, 0
      %v1441 = vsel %vm423, %v1400, 0
      %v1444 = vsel %vm423, %v1401, 0
      %v1447 = vsel %vm423, %v1402, 0
      %v1450 = vsel %vm423, %v1403, 0
      %v1453 = vsel %vm423, %v1404, 0
      %v1456 = vsel %vm423, %v1405, 0
      %v1459 = vsel %vm423, %v1406, 0
      %v1462 = vsel %vm423, %v1407, 0
      %v1465 = vsel %vm472, %v1414, 0
      %v1468 = vsel %vm472, %v1415, 0
      %1470 = vmatpush.bf16.msra.mxu0 0
      %1471 = vmatpush.bf16.msra.mxu0 0
      %1472 = vmatpush.bf16.msra.mxu0 0
      %1473 = vmatpush.bf16.msra.mxu0 0
      %1474 = vmatpush.bf16.msra.mxu0 0
      %1475 = vmatpush.bf16.msra.mxu0 0
      %1476 = vmatpush.bf16.msra.mxu0 0
      %1477 = vmatpush.bf16.msra.mxu0 %v1465
      %1478 = vmatmul.bf16.gmra.mxu0 %v1417
      %v1479 = vpop.f32.mrf.mxu0
      %v1480 = vadd.f32 0.0, %v1479
      %v1481 = vpop.f32.mrf.mxu0
      %v1482 = vadd.f32 0.0, %v1481
      %1483 = vmatmul.bf16.gmra.mxu0 %v1420
      %v1484 = vpop.f32.mrf.mxu0
      %v1485 = vadd.f32 0.0, %v1484
      %v1486 = vpop.f32.mrf.mxu0
      %v1487 = vadd.f32 0.0, %v1486
      %1488 = vmatmul.bf16.gmra.mxu0 %v1423
      %v1489 = vpop.f32.mrf.mxu0
      %v1490 = vadd.f32 0.0, %v1489
      %v1491 = vpop.f32.mrf.mxu0
      %v1492 = vadd.f32 0.0, %v1491
      %1493 = vmatmul.bf16.gmra.mxu0 %v1426
      %v1494 = vpop.f32.mrf.mxu0
      %v1495 = vadd.f32 0.0, %v1494
      %v1496 = vpop.f32.mrf.mxu0
      %v1497 = vadd.f32 0.0, %v1496
      %1498 = vmatmul.bf16.gmra.mxu0 %v1429
      %v1499 = vpop.f32.mrf.mxu0
      %v1500 = vadd.f32 0.0, %v1499
      %v1501 = vpop.f32.mrf.mxu0
      %v1502 = vadd.f32 0.0, %v1501
      %1503 = vmatmul.bf16.gmra.mxu0 %v1432
      %v1504 = vpop.f32.mrf.mxu0
      %v1505 = vadd.f32 0.0, %v1504
      %v1506 = vpop.f32.mrf.mxu0
      %v1507 = vadd.f32 0.0, %v1506
      %1508 = vmatmul.bf16.gmra.mxu0 %v1435
      %v1509 = vpop.f32.mrf.mxu0
      %v1510 = vadd.f32 0.0, %v1509
      %v1511 = vpop.f32.mrf.mxu0
      %v1512 = vadd.f32 0.0, %v1511
      %1513 = vmatmul.bf16.gmra.mxu0 %v1438
      %v1514 = vpop.f32.mrf.mxu0
      %v1515 = vadd.f32 0.0, %v1514
      %v1516 = vpop.f32.mrf.mxu0
      %v1517 = vadd.f32 0.0, %v1516
      %1518 = vmatmul.bf16.gmra.mxu0 %v1441
      %v1519 = vpop.f32.mrf.mxu0
      %v1520 = vadd.f32 0.0, %v1519
      %v1521 = vpop.f32.mrf.mxu0
      %v1522 = vadd.f32 0.0, %v1521
      %1523 = vmatmul.bf16.gmra.mxu0 %v1444
      %v1524 = vpop.f32.mrf.mxu0
      %v1525 = vadd.f32 0.0, %v1524
      %v1526 = vpop.f32.mrf.mxu0
      %v1527 = vadd.f32 0.0, %v1526
      %1528 = vmatmul.bf16.gmra.mxu0 %v1447
      %v1529 = vpop.f32.mrf.mxu0
      %v1530 = vadd.f32 0.0, %v1529
      %v1531 = vpop.f32.mrf.mxu0
      %v1532 = vadd.f32 0.0, %v1531
      %1533 = vmatmul.bf16.gmra.mxu0 %v1450
      %v1534 = vpop.f32.mrf.mxu0
      %v1535 = vadd.f32 0.0, %v1534
      %v1536 = vpop.f32.mrf.mxu0
      %v1537 = vadd.f32 0.0, %v1536
      %1538 = vmatmul.bf16.gmra.mxu0 %v1453
      %v1539 = vpop.f32.mrf.mxu0
      %v1540 = vadd.f32 0.0, %v1539
      %v1541 = vpop.f32.mrf.mxu0
      %v1542 = vadd.f32 0.0, %v1541
      %1543 = vmatmul.bf16.gmra.mxu0 %v1456
      %v1544 = vpop.f32.mrf.mxu0
      %v1545 = vadd.f32 0.0, %v1544
      %v1546 = vpop.f32.mrf.mxu0
      %v1547 = vadd.f32 0.0, %v1546
      %1548 = vmatmul.bf16.gmra.mxu0 %v1459
      %v1549 = vpop.f32.mrf.mxu0
      %v1550 = vadd.f32 0.0, %v1549
      %v1551 = vpop.f32.mrf.mxu0
      %v1552 = vadd.f32 0.0, %v1551
      %1553 = vmatmul.bf16.gmra.mxu0 %v1462
      %v1554 = vpop.f32.mrf.mxu0
      %v1555 = vadd.f32 0.0, %v1554
      %v1556 = vpop.f32.mrf.mxu0
      %v1557 = vadd.f32 0.0, %v1556
      %1558 = vdwg.mxu0
      %1559 = vmatpush.bf16.msra.mxu0 0
      %1560 = vmatpush.bf16.msra.mxu0 0
      %1561 = vmatpush.bf16.msra.mxu0 0
      %1562 = vmatpush.bf16.msra.mxu0 0
      %1563 = vmatpush.bf16.msra.mxu0 0
      %1564 = vmatpush.bf16.msra.mxu0 0
      %1565 = vmatpush.bf16.msra.mxu0 0
      %1566 = vmatpush.bf16.msra.mxu0 %v1468
      %1567 = vmatmul.bf16.gmra.mxu0 %v1417
      %v1568 = vpop.f32.mrf.mxu0
      %v1569 = vadd.f32 0.0, %v1568
      %v1570 = vpop.f32.mrf.mxu0
      %v1571 = vadd.f32 0.0, %v1570
      %1572 = vmatmul.bf16.gmra.mxu0 %v1420
      %v1573 = vpop.f32.mrf.mxu0
      %v1574 = vadd.f32 0.0, %v1573
      %v1575 = vpop.f32.mrf.mxu0
      %v1576 = vadd.f32 0.0, %v1575
      %1577 = vmatmul.bf16.gmra.mxu0 %v1423
      %v1578 = vpop.f32.mrf.mxu0
      %v1579 = vadd.f32 0.0, %v1578
      %v1580 = vpop.f32.mrf.mxu0
      %v1581 = vadd.f32 0.0, %v1580
      %1582 = vmatmul.bf16.gmra.mxu0 %v1426
      %v1583 = vpop.f32.mrf.mxu0
      %v1584 = vadd.f32 0.0, %v1583
      %v1585 = vpop.f32.mrf.mxu0
      %v1586 = vadd.f32 0.0, %v1585
      %1587 = vmatmul.bf16.gmra.mxu0 %v1429
      %v1588 = vpop.f32.mrf.mxu0
      %v1589 = vadd.f32 0.0, %v1588
      %v1590 = vpop.f32.mrf.mxu0
      %v1591 = vadd.f32 0.0, %v1590
      %1592 = vmatmul.bf16.gmra.mxu0 %v1432
      %v1593 = vpop.f32.mrf.mxu0
      %v1594 = vadd.f32 0.0, %v1593
      %v1595 = vpop.f32.mrf.mxu0
      %v1596 = vadd.f32 0.0, %v1595
      %1597 = vmatmul.bf16.gmra.mxu0 %v1435
      %v1598 = vpop.f32.mrf.mxu0
      %v1599 = vadd.f32 0.0, %v1598
      %v1600 = vpop.f32.mrf.mxu0
      %v1601 = vadd.f32 0.0, %v1600
      %1602 = vmatmul.bf16.gmra.mxu0 %v1438
      %v1603 = vpop.f32.mrf.mxu0
      %v1604 = vadd.f32 0.0, %v1603
      %v1605 = vpop.f32.mrf.mxu0
      %v1606 = vadd.f32 0.0, %v1605
      %1607 = vmatmul.bf16.gmra.mxu0 %v1441
      %v1608 = vpop.f32.mrf.mxu0
      %v1609 = vadd.f32 0.0, %v1608
      %v1610 = vpop.f32.mrf.mxu0
      %v1611 = vadd.f32 0.0, %v1610
      %1612 = vmatmul.bf16.gmra.mxu0 %v1444
      %v1613 = vpop.f32.mrf.mxu0
      %v1614 = vadd.f32 0.0, %v1613
      %v1615 = vpop.f32.mrf.mxu0
      %v1616 = vadd.f32 0.0, %v1615
      %1617 = vmatmul.bf16.gmra.mxu0 %v1447
      %v1618 = vpop.f32.mrf.mxu0
      %v1619 = vadd.f32 0.0, %v1618
      %v1620 = vpop.f32.mrf.mxu0
      %v1621 = vadd.f32 0.0, %v1620
      %1622 = vmatmul.bf16.gmra.mxu0 %v1450
      %v1623 = vpop.f32.mrf.mxu0
      %v1624 = vadd.f32 0.0, %v1623
      %v1625 = vpop.f32.mrf.mxu0
      %v1626 = vadd.f32 0.0, %v1625
      %1627 = vmatmul.bf16.gmra.mxu0 %v1453
      %v1628 = vpop.f32.mrf.mxu0
      %v1629 = vadd.f32 0.0, %v1628
      %v1630 = vpop.f32.mrf.mxu0
      %v1631 = vadd.f32 0.0, %v1630
      %1632 = vmatmul.bf16.gmra.mxu0 %v1456
      %v1633 = vpop.f32.mrf.mxu0
      %v1634 = vadd.f32 0.0, %v1633
      %v1635 = vpop.f32.mrf.mxu0
      %v1636 = vadd.f32 0.0, %v1635
      %1637 = vmatmul.bf16.gmra.mxu0 %v1459
      %v1638 = vpop.f32.mrf.mxu0
      %v1639 = vadd.f32 0.0, %v1638
      %v1640 = vpop.f32.mrf.mxu0
      %v1641 = vadd.f32 0.0, %v1640
      %1642 = vmatmul.bf16.gmra.mxu0 %v1462
      %v1643 = vpop.f32.mrf.mxu0
      %v1644 = vadd.f32 0.0, %v1643
      %v1645 = vpop.f32.mrf.mxu0
      %v1646 = vadd.f32 0.0, %v1645
      %1647 = vdwg.mxu0
      %v1680 = vunpack.c.l.b16 %v1257
      %v1681 = vunpack.c.l.b16 %v1258
      %v1682 = vunpack.c.l.b16 %v1259
      %v1683 = vunpack.c.l.b16 %v1260
      %v1684 = vunpack.c.l.b16 %v1261
      %v1685 = vunpack.c.l.b16 %v1262
      %v1686 = vunpack.c.l.b16 %v1263
      %v1687 = vunpack.c.l.b16 %v1264
      %v1688 = vunpack.c.l.b16 %v1265
      %v1689 = vunpack.c.l.b16 %v1266
      %v1690 = vunpack.c.l.b16 %v1267
      %v1691 = vunpack.c.l.b16 %v1268
      %v1692 = vunpack.c.l.b16 %v1269
      %v1693 = vunpack.c.l.b16 %v1270
      %v1694 = vunpack.c.l.b16 %v1271
      %v1695 = vunpack.c.l.b16 %v1272
      %v1696 = vunpack.c.l.b16 %v1273
      %v1697 = vunpack.c.l.b16 %v1274
      %v1698 = vunpack.c.l.b16 %v1275
      %v1699 = vunpack.c.l.b16 %v1276
      %v1700 = vunpack.c.l.b16 %v1277
      %v1701 = vunpack.c.l.b16 %v1278
      %v1702 = vunpack.c.l.b16 %v1279
      %v1703 = vunpack.c.l.b16 %v1280
      %v1704 = vunpack.c.l.b16 %v1281
      %v1705 = vunpack.c.l.b16 %v1282
      %v1706 = vunpack.c.l.b16 %v1283
      %v1707 = vunpack.c.l.b16 %v1284
      %v1708 = vunpack.c.l.b16 %v1285
      %v1709 = vunpack.c.l.b16 %v1286
      %v1710 = vunpack.c.l.b16 %v1287
      %v1711 = vunpack.c.l.b16 %v1288
      %v1712 = vpack.c.b16 %v1681, %v1680
      %v1713 = vpack.c.b16 %v1683, %v1682
      %v1714 = vpack.c.b16 %v1685, %v1684
      %v1715 = vpack.c.b16 %v1687, %v1686
      %v1716 = vpack.c.b16 %v1689, %v1688
      %v1717 = vpack.c.b16 %v1691, %v1690
      %v1718 = vpack.c.b16 %v1693, %v1692
      %v1719 = vpack.c.b16 %v1695, %v1694
      %v1720 = vpack.c.b16 %v1697, %v1696
      %v1721 = vpack.c.b16 %v1699, %v1698
      %v1722 = vpack.c.b16 %v1701, %v1700
      %v1723 = vpack.c.b16 %v1703, %v1702
      %v1724 = vpack.c.b16 %v1705, %v1704
      %v1725 = vpack.c.b16 %v1707, %v1706
      %v1726 = vpack.c.b16 %v1709, %v1708
      %v1727 = vpack.c.b16 %v1711, %v1710
      %v1730 = vunpack.c.l.b16 %v1323
      %v1731 = vunpack.c.h.b16 %v1323
      %v1732 = vunpack.c.l.b16 %v1324
      %v1733 = vunpack.c.h.b16 %v1324
      %v1734 = vpack.c.b16 %v1732, %v1730
      %v1735 = vpack.c.b16 %v1733, %v1731
      %v1737 = vsel %vm423, %v1712, 0
      %v1740 = vsel %vm423, %v1713, 0
      %v1743 = vsel %vm423, %v1714, 0
      %v1746 = vsel %vm423, %v1715, 0
      %v1749 = vsel %vm423, %v1716, 0
      %v1752 = vsel %vm423, %v1717, 0
      %v1755 = vsel %vm423, %v1718, 0
      %v1758 = vsel %vm423, %v1719, 0
      %v1761 = vsel %vm423, %v1720, 0
      %v1764 = vsel %vm423, %v1721, 0
      %v1767 = vsel %vm423, %v1722, 0
      %v1770 = vsel %vm423, %v1723, 0
      %v1773 = vsel %vm423, %v1724, 0
      %v1776 = vsel %vm423, %v1725, 0
      %v1779 = vsel %vm423, %v1726, 0
      %v1782 = vsel %vm423, %v1727, 0
      %v1785 = vsel %vm472, %v1734, 0
      %v1788 = vsel %vm472, %v1735, 0
      %1790 = vmatpush.bf16.msra.mxu0 0
      %1791 = vmatpush.bf16.msra.mxu0 0
      %1792 = vmatpush.bf16.msra.mxu0 0
      %1793 = vmatpush.bf16.msra.mxu0 0
      %1794 = vmatpush.bf16.msra.mxu0 0
      %1795 = vmatpush.bf16.msra.mxu0 0
      %1796 = vmatpush.bf16.msra.mxu0 0
      %1797 = vmatpush.bf16.msra.mxu0 %v1785
      %1798 = vmatmul.bf16.gmra.mxu0 %v1737
      %v1799 = vpop.f32.mrf.mxu0
      %v1800 = vadd.f32 %v1480, %v1799
      %v1801 = vpop.f32.mrf.mxu0
      %v1802 = vadd.f32 %v1482, %v1801
      %1803 = vmatmul.bf16.gmra.mxu0 %v1740
      %v1804 = vpop.f32.mrf.mxu0
      %v1805 = vadd.f32 %v1485, %v1804
      %v1806 = vpop.f32.mrf.mxu0
      %v1807 = vadd.f32 %v1487, %v1806
      %1808 = vmatmul.bf16.gmra.mxu0 %v1743
      %v1809 = vpop.f32.mrf.mxu0
      %v1810 = vadd.f32 %v1490, %v1809
      %v1811 = vpop.f32.mrf.mxu0
      %v1812 = vadd.f32 %v1492, %v1811
      %1813 = vmatmul.bf16.gmra.mxu0 %v1746
      %v1814 = vpop.f32.mrf.mxu0
      %v1815 = vadd.f32 %v1495, %v1814
      %v1816 = vpop.f32.mrf.mxu0
      %v1817 = vadd.f32 %v1497, %v1816
      %1818 = vmatmul.bf16.gmra.mxu0 %v1749
      %v1819 = vpop.f32.mrf.mxu0
      %v1820 = vadd.f32 %v1500, %v1819
      %v1821 = vpop.f32.mrf.mxu0
      %v1822 = vadd.f32 %v1502, %v1821
      %1823 = vmatmul.bf16.gmra.mxu0 %v1752
      %v1824 = vpop.f32.mrf.mxu0
      %v1825 = vadd.f32 %v1505, %v1824
      %v1826 = vpop.f32.mrf.mxu0
      %v1827 = vadd.f32 %v1507, %v1826
      %1828 = vmatmul.bf16.gmra.mxu0 %v1755
      %v1829 = vpop.f32.mrf.mxu0
      %v1830 = vadd.f32 %v1510, %v1829
      %v1831 = vpop.f32.mrf.mxu0
      %v1832 = vadd.f32 %v1512, %v1831
      %1833 = vmatmul.bf16.gmra.mxu0 %v1758
      %v1834 = vpop.f32.mrf.mxu0
      %v1835 = vadd.f32 %v1515, %v1834
      %v1836 = vpop.f32.mrf.mxu0
      %v1837 = vadd.f32 %v1517, %v1836
      %1838 = vmatmul.bf16.gmra.mxu0 %v1761
      %v1839 = vpop.f32.mrf.mxu0
      %v1840 = vadd.f32 %v1520, %v1839
      %v1841 = vpop.f32.mrf.mxu0
      %v1842 = vadd.f32 %v1522, %v1841
      %1843 = vmatmul.bf16.gmra.mxu0 %v1764
      %v1844 = vpop.f32.mrf.mxu0
      %v1845 = vadd.f32 %v1525, %v1844
      %v1846 = vpop.f32.mrf.mxu0
      %v1847 = vadd.f32 %v1527, %v1846
      %1848 = vmatmul.bf16.gmra.mxu0 %v1767
      %v1849 = vpop.f32.mrf.mxu0
      %v1850 = vadd.f32 %v1530, %v1849
      %v1851 = vpop.f32.mrf.mxu0
      %v1852 = vadd.f32 %v1532, %v1851
      %1853 = vmatmul.bf16.gmra.mxu0 %v1770
      %v1854 = vpop.f32.mrf.mxu0
      %v1855 = vadd.f32 %v1535, %v1854
      %v1856 = vpop.f32.mrf.mxu0
      %v1857 = vadd.f32 %v1537, %v1856
      %1858 = vmatmul.bf16.gmra.mxu0 %v1773
      %v1859 = vpop.f32.mrf.mxu0
      %v1860 = vadd.f32 %v1540, %v1859
      %v1861 = vpop.f32.mrf.mxu0
      %v1862 = vadd.f32 %v1542, %v1861
      %1863 = vmatmul.bf16.gmra.mxu0 %v1776
      %v1864 = vpop.f32.mrf.mxu0
      %v1865 = vadd.f32 %v1545, %v1864
      %v1866 = vpop.f32.mrf.mxu0
      %v1867 = vadd.f32 %v1547, %v1866
      %1868 = vmatmul.bf16.gmra.mxu0 %v1779
      %v1869 = vpop.f32.mrf.mxu0
      %v1870 = vadd.f32 %v1550, %v1869
      %v1871 = vpop.f32.mrf.mxu0
      %v1872 = vadd.f32 %v1552, %v1871
      %1873 = vmatmul.bf16.gmra.mxu0 %v1782
      %v1874 = vpop.f32.mrf.mxu0
      %v1875 = vadd.f32 %v1555, %v1874
      %v1876 = vpop.f32.mrf.mxu0
      %v1877 = vadd.f32 %v1557, %v1876
      %1878 = vdwg.mxu0
      %1879 = vmatpush.bf16.msra.mxu0 0
      %1880 = vmatpush.bf16.msra.mxu0 0
      %1881 = vmatpush.bf16.msra.mxu0 0
      %1882 = vmatpush.bf16.msra.mxu0 0
      %1883 = vmatpush.bf16.msra.mxu0 0
      %1884 = vmatpush.bf16.msra.mxu0 0
      %1885 = vmatpush.bf16.msra.mxu0 0
      %1886 = vmatpush.bf16.msra.mxu0 %v1788
      %1887 = vmatmul.bf16.gmra.mxu0 %v1737
      %v1888 = vpop.f32.mrf.mxu0
      %v1889 = vadd.f32 %v1569, %v1888
      %v1890 = vpop.f32.mrf.mxu0
      %v1891 = vadd.f32 %v1571, %v1890
      %1892 = vmatmul.bf16.gmra.mxu0 %v1740
      %v1893 = vpop.f32.mrf.mxu0
      %v1894 = vadd.f32 %v1574, %v1893
      %v1895 = vpop.f32.mrf.mxu0
      %v1896 = vadd.f32 %v1576, %v1895
      %1897 = vmatmul.bf16.gmra.mxu0 %v1743
      %v1898 = vpop.f32.mrf.mxu0
      %v1899 = vadd.f32 %v1579, %v1898
      %v1900 = vpop.f32.mrf.mxu0
      %v1901 = vadd.f32 %v1581, %v1900
      %1902 = vmatmul.bf16.gmra.mxu0 %v1746
      %v1903 = vpop.f32.mrf.mxu0
      %v1904 = vadd.f32 %v1584, %v1903
      %v1905 = vpop.f32.mrf.mxu0
      %v1906 = vadd.f32 %v1586, %v1905
      %1907 = vmatmul.bf16.gmra.mxu0 %v1749
      %v1908 = vpop.f32.mrf.mxu0
      %v1909 = vadd.f32 %v1589, %v1908
      %v1910 = vpop.f32.mrf.mxu0
      %v1911 = vadd.f32 %v1591, %v1910
      %1912 = vmatmul.bf16.gmra.mxu0 %v1752
      %v1913 = vpop.f32.mrf.mxu0
      %v1914 = vadd.f32 %v1594, %v1913
      %v1915 = vpop.f32.mrf.mxu0
      %v1916 = vadd.f32 %v1596, %v1915
      %1917 = vmatmul.bf16.gmra.mxu0 %v1755
      %v1918 = vpop.f32.mrf.mxu0
      %v1919 = vadd.f32 %v1599, %v1918
      %v1920 = vpop.f32.mrf.mxu0
      %v1921 = vadd.f32 %v1601, %v1920
      %1922 = vmatmul.bf16.gmra.mxu0 %v1758
      %v1923 = vpop.f32.mrf.mxu0
      %v1924 = vadd.f32 %v1604, %v1923
      %v1925 = vpop.f32.mrf.mxu0
      %v1926 = vadd.f32 %v1606, %v1925
      %1927 = vmatmul.bf16.gmra.mxu0 %v1761
      %v1928 = vpop.f32.mrf.mxu0
      %v1929 = vadd.f32 %v1609, %v1928
      %v1930 = vpop.f32.mrf.mxu0
      %v1931 = vadd.f32 %v1611, %v1930
      %1932 = vmatmul.bf16.gmra.mxu0 %v1764
      %v1933 = vpop.f32.mrf.mxu0
      %v1934 = vadd.f32 %v1614, %v1933
      %v1935 = vpop.f32.mrf.mxu0
      %v1936 = vadd.f32 %v1616, %v1935
      %1937 = vmatmul.bf16.gmra.mxu0 %v1767
      %v1938 = vpop.f32.mrf.mxu0
      %v1939 = vadd.f32 %v1619, %v1938
      %v1940 = vpop.f32.mrf.mxu0
      %v1941 = vadd.f32 %v1621, %v1940
      %1942 = vmatmul.bf16.gmra.mxu0 %v1770
      %v1943 = vpop.f32.mrf.mxu0
      %v1944 = vadd.f32 %v1624, %v1943
      %v1945 = vpop.f32.mrf.mxu0
      %v1946 = vadd.f32 %v1626, %v1945
      %1947 = vmatmul.bf16.gmra.mxu0 %v1773
      %v1948 = vpop.f32.mrf.mxu0
      %v1949 = vadd.f32 %v1629, %v1948
      %v1950 = vpop.f32.mrf.mxu0
      %v1951 = vadd.f32 %v1631, %v1950
      %1952 = vmatmul.bf16.gmra.mxu0 %v1776
      %v1953 = vpop.f32.mrf.mxu0
      %v1954 = vadd.f32 %v1634, %v1953
      %v1955 = vpop.f32.mrf.mxu0
      %v1956 = vadd.f32 %v1636, %v1955
      %1957 = vmatmul.bf16.gmra.mxu0 %v1779
      %v1958 = vpop.f32.mrf.mxu0
      %v1959 = vadd.f32 %v1639, %v1958
      %v1960 = vpop.f32.mrf.mxu0
      %v1961 = vadd.f32 %v1641, %v1960
      %1962 = vmatmul.bf16.gmra.mxu0 %v1782
      %v1963 = vpop.f32.mrf.mxu0
      %v1964 = vadd.f32 %v1644, %v1963
      %v1965 = vpop.f32.mrf.mxu0
      %v1966 = vadd.f32 %v1646, %v1965
      %1967 = vdwg.mxu0
      %v1968 = vadd.f32 %v1800, %v1802
      %v1969 = vadd.f32 %v1968, %v1805
      %v1970 = vadd.f32 %v1969, %v1807
      %v1971 = vadd.f32 %v1970, %v1810
      %v1972 = vadd.f32 %v1971, %v1812
      %v1973 = vadd.f32 %v1972, %v1815
      %v1974 = vadd.f32 %v1973, %v1817
      %v1975 = vadd.f32 %v1974, %v1820
      %v1976 = vadd.f32 %v1975, %v1822
      %v1977 = vadd.f32 %v1976, %v1825
      %v1978 = vadd.f32 %v1977, %v1827
      %v1979 = vadd.f32 %v1978, %v1830
      %v1980 = vadd.f32 %v1979, %v1832
      %v1981 = vadd.f32 %v1980, %v1835
      %v1982 = vadd.f32 %v1981, %v1837
      %v1983 = vadd.f32 %v1982, %v1840
      %v1984 = vadd.f32 %v1983, %v1842
      %v1985 = vadd.f32 %v1984, %v1845
      %v1986 = vadd.f32 %v1985, %v1847
      %v1987 = vadd.f32 %v1986, %v1850
      %v1988 = vadd.f32 %v1987, %v1852
      %v1989 = vadd.f32 %v1988, %v1855
      %v1990 = vadd.f32 %v1989, %v1857
      %v1991 = vadd.f32 %v1990, %v1860
      %v1992 = vadd.f32 %v1991, %v1862
      %v1993 = vadd.f32 %v1992, %v1865
      %v1994 = vadd.f32 %v1993, %v1867
      %v1995 = vadd.f32 %v1994, %v1870
      %v1996 = vadd.f32 %v1995, %v1872
      %v1997 = vadd.f32 %v1996, %v1875
      %v1998 = vadd.f32 %v1997, %v1877
      %v1999 = vrot.slane %v1998, 4
      %v2000 = vadd.f32 %v1998, %v1999
      %v2001 = vrot.slane %v2000, 2
      %v2002 = vadd.f32 %v2000, %v2001
      %v2003 = vrot.slane %v2002, 1
      %v2004 = vadd.f32 %v2002, %v2003
      %v2005 = vadd.f32 %v1889, %v1891
      %v2006 = vadd.f32 %v2005, %v1894
      %v2007 = vadd.f32 %v2006, %v1896
      %v2008 = vadd.f32 %v2007, %v1899
      %v2009 = vadd.f32 %v2008, %v1901
      %v2010 = vadd.f32 %v2009, %v1904
      %v2011 = vadd.f32 %v2010, %v1906
      %v2012 = vadd.f32 %v2011, %v1909
      %v2013 = vadd.f32 %v2012, %v1911
      %v2014 = vadd.f32 %v2013, %v1914
      %v2015 = vadd.f32 %v2014, %v1916
      %v2016 = vadd.f32 %v2015, %v1919
      %v2017 = vadd.f32 %v2016, %v1921
      %v2018 = vadd.f32 %v2017, %v1924
      %v2019 = vadd.f32 %v2018, %v1926
      %v2020 = vadd.f32 %v2019, %v1929
      %v2021 = vadd.f32 %v2020, %v1931
      %v2022 = vadd.f32 %v2021, %v1934
      %v2023 = vadd.f32 %v2022, %v1936
      %v2024 = vadd.f32 %v2023, %v1939
      %v2025 = vadd.f32 %v2024, %v1941
      %v2026 = vadd.f32 %v2025, %v1944
      %v2027 = vadd.f32 %v2026, %v1946
      %v2028 = vadd.f32 %v2027, %v1949
      %v2029 = vadd.f32 %v2028, %v1951
      %v2030 = vadd.f32 %v2029, %v1954
      %v2031 = vadd.f32 %v2030, %v1956
      %v2032 = vadd.f32 %v2031, %v1959
      %v2033 = vadd.f32 %v2032, %v1961
      %v2034 = vadd.f32 %v2033, %v1964
      %v2035 = vadd.f32 %v2034, %v1966
      %v2036 = vrot.slane %v2035, 4
      %v2037 = vadd.f32 %v2035, %v2036
      %v2038 = vrot.slane %v2037, 2
      %v2039 = vadd.f32 %v2037, %v2038
      %v2040 = vrot.slane %v2039, 1
      %v2041 = vadd.f32 %v2039, %v2040
      %v2042 = vadd.f32 %v1051, %v2004
      %v2043 = vadd.f32 %v1052, %v2041
      %v2044 = vmul.f32 %v1800, %v1800
      %v2045 = vmul.f32 %v1889, %v1889
      %v2046 = vmul.f32 %v1802, %v1802
      %v2047 = vmul.f32 %v1891, %v1891
      %v2048 = vmul.f32 %v1805, %v1805
      %v2049 = vmul.f32 %v1894, %v1894
      %v2050 = vmul.f32 %v1807, %v1807
      %v2051 = vmul.f32 %v1896, %v1896
      %v2052 = vmul.f32 %v1810, %v1810
      %v2053 = vmul.f32 %v1899, %v1899
      %v2054 = vmul.f32 %v1812, %v1812
      %v2055 = vmul.f32 %v1901, %v1901
      %v2056 = vmul.f32 %v1815, %v1815
      %v2057 = vmul.f32 %v1904, %v1904
      %v2058 = vmul.f32 %v1817, %v1817
      %v2059 = vmul.f32 %v1906, %v1906
      %v2060 = vmul.f32 %v1820, %v1820
      %v2061 = vmul.f32 %v1909, %v1909
      %v2062 = vmul.f32 %v1822, %v1822
      %v2063 = vmul.f32 %v1911, %v1911
      %v2064 = vmul.f32 %v1825, %v1825
      %v2065 = vmul.f32 %v1914, %v1914
      %v2066 = vmul.f32 %v1827, %v1827
      %v2067 = vmul.f32 %v1916, %v1916
      %v2068 = vmul.f32 %v1830, %v1830
      %v2069 = vmul.f32 %v1919, %v1919
      %v2070 = vmul.f32 %v1832, %v1832
      %v2071 = vmul.f32 %v1921, %v1921
      %v2072 = vmul.f32 %v1835, %v1835
      %v2073 = vmul.f32 %v1924, %v1924
      %v2074 = vmul.f32 %v1837, %v1837
      %v2075 = vmul.f32 %v1926, %v1926
      %v2076 = vmul.f32 %v1840, %v1840
      %v2077 = vmul.f32 %v1929, %v1929
      %v2078 = vmul.f32 %v1842, %v1842
      %v2079 = vmul.f32 %v1931, %v1931
      %v2080 = vmul.f32 %v1845, %v1845
      %v2081 = vmul.f32 %v1934, %v1934
      %v2082 = vmul.f32 %v1847, %v1847
      %v2083 = vmul.f32 %v1936, %v1936
      %v2084 = vmul.f32 %v1850, %v1850
      %v2085 = vmul.f32 %v1939, %v1939
      %v2086 = vmul.f32 %v1852, %v1852
      %v2087 = vmul.f32 %v1941, %v1941
      %v2088 = vmul.f32 %v1855, %v1855
      %v2089 = vmul.f32 %v1944, %v1944
      %v2090 = vmul.f32 %v1857, %v1857
      %v2091 = vmul.f32 %v1946, %v1946
      %v2092 = vmul.f32 %v1860, %v1860
      %v2093 = vmul.f32 %v1949, %v1949
      %v2094 = vmul.f32 %v1862, %v1862
      %v2095 = vmul.f32 %v1951, %v1951
      %v2096 = vmul.f32 %v1865, %v1865
      %v2097 = vmul.f32 %v1954, %v1954
      %v2098 = vmul.f32 %v1867, %v1867
      %v2099 = vmul.f32 %v1956, %v1956
      %v2100 = vmul.f32 %v1870, %v1870
      %v2101 = vmul.f32 %v1959, %v1959
      %v2102 = vmul.f32 %v1872, %v1872
      %v2103 = vmul.f32 %v1961, %v1961
      %v2104 = vmul.f32 %v1875, %v1875
      %v2105 = vmul.f32 %v1964, %v1964
      %v2106 = vmul.f32 %v1877, %v1877
      %v2107 = vmul.f32 %v1966, %v1966
      %v2108 = vadd.f32 %v2044, %v2046
      %v2109 = vadd.f32 %v2108, %v2048
      %v2110 = vadd.f32 %v2109, %v2050
      %v2111 = vadd.f32 %v2110, %v2052
      %v2112 = vadd.f32 %v2111, %v2054
      %v2113 = vadd.f32 %v2112, %v2056
      %v2114 = vadd.f32 %v2113, %v2058
      %v2115 = vadd.f32 %v2114, %v2060
      %v2116 = vadd.f32 %v2115, %v2062
      %v2117 = vadd.f32 %v2116, %v2064
      %v2118 = vadd.f32 %v2117, %v2066
      %v2119 = vadd.f32 %v2118, %v2068
      %v2120 = vadd.f32 %v2119, %v2070
      %v2121 = vadd.f32 %v2120, %v2072
      %v2122 = vadd.f32 %v2121, %v2074
      %v2123 = vadd.f32 %v2122, %v2076
      %v2124 = vadd.f32 %v2123, %v2078
      %v2125 = vadd.f32 %v2124, %v2080
      %v2126 = vadd.f32 %v2125, %v2082
      %v2127 = vadd.f32 %v2126, %v2084
      %v2128 = vadd.f32 %v2127, %v2086
      %v2129 = vadd.f32 %v2128, %v2088
      %v2130 = vadd.f32 %v2129, %v2090
      %v2131 = vadd.f32 %v2130, %v2092
      %v2132 = vadd.f32 %v2131, %v2094
      %v2133 = vadd.f32 %v2132, %v2096
      %v2134 = vadd.f32 %v2133, %v2098
      %v2135 = vadd.f32 %v2134, %v2100
      %v2136 = vadd.f32 %v2135, %v2102
      %v2137 = vadd.f32 %v2136, %v2104
      %v2138 = vadd.f32 %v2137, %v2106
      %v2139 = vrot.slane %v2138, 4
      %v2140 = vadd.f32 %v2138, %v2139
      %v2141 = vrot.slane %v2140, 2
      %v2142 = vadd.f32 %v2140, %v2141
      %v2143 = vrot.slane %v2142, 1
      %v2144 = vadd.f32 %v2142, %v2143
      %v2145 = vadd.f32 %v2045, %v2047
      %v2146 = vadd.f32 %v2145, %v2049
      %v2147 = vadd.f32 %v2146, %v2051
      %v2148 = vadd.f32 %v2147, %v2053
      %v2149 = vadd.f32 %v2148, %v2055
      %v2150 = vadd.f32 %v2149, %v2057
      %v2151 = vadd.f32 %v2150, %v2059
      %v2152 = vadd.f32 %v2151, %v2061
      %v2153 = vadd.f32 %v2152, %v2063
      %v2154 = vadd.f32 %v2153, %v2065
      %v2155 = vadd.f32 %v2154, %v2067
      %v2156 = vadd.f32 %v2155, %v2069
      %v2157 = vadd.f32 %v2156, %v2071
      %v2158 = vadd.f32 %v2157, %v2073
      %v2159 = vadd.f32 %v2158, %v2075
      %v2160 = vadd.f32 %v2159, %v2077
      %v2161 = vadd.f32 %v2160, %v2079
      %v2162 = vadd.f32 %v2161, %v2081
      %v2163 = vadd.f32 %v2162, %v2083
      %v2164 = vadd.f32 %v2163, %v2085
      %v2165 = vadd.f32 %v2164, %v2087
      %v2166 = vadd.f32 %v2165, %v2089
      %v2167 = vadd.f32 %v2166, %v2091
      %v2168 = vadd.f32 %v2167, %v2093
      %v2169 = vadd.f32 %v2168, %v2095
      %v2170 = vadd.f32 %v2169, %v2097
      %v2171 = vadd.f32 %v2170, %v2099
      %v2172 = vadd.f32 %v2171, %v2101
      %v2173 = vadd.f32 %v2172, %v2103
      %v2174 = vadd.f32 %v2173, %v2105
      %v2175 = vadd.f32 %v2174, %v2107
      %v2176 = vrot.slane %v2175, 4
      %v2177 = vadd.f32 %v2175, %v2176
      %v2178 = vrot.slane %v2177, 2
      %v2179 = vadd.f32 %v2177, %v2178
      %v2180 = vrot.slane %v2179, 1
      %v2181 = vadd.f32 %v2179, %v2180
      %v2182 = vadd.f32 %v1191, %v2144
      %v2183 = vadd.f32 %v1192, %v2181
      %v2184 = vpack.c.bf16 %v1889, %v1800
      %v2185 = vpack.c.bf16 %v1891, %v1802
      %v2186 = vpack.c.bf16 %v1894, %v1805
      %v2187 = vpack.c.bf16 %v1896, %v1807
      %v2188 = vpack.c.bf16 %v1899, %v1810
      %v2189 = vpack.c.bf16 %v1901, %v1812
      %v2190 = vpack.c.bf16 %v1904, %v1815
      %v2191 = vpack.c.bf16 %v1906, %v1817
      %v2192 = vpack.c.bf16 %v1909, %v1820
      %v2193 = vpack.c.bf16 %v1911, %v1822
      %v2194 = vpack.c.bf16 %v1914, %v1825
      %v2195 = vpack.c.bf16 %v1916, %v1827
      %v2196 = vpack.c.bf16 %v1919, %v1830
      %v2197 = vpack.c.bf16 %v1921, %v1832
      %v2198 = vpack.c.bf16 %v1924, %v1835
      %v2199 = vpack.c.bf16 %v1926, %v1837
      %v2200 = vpack.c.bf16 %v1929, %v1840
      %v2201 = vpack.c.bf16 %v1931, %v1842
      %v2202 = vpack.c.bf16 %v1934, %v1845
      %v2203 = vpack.c.bf16 %v1936, %v1847
      %v2204 = vpack.c.bf16 %v1939, %v1850
      %v2205 = vpack.c.bf16 %v1941, %v1852
      %v2206 = vpack.c.bf16 %v1944, %v1855
      %v2207 = vpack.c.bf16 %v1946, %v1857
      %v2208 = vpack.c.bf16 %v1949, %v1860
      %v2209 = vpack.c.bf16 %v1951, %v1862
      %v2210 = vpack.c.bf16 %v1954, %v1865
      %v2211 = vpack.c.bf16 %v1956, %v1867
      %v2212 = vpack.c.bf16 %v1959, %v1870
      %v2213 = vpack.c.bf16 %v1961, %v1872
      %v2214 = vpack.c.bf16 %v1964, %v1875
      %v2215 = vpack.c.bf16 %v1966, %v1877
      %s2216 = scalar_lea.vmem %s246, 16
      %2217 = vst [vmem:[%s2216] sm:$0xff] %v2184
      %2218 = vst [vmem:[%s2216 + $0x8] sm:$0xff] %v2185
      %2219 = vst [vmem:[%s2216 + $0x20] sm:$0xff] %v2186
      %2220 = vst [vmem:[%s2216 + $0x28] sm:$0xff] %v2187
      %2221 = vst [vmem:[%s2216 + $0x40] sm:$0xff] %v2188
      %2222 = vst [vmem:[%s2216 + $0x48] sm:$0xff] %v2189
      %2223 = vst [vmem:[%s2216 + $0x60] sm:$0xff] %v2190
      %2224 = vst [vmem:[%s2216 + $0x68] sm:$0xff] %v2191
      %2225 = vst [vmem:[%s2216 + $0x80] sm:$0xff] %v2192
      %2226 = vst [vmem:[%s2216 + $0x88] sm:$0xff] %v2193
      %2227 = vst [vmem:[%s2216 + $0xa0] sm:$0xff] %v2194
      %2228 = vst [vmem:[%s2216 + $0xa8] sm:$0xff] %v2195
      %2229 = vst [vmem:[%s2216 + $0xc0] sm:$0xff] %v2196
      %2230 = vst [vmem:[%s2216 + $0xc8] sm:$0xff] %v2197
      %2231 = vst [vmem:[%s2216 + $0xe0] sm:$0xff] %v2198
      %2232 = vst [vmem:[%s2216 + $0xe8] sm:$0xff] %v2199
      %2233 = vst [vmem:[%s2216 + $0x100] sm:$0xff] %v2200
      %2234 = vst [vmem:[%s2216 + $0x108] sm:$0xff] %v2201
      %2235 = vst [vmem:[%s2216 + $0x120] sm:$0xff] %v2202
      %2236 = vst [vmem:[%s2216 + $0x128] sm:$0xff] %v2203
      %2237 = vst [vmem:[%s2216 + $0x140] sm:$0xff] %v2204
      %2238 = vst [vmem:[%s2216 + $0x148] sm:$0xff] %v2205
      %2239 = vst [vmem:[%s2216 + $0x160] sm:$0xff] %v2206
      %2240 = vst [vmem:[%s2216 + $0x168] sm:$0xff] %v2207
      %2241 = vst [vmem:[%s2216 + $0x180] sm:$0xff] %v2208
      %2242 = vst [vmem:[%s2216 + $0x188] sm:$0xff] %v2209
      %2243 = vst [vmem:[%s2216 + $0x1a0] sm:$0xff] %v2210
      %2244 = vst [vmem:[%s2216 + $0x1a8] sm:$0xff] %v2211
      %2245 = vst [vmem:[%s2216 + $0x1c0] sm:$0xff] %v2212
      %2246 = vst [vmem:[%s2216 + $0x1c8] sm:$0xff] %v2213
      %2247 = vst [vmem:[%s2216 + $0x1e0] sm:$0xff] %v2214
      %2248 = vst [vmem:[%s2216 + $0x1e8] sm:$0xff] %v2215
      %v2251 = vrot.slane %v2043, 7
      %vm2252 = vcmask 1040384
      %v2253 = vsel %vm2252, %v2042, %v2251
      %v2255 = vlaneseq
      %vm2256 = vcmp.ge.s32.totalorder %v2255, 0
      %vm2257 = vcmp.lt.s32.totalorder %v2255, 256
      %vm2258 = vmand %vm2256, %vm2257
      %2259 = vst.msk [vmem:[%s255] sm:$0x3] %vm2258, %v2253
      %v2262 = vrot.slane %v2183, 7
      %v2263 = vsel %vm2252, %v2182, %v2262
      %2265 = vst.msk [vmem:[%s263] sm:$0x3] %vm2258, %v2263
      %s2266 = smul.u32 16, %s21
      %p2267 = scmp.lt.s32.totalorder %s20, 1
      %s2268 = scalar_select %p2267, %s20, 1
      %p2269 = scmp.lt.s32.totalorder %s2266, 15
      %s2270 = scalar_select %p2269, %s2266, 15
      %s2271 = smul.addr %s2270, 8
      %s2272 = smul.addr %s2268, 128
      %s2273 = sadd.s32 %s2271, %s2272
      %s2274 = smul.addr %s2273, 4
      %s2275 = scalar_lea.vmem %s2, %s2274
      %p2276 = scmp.lt.s32.totalorder %s20, 1
      %s2277 = scalar_select %p2276, %s20, 1
      %p2278 = scmp.lt.s32.totalorder %s21, 0
      %s2279 = scalar_select %p2278, %s21, 0
      %s2280 = smul.addr %s2279, 2
      %s2281 = smul.addr %s2277, 2
      %s2282 = sadd.s32 %s2280, %s2281
      %s2283 = scalar_lea.vmem %s3, %s2282
      %p2284 = scmp.lt.s32.totalorder %s20, 1
      %s2285 = scalar_select %p2284, %s20, 1
      %p2286 = scmp.lt.s32.totalorder %s21, 0
      %s2287 = scalar_select %p2286, %s21, 0
      %s2288 = smul.addr %s2287, 2
      %s2289 = smul.addr %s2285, 2
      %s2290 = sadd.s32 %s2288, %s2289
      %s2291 = scalar_lea.vmem %s4, %s2290
      // Predicated region
      $region29: #{deconv4x4_forward.2} parent=27 // pred_check
        %p2292 = pneg %p95
      $region30: #{deconv4x4_forward.2} parent=27 // pred_check_branch
        %2294 = sbr.rel (%p2292) target = $region32
      $region31: #{deconv4x4_forward.2} parent=27 // pred_region
        %s2295 = smul.u32 16, %s21
      $region32: #{deconv4x4_forward.2} parent=27 // pred_fallthru
        _
      // Predicated region
      $region33: #{deconv4x4_forward.2} parent=27 // pred_check
        %p2296 = pneg %p123
      $region34: #{deconv4x4_forward.2} parent=27 // pred_check_branch
        %2298 = sbr.rel (%p2296) target = $region36
      $region35: #{deconv4x4_forward.2} parent=27 // pred_region
        _
      $region36: #{deconv4x4_forward.2} parent=27 // pred_fallthru
        _
      // Predicated region
      $region37: #{deconv4x4_forward.2} parent=27 // pred_check
        %p2299 = pneg %p151
      $region38: #{deconv4x4_forward.2} parent=27 // pred_check_branch
        %2301 = sbr.rel (%p2299) target = $region40
      $region39: #{deconv4x4_forward.2} parent=27 // pred_region
        _
      $region40: #{deconv4x4_forward.2} parent=27 // pred_fallthru
        _
    $region28: #{deconv4x4_forward.2} parent=5 // pred_fallthru
      _
    %p2302 = scmp.le.s32.totalorder 2, %s11
    // Predicated region
    $region41: #{deconv4x4_forward.2} parent=5 // pred_check
      %p2303 = pneg %p2302
    $region42: #{deconv4x4_forward.2} parent=5 // pred_check_branch
      %2305 = sbr.rel (%p2303) target = $region44
    $region43: #{deconv4x4_forward.2} parent=5 // pred_region
      %s2306 = ssub.s32 %s11, 2
      // Predicated region
      $region45: #{deconv4x4_forward.2} parent=43 // pred_check
        %p2307 = pneg %p101
      $region46: #{deconv4x4_forward.2} parent=43 // pred_check_branch
        %2309 = sbr.rel (%p2307) target = $region48
      $region47: #{deconv4x4_forward.2} parent=43 // pred_region
        %s2310 = smul.u32 16, %s23
        %p2311 = scmp.lt.s32.totalorder %s22, 1
        %s2312 = scalar_select %p2311, %s22, 1
        %p2313 = scmp.lt.s32.totalorder %s2310, 15
        %s2314 = scalar_select %p2313, %s2310, 15
        %s2315 = smul.addr %s2314, 8
        %s2316 = smul.addr %s2312, 128
        %s2317 = sadd.s32 %s2315, %s2316
        %s2318 = smul.addr %s2317, 4
        %s2319 = scalar_lea.vmem %s2, %s2318
      $region48: #{deconv4x4_forward.2} parent=43 // pred_fallthru
        _
      // Predicated region
      $region49: #{deconv4x4_forward.2} parent=43 // pred_check
        %p2320 = pneg %p129
      $region50: #{deconv4x4_forward.2} parent=43 // pred_check_branch
        %2322 = sbr.rel (%p2320) target = $region52
      $region51: #{deconv4x4_forward.2} parent=43 // pred_region
        %p2323 = scmp.lt.s32.totalorder %s22, 1
        %s2324 = scalar_select %p2323, %s22, 1
        %p2325 = scmp.lt.s32.totalorder %s23, 0
        %s2326 = scalar_select %p2325, %s23, 0
        %s2327 = smul.addr %s2326, 2
        %s2328 = smul.addr %s2324, 2
        %s2329 = sadd.s32 %s2327, %s2328
        %s2330 = scalar_lea.vmem %s3, %s2329
      $region52: #{deconv4x4_forward.2} parent=43 // pred_fallthru
        _
      // Predicated region
      $region53: #{deconv4x4_forward.2} parent=43 // pred_check
        %p2331 = pneg %p157
      $region54: #{deconv4x4_forward.2} parent=43 // pred_check_branch
        %2333 = sbr.rel (%p2331) target = $region56
      $region55: #{deconv4x4_forward.2} parent=43 // pred_region
        %p2334 = scmp.lt.s32.totalorder %s22, 1
        %s2335 = scalar_select %p2334, %s22, 1
        %p2336 = scmp.lt.s32.totalorder %s23, 0
        %s2337 = scalar_select %p2336, %s23, 0
        %s2338 = smul.addr %s2337, 2
        %s2339 = smul.addr %s2335, 2
        %s2340 = sadd.s32 %s2338, %s2339
        %s2341 = scalar_lea.vmem %s4, %s2340
      $region56: #{deconv4x4_forward.2} parent=43 // pred_fallthru
        _
    $region44: #{deconv4x4_forward.2} parent=5 // pred_fallthru
      _
  $region6: #{deconv4x4_forward.2} parent=0 // loop_footer
    %s15 = sadd.s32 1, %s11
  $region7: #{deconv4x4_forward.2} parent=0 // loop_footer_branch
    %10 = sbr.rel target = $region3
  $region8: #{deconv4x4_forward.2} parent=0 // loop_exit
    _

// kernel: deconv4x4_forward.3
$region0: #{deconv4x4_forward.3}
  #allocation0 [shape = 'u32[]', space=smem, size = 0x4, offset = 0x4, fixed_abs, tag = 'smem constant byte address 0x4 - core index']
  #allocation1 [shape = 'u32[72,128]{1,0:T(1,128)}', space=vmem, size = 0x9000, scoped, tag = 'internal scratch']
  %s0 = inlined_call_operand.vmem [shape: bf16[1024,256], index: 0, kind: input, shape index: {}]
  %s1 = inlined_call_operand.vmem [shape: f32[1,256], index: 1, kind: input, shape index: {}]
  %s2 = inlined_call_operand.vmem [shape: f32[1,256], index: 2, kind: input, shape index: {}]
  %s3 = inlined_call_operand.vmem [shape: f32[1024,256], index: 3, kind: output, shape index: {}]
  %s4 = sld [smem:[#allocation0]]
  $region22: #{deconv4x4_forward.3} parent=0
    _
  %s6 = ssub.s32 1, %s4
  %s7 = scalar_select 0, %s6, %s4
  // Predicated region
  $region2: #{deconv4x4_forward.3} parent=0 // pred_check
    _
  $region3: #{deconv4x4_forward.3} parent=0 // pred_check_branch
    %9 = sbr.rel (0) target = $region5
  $region4: #{deconv4x4_forward.3} parent=0 // pred_region
    _
  $region5: #{deconv4x4_forward.3} parent=0 // pred_fallthru
    _
  // Predicated region
  $region6: #{deconv4x4_forward.3} parent=0 // pred_check
    _
  $region7: #{deconv4x4_forward.3} parent=0 // pred_check_branch
    %11 = sbr.rel (0) target = $region9
  $region8: #{deconv4x4_forward.3} parent=0 // pred_region
    _
  $region9: #{deconv4x4_forward.3} parent=0 // pred_fallthru
    _
  // Predicated region
  $region10: #{deconv4x4_forward.3} parent=0 // pred_check
    _
  $region11: #{deconv4x4_forward.3} parent=0 // pred_check_branch
    %13 = sbr.rel (0) target = $region13
  $region12: #{deconv4x4_forward.3} parent=0 // pred_region
    _
  $region13: #{deconv4x4_forward.3} parent=0 // pred_fallthru
    _
  %v14 = vld [vmem:[%s0] sm:$0xff]
  %v15 = vld [vmem:[%s0 + $0x8] sm:$0xff]
  %v16 = vld [vmem:[%s0 + $0x10] sm:$0xff]
  %v17 = vld [vmem:[%s0 + $0x18] sm:$0xff]
  %v18 = vld [vmem:[%s0 + $0x20] sm:$0xff]
  %v19 = vld [vmem:[%s0 + $0x28] sm:$0xff]
  %v20 = vld [vmem:[%s0 + $0x30] sm:$0xff]
  %v21 = vld [vmem:[%s0 + $0x38] sm:$0xff]
  %v22 = vld [vmem:[%s0 + $0x40] sm:$0xff]
  %v23 = vld [vmem:[%s0 + $0x48] sm:$0xff]
  %v24 = vld [vmem:[%s0 + $0x50] sm:$0xff]
  %v25 = vld [vmem:[%s0 + $0x58] sm:$0xff]
  %v26 = vld [vmem:[%s0 + $0x60] sm:$0xff]
  %v27 = vld [vmem:[%s0 + $0x68] sm:$0xff]
  %v28 = vld [vmem:[%s0 + $0x70] sm:$0xff]
  %v29 = vld [vmem:[%s0 + $0x78] sm:$0xff]
  %v30 = vld [vmem:[%s0 + $0x80] sm:$0xff]
  %v31 = vld [vmem:[%s0 + $0x88] sm:$0xff]
  %v32 = vld [vmem:[%s0 + $0x90] sm:$0xff]
  %v33 = vld [vmem:[%s0 + $0x98] sm:$0xff]
  %v34 = vld [vmem:[%s0 + $0xa0] sm:$0xff]
  %v35 = vld [vmem:[%s0 + $0xa8] sm:$0xff]
  %v36 = vld [vmem:[%s0 + $0xb0] sm:$0xff]
  %v37 = vld [vmem:[%s0 + $0xb8] sm:$0xff]
  %v38 = vld [vmem:[%s0 + $0xc0] sm:$0xff]
  %v39 = vld [vmem:[%s0 + $0xc8] sm:$0xff]
  %v40 = vld [vmem:[%s0 + $0xd0] sm:$0xff]
  %v41 = vld [vmem:[%s0 + $0xd8] sm:$0xff]
  %v42 = vld [vmem:[%s0 + $0xe0] sm:$0xff]
  %v43 = vld [vmem:[%s0 + $0xe8] sm:$0xff]
  %v44 = vld [vmem:[%s0 + $0xf0] sm:$0xff]
  %v45 = vld [vmem:[%s0 + $0xf8] sm:$0xff]
  %v46 = vld [vmem:[%s0 + $0x100] sm:$0xff]
  %v47 = vld [vmem:[%s0 + $0x108] sm:$0xff]
  %v48 = vld [vmem:[%s0 + $0x110] sm:$0xff]
  %v49 = vld [vmem:[%s0 + $0x118] sm:$0xff]
  %v50 = vld [vmem:[%s0 + $0x120] sm:$0xff]
  %v51 = vld [vmem:[%s0 + $0x128] sm:$0xff]
  %v52 = vld [vmem:[%s0 + $0x130] sm:$0xff]
  %v53 = vld [vmem:[%s0 + $0x138] sm:$0xff]
  %v54 = vld [vmem:[%s0 + $0x140] sm:$0xff]
  %v55 = vld [vmem:[%s0 + $0x148] sm:$0xff]
  %v56 = vld [vmem:[%s0 + $0x150] sm:$0xff]
  %v57 = vld [vmem:[%s0 + $0x158] sm:$0xff]
  %v58 = vld [vmem:[%s0 + $0x160] sm:$0xff]
  %v59 = vld [vmem:[%s0 + $0x168] sm:$0xff]
  %v60 = vld [vmem:[%s0 + $0x170] sm:$0xff]
  %v61 = vld [vmem:[%s0 + $0x178] sm:$0xff]
  %v62 = vld [vmem:[%s0 + $0x180] sm:$0xff]
  %v63 = vld [vmem:[%s0 + $0x188] sm:$0xff]
  %v64 = vld [vmem:[%s0 + $0x190] sm:$0xff]
  %v65 = vld [vmem:[%s0 + $0x198] sm:$0xff]
  %v66 = vld [vmem:[%s0 + $0x1a0] sm:$0xff]
  %v67 = vld [vmem:[%s0 + $0x1a8] sm:$0xff]
  %v68 = vld [vmem:[%s0 + $0x1b0] sm:$0xff]
  %v69 = vld [vmem:[%s0 + $0x1b8] sm:$0xff]
  %v70 = vld [vmem:[%s0 + $0x1c0] sm:$0xff]
  %v71 = vld [vmem:[%s0 + $0x1c8] sm:$0xff]
  %v72 = vld [vmem:[%s0 + $0x1d0] sm:$0xff]
  %v73 = vld [vmem:[%s0 + $0x1d8] sm:$0xff]
  %v74 = vld [vmem:[%s0 + $0x1e0] sm:$0xff]
  %v75 = vld [vmem:[%s0 + $0x1e8] sm:$0xff]
  %v76 = vld [vmem:[%s0 + $0x1f0] sm:$0xff]
  %v77 = vld [vmem:[%s0 + $0x1f8] sm:$0xff]
  %v78 = vld [vmem:[%s0 + $0x200] sm:$0xff]
  %v79 = vld [vmem:[%s0 + $0x208] sm:$0xff]
  %v80 = vld [vmem:[%s0 + $0x210] sm:$0xff]
  %v81 = vld [vmem:[%s0 + $0x218] sm:$0xff]
  %v82 = vld [vmem:[%s0 + $0x220] sm:$0xff]
  %v83 = vld [vmem:[%s0 + $0x228] sm:$0xff]
  %v84 = vld [vmem:[%s0 + $0x230] sm:$0xff]
  %v85 = vld [vmem:[%s0 + $0x238] sm:$0xff]
  %v86 = vld [vmem:[%s0 + $0x240] sm:$0xff]
  %v87 = vld [vmem:[%s0 + $0x248] sm:$0xff]
  %v88 = vld [vmem:[%s0 + $0x250] sm:$0xff]
  %v89 = vld [vmem:[%s0 + $0x258] sm:$0xff]
  %v90 = vld [vmem:[%s0 + $0x260] sm:$0xff]
  %v91 = vld [vmem:[%s0 + $0x268] sm:$0xff]
  %v92 = vld [vmem:[%s0 + $0x270] sm:$0xff]
  %v93 = vld [vmem:[%s0 + $0x278] sm:$0xff]
  %v94 = vld [vmem:[%s0 + $0x280] sm:$0xff]
  %v95 = vld [vmem:[%s0 + $0x288] sm:$0xff]
  %v96 = vld [vmem:[%s0 + $0x290] sm:$0xff]
  %v97 = vld [vmem:[%s0 + $0x298] sm:$0xff]
  %v98 = vld [vmem:[%s0 + $0x2a0] sm:$0xff]
  %v99 = vld [vmem:[%s0 + $0x2a8] sm:$0xff]
  %v100 = vld [vmem:[%s0 + $0x2b0] sm:$0xff]
  %v101 = vld [vmem:[%s0 + $0x2b8] sm:$0xff]
  %v102 = vld [vmem:[%s0 + $0x2c0] sm:$0xff]
  %v103 = vld [vmem:[%s0 + $0x2c8] sm:$0xff]
  %v104 = vld [vmem:[%s0 + $0x2d0] sm:$0xff]
  %v105 = vld [vmem:[%s0 + $0x2d8] sm:$0xff]
  %v106 = vld [vmem:[%s0 + $0x2e0] sm:$0xff]
  %v107 = vld [vmem:[%s0 + $0x2e8] sm:$0xff]
  %v108 = vld [vmem:[%s0 + $0x2f0] sm:$0xff]
  %v109 = vld [vmem:[%s0 + $0x2f8] sm:$0xff]
  %v110 = vld [vmem:[%s0 + $0x300] sm:$0xff]
  %v111 = vld [vmem:[%s0 + $0x308] sm:$0xff]
  %v112 = vld [vmem:[%s0 + $0x310] sm:$0xff]
  %v113 = vld [vmem:[%s0 + $0x318] sm:$0xff]
  %v114 = vld [vmem:[%s0 + $0x320] sm:$0xff]
  %v115 = vld [vmem:[%s0 + $0x328] sm:$0xff]
  %v116 = vld [vmem:[%s0 + $0x330] sm:$0xff]
  %v117 = vld [vmem:[%s0 + $0x338] sm:$0xff]
  %v118 = vld [vmem:[%s0 + $0x340] sm:$0xff]
  %v119 = vld [vmem:[%s0 + $0x348] sm:$0xff]
  %v120 = vld [vmem:[%s0 + $0x350] sm:$0xff]
  %v121 = vld [vmem:[%s0 + $0x358] sm:$0xff]
  %v122 = vld [vmem:[%s0 + $0x360] sm:$0xff]
  %v123 = vld [vmem:[%s0 + $0x368] sm:$0xff]
  %v124 = vld [vmem:[%s0 + $0x370] sm:$0xff]
  %v125 = vld [vmem:[%s0 + $0x378] sm:$0xff]
  %v126 = vld [vmem:[%s0 + $0x380] sm:$0xff]
  %v127 = vld [vmem:[%s0 + $0x388] sm:$0xff]
  %v128 = vld [vmem:[%s0 + $0x390] sm:$0xff]
  %v129 = vld [vmem:[%s0 + $0x398] sm:$0xff]
  %v130 = vld [vmem:[%s0 + $0x3a0] sm:$0xff]
  %v131 = vld [vmem:[%s0 + $0x3a8] sm:$0xff]
  %v132 = vld [vmem:[%s0 + $0x3b0] sm:$0xff]
  %v133 = vld [vmem:[%s0 + $0x3b8] sm:$0xff]
  %v134 = vld [vmem:[%s0 + $0x3c0] sm:$0xff]
  %v135 = vld [vmem:[%s0 + $0x3c8] sm:$0xff]
  %v136 = vld [vmem:[%s0 + $0x3d0] sm:$0xff]
  %v137 = vld [vmem:[%s0 + $0x3d8] sm:$0xff]
  %v138 = vld [vmem:[%s0 + $0x3e0] sm:$0xff]
  %v139 = vld [vmem:[%s0 + $0x3e8] sm:$0xff]
  %v140 = vld [vmem:[%s0 + $0x3f0] sm:$0xff]
  %v141 = vld [vmem:[%s0 + $0x3f8] sm:$0xff]
  %v142 = vunpack.c.l.bf16 %v14
  %v143 = vunpack.c.h.bf16 %v14
  %v144 = vunpack.c.l.bf16 %v15
  %v145 = vunpack.c.h.bf16 %v15
  %v146 = vunpack.c.l.bf16 %v16
  %v147 = vunpack.c.h.bf16 %v16
  %v148 = vunpack.c.l.bf16 %v17
  %v149 = vunpack.c.h.bf16 %v17
  %v150 = vunpack.c.l.bf16 %v18
  %v151 = vunpack.c.h.bf16 %v18
  %v152 = vunpack.c.l.bf16 %v19
  %v153 = vunpack.c.h.bf16 %v19
  %v154 = vunpack.c.l.bf16 %v20
  %v155 = vunpack.c.h.bf16 %v20
  %v156 = vunpack.c.l.bf16 %v21
  %v157 = vunpack.c.h.bf16 %v21
  %v158 = vunpack.c.l.bf16 %v22
  %v159 = vunpack.c.h.bf16 %v22
  %v160 = vunpack.c.l.bf16 %v23
  %v161 = vunpack.c.h.bf16 %v23
  %v162 = vunpack.c.l.bf16 %v24
  %v163 = vunpack.c.h.bf16 %v24
  %v164 = vunpack.c.l.bf16 %v25
  %v165 = vunpack.c.h.bf16 %v25
  %v166 = vunpack.c.l.bf16 %v26
  %v167 = vunpack.c.h.bf16 %v26
  %v168 = vunpack.c.l.bf16 %v27
  %v169 = vunpack.c.h.bf16 %v27
  %v170 = vunpack.c.l.bf16 %v28
  %v171 = vunpack.c.h.bf16 %v28
  %v172 = vunpack.c.l.bf16 %v29
  %v173 = vunpack.c.h.bf16 %v29
  %v174 = vunpack.c.l.bf16 %v30
  %v175 = vunpack.c.h.bf16 %v30
  %v176 = vunpack.c.l.bf16 %v31
  %v177 = vunpack.c.h.bf16 %v31
  %v178 = vunpack.c.l.bf16 %v32
  %v179 = vunpack.c.h.bf16 %v32
  %v180 = vunpack.c.l.bf16 %v33
  %v181 = vunpack.c.h.bf16 %v33
  %v182 = vunpack.c.l.bf16 %v34
  %v183 = vunpack.c.h.bf16 %v34
  %v184 = vunpack.c.l.bf16 %v35
  %v185 = vunpack.c.h.bf16 %v35
  %v186 = vunpack.c.l.bf16 %v36
  %v187 = vunpack.c.h.bf16 %v36
  %v188 = vunpack.c.l.bf16 %v37
  %v189 = vunpack.c.h.bf16 %v37
  %v190 = vunpack.c.l.bf16 %v38
  %v191 = vunpack.c.h.bf16 %v38
  %v192 = vunpack.c.l.bf16 %v39
  %v193 = vunpack.c.h.bf16 %v39
  %v194 = vunpack.c.l.bf16 %v40
  %v195 = vunpack.c.h.bf16 %v40
  %v196 = vunpack.c.l.bf16 %v41
  %v197 = vunpack.c.h.bf16 %v41
  %v198 = vunpack.c.l.bf16 %v42
  %v199 = vunpack.c.h.bf16 %v42
  %v200 = vunpack.c.l.bf16 %v43
  %v201 = vunpack.c.h.bf16 %v43
  %v202 = vunpack.c.l.bf16 %v44
  %v203 = vunpack.c.h.bf16 %v44
  %v204 = vunpack.c.l.bf16 %v45
  %v205 = vunpack.c.h.bf16 %v45
  %v206 = vunpack.c.l.bf16 %v46
  %v207 = vunpack.c.h.bf16 %v46
  %v208 = vunpack.c.l.bf16 %v47
  %v209 = vunpack.c.h.bf16 %v47
  %v210 = vunpack.c.l.bf16 %v48
  %v211 = vunpack.c.h.bf16 %v48
  %v212 = vunpack.c.l.bf16 %v49
  %v213 = vunpack.c.h.bf16 %v49
  %v214 = vunpack.c.l.bf16 %v50
  %v215 = vunpack.c.h.bf16 %v50
  %v216 = vunpack.c.l.bf16 %v51
  %v217 = vunpack.c.h.bf16 %v51
  %v218 = vunpack.c.l.bf16 %v52
  %v219 = vunpack.c.h.bf16 %v52
  %v220 = vunpack.c.l.bf16 %v53
  %v221 = vunpack.c.h.bf16 %v53
  %v222 = vunpack.c.l.bf16 %v54
  %v223 = vunpack.c.h.bf16 %v54
  %v224 = vunpack.c.l.bf16 %v55
  %v225 = vunpack.c.h.bf16 %v55
  %v226 = vunpack.c.l.bf16 %v56
  %v227 = vunpack.c.h.bf16 %v56
  %v228 = vunpack.c.l.bf16 %v57
  %v229 = vunpack.c.h.bf16 %v57
  %v230 = vunpack.c.l.bf16 %v58
  %v231 = vunpack.c.h.bf16 %v58
  %v232 = vunpack.c.l.bf16 %v59
  %v233 = vunpack.c.h.bf16 %v59
  %v234 = vunpack.c.l.bf16 %v60
  %v235 = vunpack.c.h.bf16 %v60
  %v236 = vunpack.c.l.bf16 %v61
  %v237 = vunpack.c.h.bf16 %v61
  %v238 = vunpack.c.l.bf16 %v62
  %v239 = vunpack.c.h.bf16 %v62
  %v240 = vunpack.c.l.bf16 %v63
  %v241 = vunpack.c.h.bf16 %v63
  %v242 = vunpack.c.l.bf16 %v64
  %v243 = vunpack.c.h.bf16 %v64
  %v244 = vunpack.c.l.bf16 %v65
  %v245 = vunpack.c.h.bf16 %v65
  %v246 = vunpack.c.l.bf16 %v66
  %v247 = vunpack.c.h.bf16 %v66
  %v248 = vunpack.c.l.bf16 %v67
  %v249 = vunpack.c.h.bf16 %v67
  %v250 = vunpack.c.l.bf16 %v68
  %v251 = vunpack.c.h.bf16 %v68
  %v252 = vunpack.c.l.bf16 %v69
  %v253 = vunpack.c.h.bf16 %v69
  %v254 = vunpack.c.l.bf16 %v70
  %v255 = vunpack.c.h.bf16 %v70
  %v256 = vunpack.c.l.bf16 %v71
  %v257 = vunpack.c.h.bf16 %v71
  %v258 = vunpack.c.l.bf16 %v72
  %v259 = vunpack.c.h.bf16 %v72
  %v260 = vunpack.c.l.bf16 %v73
  %v261 = vunpack.c.h.bf16 %v73
  %v262 = vunpack.c.l.bf16 %v74
  %v263 = vunpack.c.h.bf16 %v74
  %v264 = vunpack.c.l.bf16 %v75
  %v265 = vunpack.c.h.bf16 %v75
  %v266 = vunpack.c.l.bf16 %v76
  %v267 = vunpack.c.h.bf16 %v76
  %v268 = vunpack.c.l.bf16 %v77
  %v269 = vunpack.c.h.bf16 %v77
  %v270 = vunpack.c.l.bf16 %v78
  %v271 = vunpack.c.h.bf16 %v78
  %v272 = vunpack.c.l.bf16 %v79
  %v273 = vunpack.c.h.bf16 %v79
  %v274 = vunpack.c.l.bf16 %v80
  %v275 = vunpack.c.h.bf16 %v80
  %v276 = vunpack.c.l.bf16 %v81
  %v277 = vunpack.c.h.bf16 %v81
  %v278 = vunpack.c.l.bf16 %v82
  %v279 = vunpack.c.h.bf16 %v82
  %v280 = vunpack.c.l.bf16 %v83
  %v281 = vunpack.c.h.bf16 %v83
  %v282 = vunpack.c.l.bf16 %v84
  %v283 = vunpack.c.h.bf16 %v84
  %v284 = vunpack.c.l.bf16 %v85
  %v285 = vunpack.c.h.bf16 %v85
  %v286 = vunpack.c.l.bf16 %v86
  %v287 = vunpack.c.h.bf16 %v86
  %v288 = vunpack.c.l.bf16 %v87
  %v289 = vunpack.c.h.bf16 %v87
  %v290 = vunpack.c.l.bf16 %v88
  %v291 = vunpack.c.h.bf16 %v88
  %v292 = vunpack.c.l.bf16 %v89
  %v293 = vunpack.c.h.bf16 %v89
  %v294 = vunpack.c.l.bf16 %v90
  %v295 = vunpack.c.h.bf16 %v90
  %v296 = vunpack.c.l.bf16 %v91
  %v297 = vunpack.c.h.bf16 %v91
  %v298 = vunpack.c.l.bf16 %v92
  %v299 = vunpack.c.h.bf16 %v92
  %v300 = vunpack.c.l.bf16 %v93
  %v301 = vunpack.c.h.bf16 %v93
  %v302 = vunpack.c.l.bf16 %v94
  %v303 = vunpack.c.h.bf16 %v94
  %v304 = vunpack.c.l.bf16 %v95
  %v305 = vunpack.c.h.bf16 %v95
  %v306 = vunpack.c.l.bf16 %v96
  %v307 = vunpack.c.h.bf16 %v96
  %v308 = vunpack.c.l.bf16 %v97
  %v309 = vunpack.c.h.bf16 %v97
  %v310 = vunpack.c.l.bf16 %v98
  %v311 = vunpack.c.h.bf16 %v98
  %v312 = vunpack.c.l.bf16 %v99
  %v313 = vunpack.c.h.bf16 %v99
  %v314 = vunpack.c.l.bf16 %v100
  %v315 = vunpack.c.h.bf16 %v100
  %v316 = vunpack.c.l.bf16 %v101
  %v317 = vunpack.c.h.bf16 %v101
  %v318 = vunpack.c.l.bf16 %v102
  %v319 = vunpack.c.h.bf16 %v102
  %v320 = vunpack.c.l.bf16 %v103
  %v321 = vunpack.c.h.bf16 %v103
  %v322 = vunpack.c.l.bf16 %v104
  %v323 = vunpack.c.h.bf16 %v104
  %v324 = vunpack.c.l.bf16 %v105
  %v325 = vunpack.c.h.bf16 %v105
  %v326 = vunpack.c.l.bf16 %v106
  %v327 = vunpack.c.h.bf16 %v106
  %v328 = vunpack.c.l.bf16 %v107
  %v329 = vunpack.c.h.bf16 %v107
  %v330 = vunpack.c.l.bf16 %v108
  %v331 = vunpack.c.h.bf16 %v108
  %v332 = vunpack.c.l.bf16 %v109
  %v333 = vunpack.c.h.bf16 %v109
  %v334 = vunpack.c.l.bf16 %v110
  %v335 = vunpack.c.h.bf16 %v110
  %v336 = vunpack.c.l.bf16 %v111
  %v337 = vunpack.c.h.bf16 %v111
  %v338 = vunpack.c.l.bf16 %v112
  %v339 = vunpack.c.h.bf16 %v112
  %v340 = vunpack.c.l.bf16 %v113
  %v341 = vunpack.c.h.bf16 %v113
  %v342 = vunpack.c.l.bf16 %v114
  %v343 = vunpack.c.h.bf16 %v114
  %v344 = vunpack.c.l.bf16 %v115
  %v345 = vunpack.c.h.bf16 %v115
  %v346 = vunpack.c.l.bf16 %v116
  %v347 = vunpack.c.h.bf16 %v116
  %v348 = vunpack.c.l.bf16 %v117
  %v349 = vunpack.c.h.bf16 %v117
  %v350 = vunpack.c.l.bf16 %v118
  %v351 = vunpack.c.h.bf16 %v118
  %v352 = vunpack.c.l.bf16 %v119
  %v353 = vunpack.c.h.bf16 %v119
  %v354 = vunpack.c.l.bf16 %v120
  %v355 = vunpack.c.h.bf16 %v120
  %v356 = vunpack.c.l.bf16 %v121
  %v357 = vunpack.c.h.bf16 %v121
  %v358 = vunpack.c.l.bf16 %v122
  %v359 = vunpack.c.h.bf16 %v122
  %v360 = vunpack.c.l.bf16 %v123
  %v361 = vunpack.c.h.bf16 %v123
  %v362 = vunpack.c.l.bf16 %v124
  %v363 = vunpack.c.h.bf16 %v124
  %v364 = vunpack.c.l.bf16 %v125
  %v365 = vunpack.c.h.bf16 %v125
  %v366 = vunpack.c.l.bf16 %v126
  %v367 = vunpack.c.h.bf16 %v126
  %v368 = vunpack.c.l.bf16 %v127
  %v369 = vunpack.c.h.bf16 %v127
  %v370 = vunpack.c.l.bf16 %v128
  %v371 = vunpack.c.h.bf16 %v128
  %v372 = vunpack.c.l.bf16 %v129
  %v373 = vunpack.c.h.bf16 %v129
  %v374 = vunpack.c.l.bf16 %v130
  %v375 = vunpack.c.h.bf16 %v130
  %v376 = vunpack.c.l.bf16 %v131
  %v377 = vunpack.c.h.bf16 %v131
  %v378 = vunpack.c.l.bf16 %v132
  %v379 = vunpack.c.h.bf16 %v132
  %v380 = vunpack.c.l.bf16 %v133
  %v381 = vunpack.c.h.bf16 %v133
  %v382 = vunpack.c.l.bf16 %v134
  %v383 = vunpack.c.h.bf16 %v134
  %v384 = vunpack.c.l.bf16 %v135
  %v385 = vunpack.c.h.bf16 %v135
  %v386 = vunpack.c.l.bf16 %v136
  %v387 = vunpack.c.h.bf16 %v136
  %v388 = vunpack.c.l.bf16 %v137
  %v389 = vunpack.c.h.bf16 %v137
  %v390 = vunpack.c.l.bf16 %v138
  %v391 = vunpack.c.h.bf16 %v138
  %v392 = vunpack.c.l.bf16 %v139
  %v393 = vunpack.c.h.bf16 %v139
  %v394 = vunpack.c.l.bf16 %v140
  %v395 = vunpack.c.h.bf16 %v140
  %v396 = vunpack.c.l.bf16 %v141
  %v397 = vunpack.c.h.bf16 %v141
  %v398 = vld [vmem:[%s1] sm:$0x3]
  %v400 = vperm.slane %v398, 0
  %v401 = vperm.slane %v398, 1
  %v404 = vmul.f32 %v142, %v400
  %v405 = vmul.f32 %v143, %v401
  %v406 = vmul.f32 %v144, %v400
  %v407 = vmul.f32 %v145, %v401
  %v408 = vmul.f32 %v146, %v400
  %v409 = vmul.f32 %v147, %v401
  %v410 = vmul.f32 %v148, %v400
  %v411 = vmul.f32 %v149, %v401
  %v412 = vmul.f32 %v150, %v400
  %v413 = vmul.f32 %v151, %v401
  %v414 = vmul.f32 %v152, %v400
  %v415 = vmul.f32 %v153, %v401
  %v416 = vmul.f32 %v154, %v400
  %v417 = vmul.f32 %v155, %v401
  %v418 = vmul.f32 %v156, %v400
  %v419 = vmul.f32 %v157, %v401
  %v420 = vmul.f32 %v158, %v400
  %v421 = vmul.f32 %v159, %v401
  %v422 = vmul.f32 %v160, %v400
  %v423 = vmul.f32 %v161, %v401
  %v424 = vmul.f32 %v162, %v400
  %v425 = vmul.f32 %v163, %v401
  %v426 = vmul.f32 %v164, %v400
  %v427 = vmul.f32 %v165, %v401
  %v428 = vmul.f32 %v166, %v400
  %v429 = vmul.f32 %v167, %v401
  %v430 = vmul.f32 %v168, %v400
  %v431 = vmul.f32 %v169, %v401
  %v432 = vmul.f32 %v170, %v400
  %v433 = vmul.f32 %v171, %v401
  %v434 = vmul.f32 %v172, %v400
  %v435 = vmul.f32 %v173, %v401
  %v436 = vmul.f32 %v174, %v400
  %v437 = vmul.f32 %v175, %v401
  %v438 = vmul.f32 %v176, %v400
  %v439 = vmul.f32 %v177, %v401
  %v440 = vmul.f32 %v178, %v400
  %v441 = vmul.f32 %v179, %v401
  %v442 = vmul.f32 %v180, %v400
  %v443 = vmul.f32 %v181, %v401
  %v444 = vmul.f32 %v182, %v400
  %v445 = vmul.f32 %v183, %v401
  %v446 = vmul.f32 %v184, %v400
  %v447 = vmul.f32 %v185, %v401
  %v448 = vmul.f32 %v186, %v400
  %v449 = vmul.f32 %v187, %v401
  %v450 = vmul.f32 %v188, %v400
  %v451 = vmul.f32 %v189, %v401
  %v452 = vmul.f32 %v190, %v400
  %v453 = vmul.f32 %v191, %v401
  %v454 = vmul.f32 %v192, %v400
  %v455 = vmul.f32 %v193, %v401
  %v456 = vmul.f32 %v194, %v400
  %v457 = vmul.f32 %v195, %v401
  %v458 = vmul.f32 %v196, %v400
  %v459 = vmul.f32 %v197, %v401
  %v460 = vmul.f32 %v198, %v400
  %v461 = vmul.f32 %v199, %v401
  %v462 = vmul.f32 %v200, %v400
  %v463 = vmul.f32 %v201, %v401
  %v464 = vmul.f32 %v202, %v400
  %v465 = vmul.f32 %v203, %v401
  %v466 = vmul.f32 %v204, %v400
  %v467 = vmul.f32 %v205, %v401
  %v468 = vmul.f32 %v206, %v400
  %v469 = vmul.f32 %v207, %v401
  %v470 = vmul.f32 %v208, %v400
  %v471 = vmul.f32 %v209, %v401
  %v472 = vmul.f32 %v210, %v400
  %v473 = vmul.f32 %v211, %v401
  %v474 = vmul.f32 %v212, %v400
  %v475 = vmul.f32 %v213, %v401
  %v476 = vmul.f32 %v214, %v400
  %v477 = vmul.f32 %v215, %v401
  %v478 = vmul.f32 %v216, %v400
  %v479 = vmul.f32 %v217, %v401
  %v480 = vmul.f32 %v218, %v400
  %v481 = vmul.f32 %v219, %v401
  %v482 = vmul.f32 %v220, %v400
  %v483 = vmul.f32 %v221, %v401
  %v484 = vmul.f32 %v222, %v400
  %v485 = vmul.f32 %v223, %v401
  %v486 = vmul.f32 %v224, %v400
  %v487 = vmul.f32 %v225, %v401
  %v488 = vmul.f32 %v226, %v400
  %v489 = vmul.f32 %v227, %v401
  %v490 = vmul.f32 %v228, %v400
  %v491 = vmul.f32 %v229, %v401
  %v492 = vmul.f32 %v230, %v400
  %v493 = vmul.f32 %v231, %v401
  %v494 = vmul.f32 %v232, %v400
  %v495 = vmul.f32 %v233, %v401
  %v496 = vmul.f32 %v234, %v400
  %v497 = vmul.f32 %v235, %v401
  %v498 = vmul.f32 %v236, %v400
  %v499 = vmul.f32 %v237, %v401
  %v500 = vmul.f32 %v238, %v400
  %v501 = vmul.f32 %v239, %v401
  %v502 = vmul.f32 %v240, %v400
  %v503 = vmul.f32 %v241, %v401
  %v504 = vmul.f32 %v242, %v400
  %v505 = vmul.f32 %v243, %v401
  %v506 = vmul.f32 %v244, %v400
  %v507 = vmul.f32 %v245, %v401
  %v508 = vmul.f32 %v246, %v400
  %v509 = vmul.f32 %v247, %v401
  %v510 = vmul.f32 %v248, %v400
  %v511 = vmul.f32 %v249, %v401
  %v512 = vmul.f32 %v250, %v400
  %v513 = vmul.f32 %v251, %v401
  %v514 = vmul.f32 %v252, %v400
  %v515 = vmul.f32 %v253, %v401
  %v516 = vmul.f32 %v254, %v400
  %v517 = vmul.f32 %v255, %v401
  %v518 = vmul.f32 %v256, %v400
  %v519 = vmul.f32 %v257, %v401
  %v520 = vmul.f32 %v258, %v400
  %v521 = vmul.f32 %v259, %v401
  %v522 = vmul.f32 %v260, %v400
  %v523 = vmul.f32 %v261, %v401
  %v524 = vmul.f32 %v262, %v400
  %v525 = vmul.f32 %v263, %v401
  %v526 = vmul.f32 %v264, %v400
  %v527 = vmul.f32 %v265, %v401
  %v528 = vmul.f32 %v266, %v400
  %v529 = vmul.f32 %v267, %v401
  %v530 = vmul.f32 %v268, %v400
  %v531 = vmul.f32 %v269, %v401
  %v532 = vmul.f32 %v270, %v400
  %v533 = vmul.f32 %v271, %v401
  %v534 = vmul.f32 %v272, %v400
  %v535 = vmul.f32 %v273, %v401
  %v536 = vmul.f32 %v274, %v400
  %v537 = vmul.f32 %v275, %v401
  %v538 = vmul.f32 %v276, %v400
  %v539 = vmul.f32 %v277, %v401
  %v540 = vmul.f32 %v278, %v400
  %v541 = vmul.f32 %v279, %v401
  %v542 = vmul.f32 %v280, %v400
  %v543 = vmul.f32 %v281, %v401
  %v544 = vmul.f32 %v282, %v400
  %v545 = vmul.f32 %v283, %v401
  %v546 = vmul.f32 %v284, %v400
  %v547 = vmul.f32 %v285, %v401
  %v548 = vmul.f32 %v286, %v400
  %v549 = vmul.f32 %v287, %v401
  %v550 = vmul.f32 %v288, %v400
  %v551 = vmul.f32 %v289, %v401
  %v552 = vmul.f32 %v290, %v400
  %v553 = vmul.f32 %v291, %v401
  %v554 = vmul.f32 %v292, %v400
  %v555 = vmul.f32 %v293, %v401
  %v556 = vmul.f32 %v294, %v400
  %v557 = vmul.f32 %v295, %v401
  %v558 = vmul.f32 %v296, %v400
  %v559 = vmul.f32 %v297, %v401
  %v560 = vmul.f32 %v298, %v400
  %v561 = vmul.f32 %v299, %v401
  %v562 = vmul.f32 %v300, %v400
  %v563 = vmul.f32 %v301, %v401
  %v564 = vmul.f32 %v302, %v400
  %v565 = vmul.f32 %v303, %v401
  %v566 = vmul.f32 %v304, %v400
  %v567 = vmul.f32 %v305, %v401
  %v568 = vmul.f32 %v306, %v400
  %v569 = vmul.f32 %v307, %v401
  %v570 = vmul.f32 %v308, %v400
  %v571 = vmul.f32 %v309, %v401
  %v572 = vmul.f32 %v310, %v400
  %v573 = vmul.f32 %v311, %v401
  %v574 = vmul.f32 %v312, %v400
  %v575 = vmul.f32 %v313, %v401
  %v576 = vmul.f32 %v314, %v400
  %v577 = vmul.f32 %v315, %v401
  %v578 = vmul.f32 %v316, %v400
  %v579 = vmul.f32 %v317, %v401
  %v580 = vmul.f32 %v318, %v400
  %v581 = vmul.f32 %v319, %v401
  %v582 = vmul.f32 %v320, %v400
  %v583 = vmul.f32 %v321, %v401
  %v584 = vmul.f32 %v322, %v400
  %v585 = vmul.f32 %v323, %v401
  %v586 = vmul.f32 %v324, %v400
  %v587 = vmul.f32 %v325, %v401
  %v588 = vmul.f32 %v326, %v400
  %v589 = vmul.f32 %v327, %v401
  %v590 = vmul.f32 %v328, %v400
  %v591 = vmul.f32 %v329, %v401
  %v592 = vmul.f32 %v330, %v400
  %v593 = vmul.f32 %v331, %v401
  %v594 = vmul.f32 %v332, %v400
  %v595 = vmul.f32 %v333, %v401
  %v596 = vmul.f32 %v334, %v400
  %v597 = vmul.f32 %v335, %v401
  %v598 = vmul.f32 %v336, %v400
  %v599 = vmul.f32 %v337, %v401
  %v600 = vmul.f32 %v338, %v400
  %v601 = vmul.f32 %v339, %v401
  %v602 = vmul.f32 %v340, %v400
  %v603 = vmul.f32 %v341, %v401
  %v604 = vmul.f32 %v342, %v400
  %v605 = vmul.f32 %v343, %v401
  %v606 = vmul.f32 %v344, %v400
  %v607 = vmul.f32 %v345, %v401
  %v608 = vmul.f32 %v346, %v400
  %v609 = vmul.f32 %v347, %v401
  %v610 = vmul.f32 %v348, %v400
  %v611 = vmul.f32 %v349, %v401
  %v612 = vmul.f32 %v350, %v400
  %v613 = vmul.f32 %v351, %v401
  %v614 = vmul.f32 %v352, %v400
  %v615 = vmul.f32 %v353, %v401
  %v616 = vmul.f32 %v354, %v400
  %v617 = vmul.f32 %v355, %v401
  %v618 = vmul.f32 %v356, %v400
  %v619 = vmul.f32 %v357, %v401
  %v620 = vmul.f32 %v358, %v400
  %v621 = vmul.f32 %v359, %v401
  %v622 = vmul.f32 %v360, %v400
  %v623 = vmul.f32 %v361, %v401
  %v624 = vmul.f32 %v362, %v400
  %v625 = vmul.f32 %v363, %v401
  %v626 = vmul.f32 %v364, %v400
  %v627 = vmul.f32 %v365, %v401
  %v628 = vmul.f32 %v366, %v400
  %v629 = vmul.f32 %v367, %v401
  %v630 = vmul.f32 %v368, %v400
  %v631 = vmul.f32 %v369, %v401
  %v632 = vmul.f32 %v370, %v400
  %v633 = vmul.f32 %v371, %v401
  %v634 = vmul.f32 %v372, %v400
  %v635 = vmul.f32 %v373, %v401
  %v636 = vmul.f32 %v374, %v400
  %v637 = vmul.f32 %v375, %v401
  %v638 = vmul.f32 %v376, %v400
  %v639 = vmul.f32 %v377, %v401
  %v640 = vmul.f32 %v378, %v400
  %v641 = vmul.f32 %v379, %v401
  %v642 = vmul.f32 %v380, %v400
  %v643 = vmul.f32 %v381, %v401
  %v644 = vmul.f32 %v382, %v400
  %v645 = vmul.f32 %v383, %v401
  %v646 = vmul.f32 %v384, %v400
  %v647 = vmul.f32 %v385, %v401
  %v648 = vmul.f32 %v386, %v400
  %v649 = vmul.f32 %v387, %v401
  %v650 = vmul.f32 %v388, %v400
  %v651 = vmul.f32 %v389, %v401
  %v652 = vmul.f32 %v390, %v400
  %v653 = vmul.f32 %v391, %v401
  %v654 = vmul.f32 %v392, %v400
  %v655 = vmul.f32 %v393, %v401
  %v656 = vmul.f32 %v394, %v400
  %v657 = vmul.f32 %v395, %v401
  %v658 = vmul.f32 %v396, %v400
  %v659 = vmul.f32 %v397, %v401
  %v660 = vld [vmem:[%s2] sm:$0x3]
  %v662 = vperm.slane %v660, 0
  %v663 = vperm.slane %v660, 1
  %v666 = vadd.f32 %v404, %v662
  %v667 = vadd.f32 %v405, %v663
  %v668 = vadd.f32 %v406, %v662
  %v669 = vadd.f32 %v407, %v663
  %v670 = vadd.f32 %v408, %v662
  %v671 = vadd.f32 %v409, %v663
  %v672 = vadd.f32 %v410, %v662
  %v673 = vadd.f32 %v411, %v663
  %v674 = vadd.f32 %v412, %v662
  %v675 = vadd.f32 %v413, %v663
  %v676 = vadd.f32 %v414, %v662
  %v677 = vadd.f32 %v415, %v663
  %v678 = vadd.f32 %v416, %v662
  %v679 = vadd.f32 %v417, %v663
  %v680 = vadd.f32 %v418, %v662
  %v681 = vadd.f32 %v419, %v663
  %v682 = vadd.f32 %v420, %v662
  %v683 = vadd.f32 %v421, %v663
  %v684 = vadd.f32 %v422, %v662
  %v685 = vadd.f32 %v423, %v663
  %v686 = vadd.f32 %v424, %v662
  %v687 = vadd.f32 %v425, %v663
  %v688 = vadd.f32 %v426, %v662
  %v689 = vadd.f32 %v427, %v663
  %v690 = vadd.f32 %v428, %v662
  %v691 = vadd.f32 %v429, %v663
  %v692 = vadd.f32 %v430, %v662
  %v693 = vadd.f32 %v431, %v663
  %v694 = vadd.f32 %v432, %v662
  %v695 = vadd.f32 %v433, %v663
  %v696 = vadd.f32 %v434, %v662
  %v697 = vadd.f32 %v435, %v663
  %v698 = vadd.f32 %v436, %v662
  %v699 = vadd.f32 %v437, %v663
  %v700 = vadd.f32 %v438, %v662
  %v701 = vadd.f32 %v439, %v663
  %v702 = vadd.f32 %v440, %v662
  %v703 = vadd.f32 %v441, %v663
  %v704 = vadd.f32 %v442, %v662
  %v705 = vadd.f32 %v443, %v663
  %v706 = vadd.f32 %v444, %v662
  %v707 = vadd.f32 %v445, %v663
  %v708 = vadd.f32 %v446, %v662
  %v709 = vadd.f32 %v447, %v663
  %v710 = vadd.f32 %v448, %v662
  %v711 = vadd.f32 %v449, %v663
  %v712 = vadd.f32 %v450, %v662
  %v713 = vadd.f32 %v451, %v663
  %v714 = vadd.f32 %v452, %v662
  %v715 = vadd.f32 %v453, %v663
  %v716 = vadd.f32 %v454, %v662
  %v717 = vadd.f32 %v455, %v663
  %v718 = vadd.f32 %v456, %v662
  %v719 = vadd.f32 %v457, %v663
  %v720 = vadd.f32 %v458, %v662
  %v721 = vadd.f32 %v459, %v663
  %v722 = vadd.f32 %v460, %v662
  %v723 = vadd.f32 %v461, %v663
  %v724 = vadd.f32 %v462, %v662
  %v725 = vadd.f32 %v463, %v663
  %v726 = vadd.f32 %v464, %v662
  %v727 = vadd.f32 %v465, %v663
  %v728 = vadd.f32 %v466, %v662
  %v729 = vadd.f32 %v467, %v663
  %v730 = vadd.f32 %v468, %v662
  %v731 = vadd.f32 %v469, %v663
  %v732 = vadd.f32 %v470, %v662
  %v733 = vadd.f32 %v471, %v663
  %v734 = vadd.f32 %v472, %v662
  %v735 = vadd.f32 %v473, %v663
  %v736 = vadd.f32 %v474, %v662
  %v737 = vadd.f32 %v475, %v663
  %v738 = vadd.f32 %v476, %v662
  %v739 = vadd.f32 %v477, %v663
  %v740 = vadd.f32 %v478, %v662
  %v741 = vadd.f32 %v479, %v663
  %v742 = vadd.f32 %v480, %v662
  %v743 = vadd.f32 %v481, %v663
  %v744 = vadd.f32 %v482, %v662
  %v745 = vadd.f32 %v483, %v663
  %v746 = vadd.f32 %v484, %v662
  %v747 = vadd.f32 %v485, %v663
  %v748 = vadd.f32 %v486, %v662
  %v749 = vadd.f32 %v487, %v663
  %v750 = vadd.f32 %v488, %v662
  %v751 = vadd.f32 %v489, %v663
  %v752 = vadd.f32 %v490, %v662
  %v753 = vadd.f32 %v491, %v663
  %v754 = vadd.f32 %v492, %v662
  %v755 = vadd.f32 %v493, %v663
  %v756 = vadd.f32 %v494, %v662
  %v757 = vadd.f32 %v495, %v663
  %v758 = vadd.f32 %v496, %v662
  %v759 = vadd.f32 %v497, %v663
  %v760 = vadd.f32 %v498, %v662
  %v761 = vadd.f32 %v499, %v663
  %v762 = vadd.f32 %v500, %v662
  %v763 = vadd.f32 %v501, %v663
  %v764 = vadd.f32 %v502, %v662
  %v765 = vadd.f32 %v503, %v663
  %v766 = vadd.f32 %v504, %v662
  %v767 = vadd.f32 %v505, %v663
  %v768 = vadd.f32 %v506, %v662
  %v769 = vadd.f32 %v507, %v663
  %v770 = vadd.f32 %v508, %v662
  %v771 = vadd.f32 %v509, %v663
  %v772 = vadd.f32 %v510, %v662
  %v773 = vadd.f32 %v511, %v663
  %v774 = vadd.f32 %v512, %v662
  %v775 = vadd.f32 %v513, %v663
  %v776 = vadd.f32 %v514, %v662
  %v777 = vadd.f32 %v515, %v663
  %v778 = vadd.f32 %v516, %v662
  %v779 = vadd.f32 %v517, %v663
  %v780 = vadd.f32 %v518, %v662
  %v781 = vadd.f32 %v519, %v663
  %v782 = vadd.f32 %v520, %v662
  %v783 = vadd.f32 %v521, %v663
  %v784 = vadd.f32 %v522, %v662
  %v785 = vadd.f32 %v523, %v663
  %v786 = vadd.f32 %v524, %v662
  %v787 = vadd.f32 %v525, %v663
  %v788 = vadd.f32 %v526, %v662
  %v789 = vadd.f32 %v527, %v663
  %v790 = vadd.f32 %v528, %v662
  %v791 = vadd.f32 %v529, %v663
  %v792 = vadd.f32 %v530, %v662
  %v793 = vadd.f32 %v531, %v663
  %v794 = vadd.f32 %v532, %v662
  %v795 = vadd.f32 %v533, %v663
  %v796 = vadd.f32 %v534, %v662
  %v797 = vadd.f32 %v535, %v663
  %v798 = vadd.f32 %v536, %v662
  %v799 = vadd.f32 %v537, %v663
  %v800 = vadd.f32 %v538, %v662
  %v801 = vadd.f32 %v539, %v663
  %v802 = vadd.f32 %v540, %v662
  %v803 = vadd.f32 %v541, %v663
  %v804 = vadd.f32 %v542, %v662
  %v805 = vadd.f32 %v543, %v663
  %v806 = vadd.f32 %v544, %v662
  %v807 = vadd.f32 %v545, %v663
  %v808 = vadd.f32 %v546, %v662
  %v809 = vadd.f32 %v547, %v663
  %v810 = vadd.f32 %v548, %v662
  %v811 = vadd.f32 %v549, %v663
  %v812 = vadd.f32 %v550, %v662
  %v813 = vadd.f32 %v551, %v663
  %v814 = vadd.f32 %v552, %v662
  %v815 = vadd.f32 %v553, %v663
  %v816 = vadd.f32 %v554, %v662
  %v817 = vadd.f32 %v555, %v663
  %v818 = vadd.f32 %v556, %v662
  %v819 = vadd.f32 %v557, %v663
  %v820 = vadd.f32 %v558, %v662
  %v821 = vadd.f32 %v559, %v663
  %v822 = vadd.f32 %v560, %v662
  %v823 = vadd.f32 %v561, %v663
  %v824 = vadd.f32 %v562, %v662
  %v825 = vadd.f32 %v563, %v663
  %v826 = vadd.f32 %v564, %v662
  %v827 = vadd.f32 %v565, %v663
  %v828 = vadd.f32 %v566, %v662
  %v829 = vadd.f32 %v567, %v663
  %v830 = vadd.f32 %v568, %v662
  %v831 = vadd.f32 %v569, %v663
  %v832 = vadd.f32 %v570, %v662
  %v833 = vadd.f32 %v571, %v663
  %v834 = vadd.f32 %v572, %v662
  %v835 = vadd.f32 %v573, %v663
  %v836 = vadd.f32 %v574, %v662
  %v837 = vadd.f32 %v575, %v663
  %v838 = vadd.f32 %v576, %v662
  %v839 = vadd.f32 %v577, %v663
  %v840 = vadd.f32 %v578, %v662
  %v841 = vadd.f32 %v579, %v663
  %v842 = vadd.f32 %v580, %v662
  %v843 = vadd.f32 %v581, %v663
  %v844 = vadd.f32 %v582, %v662
  %v845 = vadd.f32 %v583, %v663
  %v846 = vadd.f32 %v584, %v662
  %v847 = vadd.f32 %v585, %v663
  %v848 = vadd.f32 %v586, %v662
  %v849 = vadd.f32 %v587, %v663
  %v850 = vadd.f32 %v588, %v662
  %v851 = vadd.f32 %v589, %v663
  %v852 = vadd.f32 %v590, %v662
  %v853 = vadd.f32 %v591, %v663
  %v854 = vadd.f32 %v592, %v662
  %v855 = vadd.f32 %v593, %v663
  %v856 = vadd.f32 %v594, %v662
  %v857 = vadd.f32 %v595, %v663
  %v858 = vadd.f32 %v596, %v662
  %v859 = vadd.f32 %v597, %v663
  %v860 = vadd.f32 %v598, %v662
  %v861 = vadd.f32 %v599, %v663
  %v862 = vadd.f32 %v600, %v662
  %v863 = vadd.f32 %v601, %v663
  %v864 = vadd.f32 %v602, %v662
  %v865 = vadd.f32 %v603, %v663
  %v866 = vadd.f32 %v604, %v662
  %v867 = vadd.f32 %v605, %v663
  %v868 = vadd.f32 %v606, %v662
  %v869 = vadd.f32 %v607, %v663
  %v870 = vadd.f32 %v608, %v662
  %v871 = vadd.f32 %v609, %v663
  %v872 = vadd.f32 %v610, %v662
  %v873 = vadd.f32 %v611, %v663
  %v874 = vadd.f32 %v612, %v662
  %v875 = vadd.f32 %v613, %v663
  %v876 = vadd.f32 %v614, %v662
  %v877 = vadd.f32 %v615, %v663
  %v878 = vadd.f32 %v616, %v662
  %v879 = vadd.f32 %v617, %v663
  %v880 = vadd.f32 %v618, %v662
  %v881 = vadd.f32 %v619, %v663
  %v882 = vadd.f32 %v620, %v662
  %v883 = vadd.f32 %v621, %v663
  %v884 = vadd.f32 %v622, %v662
  %v885 = vadd.f32 %v623, %v663
  %v886 = vadd.f32 %v624, %v662
  %v887 = vadd.f32 %v625, %v663
  %v888 = vadd.f32 %v626, %v662
  %v889 = vadd.f32 %v627, %v663
  %v890 = vadd.f32 %v628, %v662
  %v891 = vadd.f32 %v629, %v663
  %v892 = vadd.f32 %v630, %v662
  %v893 = vadd.f32 %v631, %v663
  %v894 = vadd.f32 %v632, %v662
  %v895 = vadd.f32 %v633, %v663
  %v896 = vadd.f32 %v634, %v662
  %v897 = vadd.f32 %v635, %v663
  %v898 = vadd.f32 %v636, %v662
  %v899 = vadd.f32 %v637, %v663
  %v900 = vadd.f32 %v638, %v662
  %v901 = vadd.f32 %v639, %v663
  %v902 = vadd.f32 %v640, %v662
  %v903 = vadd.f32 %v641, %v663
  %v904 = vadd.f32 %v642, %v662
  %v905 = vadd.f32 %v643, %v663
  %v906 = vadd.f32 %v644, %v662
  %v907 = vadd.f32 %v645, %v663
  %v908 = vadd.f32 %v646, %v662
  %v909 = vadd.f32 %v647, %v663
  %v910 = vadd.f32 %v648, %v662
  %v911 = vadd.f32 %v649, %v663
  %v912 = vadd.f32 %v650, %v662
  %v913 = vadd.f32 %v651, %v663
  %v914 = vadd.f32 %v652, %v662
  %v915 = vadd.f32 %v653, %v663
  %v916 = vadd.f32 %v654, %v662
  %v917 = vadd.f32 %v655, %v663
  %v918 = vadd.f32 %v656, %v662
  %v919 = vadd.f32 %v657, %v663
  %v920 = vadd.f32 %v658, %v662
  %v921 = vadd.f32 %v659, %v663
  %vm922 = vcmp.ge.f32.partialorder %v666, 0.0
  %vm923 = vcmp.ge.f32.partialorder %v667, 0.0
  %vm924 = vcmp.ge.f32.partialorder %v668, 0.0
  %vm925 = vcmp.ge.f32.partialorder %v669, 0.0
  %vm926 = vcmp.ge.f32.partialorder %v670, 0.0
  %vm927 = vcmp.ge.f32.partialorder %v671, 0.0
  %vm928 = vcmp.ge.f32.partialorder %v672, 0.0
  %vm929 = vcmp.ge.f32.partialorder %v673, 0.0
  %vm930 = vcmp.ge.f32.partialorder %v674, 0.0
  %vm931 = vcmp.ge.f32.partialorder %v675, 0.0
  %vm932 = vcmp.ge.f32.partialorder %v676, 0.0
  %vm933 = vcmp.ge.f32.partialorder %v677, 0.0
  %vm934 = vcmp.ge.f32.partialorder %v678, 0.0
  %vm935 = vcmp.ge.f32.partialorder %v679, 0.0
  %vm936 = vcmp.ge.f32.partialorder %v680, 0.0
  %vm937 = vcmp.ge.f32.partialorder %v681, 0.0
  %vm938 = vcmp.ge.f32.partialorder %v682, 0.0
  %vm939 = vcmp.ge.f32.partialorder %v683, 0.0
  %vm940 = vcmp.ge.f32.partialorder %v684, 0.0
  %vm941 = vcmp.ge.f32.partialorder %v685, 0.0
  %vm942 = vcmp.ge.f32.partialorder %v686, 0.0
  %vm943 = vcmp.ge.f32.partialorder %v687, 0.0
  %vm944 = vcmp.ge.f32.partialorder %v688, 0.0
  %vm945 = vcmp.ge.f32.partialorder %v689, 0.0
  %vm946 = vcmp.ge.f32.partialorder %v690, 0.0
  %vm947 = vcmp.ge.f32.partialorder %v691, 0.0
  %vm948 = vcmp.ge.f32.partialorder %v692, 0.0
  %vm949 = vcmp.ge.f32.partialorder %v693, 0.0
  %vm950 = vcmp.ge.f32.partialorder %v694, 0.0
  %vm951 = vcmp.ge.f32.partialorder %v695, 0.0
  %vm952 = vcmp.ge.f32.partialorder %v696, 0.0
  %vm953 = vcmp.ge.f32.partialorder %v697, 0.0
  %vm954 = vcmp.ge.f32.partialorder %v698, 0.0
  %vm955 = vcmp.ge.f32.partialorder %v699, 0.0
  %vm956 = vcmp.ge.f32.partialorder %v700, 0.0
  %vm957 = vcmp.ge.f32.partialorder %v701, 0.0
  %vm958 = vcmp.ge.f32.partialorder %v702, 0.0
  %vm959 = vcmp.ge.f32.partialorder %v703, 0.0
  %vm960 = vcmp.ge.f32.partialorder %v704, 0.0
  %vm961 = vcmp.ge.f32.partialorder %v705, 0.0
  %vm962 = vcmp.ge.f32.partialorder %v706, 0.0
  %vm963 = vcmp.ge.f32.partialorder %v707, 0.0
  %vm964 = vcmp.ge.f32.partialorder %v708, 0.0
  %vm965 = vcmp.ge.f32.partialorder %v709, 0.0
  %vm966 = vcmp.ge.f32.partialorder %v710, 0.0
  %vm967 = vcmp.ge.f32.partialorder %v711, 0.0
  %vm968 = vcmp.ge.f32.partialorder %v712, 0.0
  %vm969 = vcmp.ge.f32.partialorder %v713, 0.0
  %vm970 = vcmp.ge.f32.partialorder %v714, 0.0
  %vm971 = vcmp.ge.f32.partialorder %v715, 0.0
  %vm972 = vcmp.ge.f32.partialorder %v716, 0.0
  %vm973 = vcmp.ge.f32.partialorder %v717, 0.0
  %vm974 = vcmp.ge.f32.partialorder %v718, 0.0
  %vm975 = vcmp.ge.f32.partialorder %v719, 0.0
  %vm976 = vcmp.ge.f32.partialorder %v720, 0.0
  %vm977 = vcmp.ge.f32.partialorder %v721, 0.0
  %vm978 = vcmp.ge.f32.partialorder %v722, 0.0
  %vm979 = vcmp.ge.f32.partialorder %v723, 0.0
  %vm980 = vcmp.ge.f32.partialorder %v724, 0.0
  %vm981 = vcmp.ge.f32.partialorder %v725, 0.0
  %vm982 = vcmp.ge.f32.partialorder %v726, 0.0
  %vm983 = vcmp.ge.f32.partialorder %v727, 0.0
  %vm984 = vcmp.ge.f32.partialorder %v728, 0.0
  %vm985 = vcmp.ge.f32.partialorder %v729, 0.0
  %vm986 = vcmp.ge.f32.partialorder %v730, 0.0
  %vm987 = vcmp.ge.f32.partialorder %v731, 0.0
  %vm988 = vcmp.ge.f32.partialorder %v732, 0.0
  %vm989 = vcmp.ge.f32.partialorder %v733, 0.0
  %vm990 = vcmp.ge.f32.partialorder %v734, 0.0
  %vm991 = vcmp.ge.f32.partialorder %v735, 0.0
  %vm992 = vcmp.ge.f32.partialorder %v736, 0.0
  %vm993 = vcmp.ge.f32.partialorder %v737, 0.0
  %vm994 = vcmp.ge.f32.partialorder %v738, 0.0
  %vm995 = vcmp.ge.f32.partialorder %v739, 0.0
  %vm996 = vcmp.ge.f32.partialorder %v740, 0.0
  %vm997 = vcmp.ge.f32.partialorder %v741, 0.0
  %vm998 = vcmp.ge.f32.partialorder %v742, 0.0
  %vm999 = vcmp.ge.f32.partialorder %v743, 0.0
  %vm1000 = vcmp.ge.f32.partialorder %v744, 0.0
  %vm1001 = vcmp.ge.f32.partialorder %v745, 0.0
  %vm1002 = vcmp.ge.f32.partialorder %v746, 0.0
  %vm1003 = vcmp.ge.f32.partialorder %v747, 0.0
  %vm1004 = vcmp.ge.f32.partialorder %v748, 0.0
  %vm1005 = vcmp.ge.f32.partialorder %v749, 0.0
  %vm1006 = vcmp.ge.f32.partialorder %v750, 0.0
  %vm1007 = vcmp.ge.f32.partialorder %v751, 0.0
  %vm1008 = vcmp.ge.f32.partialorder %v752, 0.0
  %vm1009 = vcmp.ge.f32.partialorder %v753, 0.0
  %vm1010 = vcmp.ge.f32.partialorder %v754, 0.0
  %vm1011 = vcmp.ge.f32.partialorder %v755, 0.0
  %vm1012 = vcmp.ge.f32.partialorder %v756, 0.0
  %vm1013 = vcmp.ge.f32.partialorder %v757, 0.0
  %vm1014 = vcmp.ge.f32.partialorder %v758, 0.0
  %vm1015 = vcmp.ge.f32.partialorder %v759, 0.0
  %vm1016 = vcmp.ge.f32.partialorder %v760, 0.0
  %vm1017 = vcmp.ge.f32.partialorder %v761, 0.0
  %vm1018 = vcmp.ge.f32.partialorder %v762, 0.0
  %vm1019 = vcmp.ge.f32.partialorder %v763, 0.0
  %vm1020 = vcmp.ge.f32.partialorder %v764, 0.0
  %vm1021 = vcmp.ge.f32.partialorder %v765, 0.0
  %vm1022 = vcmp.ge.f32.partialorder %v766, 0.0
  %vm1023 = vcmp.ge.f32.partialorder %v767, 0.0
  %vm1024 = vcmp.ge.f32.partialorder %v768, 0.0
  %vm1025 = vcmp.ge.f32.partialorder %v769, 0.0
  %vm1026 = vcmp.ge.f32.partialorder %v770, 0.0
  %vm1027 = vcmp.ge.f32.partialorder %v771, 0.0
  %vm1028 = vcmp.ge.f32.partialorder %v772, 0.0
  %vm1029 = vcmp.ge.f32.partialorder %v773, 0.0
  %vm1030 = vcmp.ge.f32.partialorder %v774, 0.0
  %vm1031 = vcmp.ge.f32.partialorder %v775, 0.0
  %vm1032 = vcmp.ge.f32.partialorder %v776, 0.0
  %vm1033 = vcmp.ge.f32.partialorder %v777, 0.0
  %vm1034 = vcmp.ge.f32.partialorder %v778, 0.0
  %vm1035 = vcmp.ge.f32.partialorder %v779, 0.0
  %vm1036 = vcmp.ge.f32.partialorder %v780, 0.0
  %vm1037 = vcmp.ge.f32.partialorder %v781, 0.0
  %vm1038 = vcmp.ge.f32.partialorder %v782, 0.0
  %vm1039 = vcmp.ge.f32.partialorder %v783, 0.0
  %vm1040 = vcmp.ge.f32.partialorder %v784, 0.0
  %vm1041 = vcmp.ge.f32.partialorder %v785, 0.0
  %vm1042 = vcmp.ge.f32.partialorder %v786, 0.0
  %vm1043 = vcmp.ge.f32.partialorder %v787, 0.0
  %vm1044 = vcmp.ge.f32.partialorder %v788, 0.0
  %vm1045 = vcmp.ge.f32.partialorder %v789, 0.0
  %vm1046 = vcmp.ge.f32.partialorder %v790, 0.0
  %vm1047 = vcmp.ge.f32.partialorder %v791, 0.0
  %vm1048 = vcmp.ge.f32.partialorder %v792, 0.0
  %vm1049 = vcmp.ge.f32.partialorder %v793, 0.0
  %vm1050 = vcmp.ge.f32.partialorder %v794, 0.0
  %vm1051 = vcmp.ge.f32.partialorder %v795, 0.0
  %vm1052 = vcmp.ge.f32.partialorder %v796, 0.0
  %vm1053 = vcmp.ge.f32.partialorder %v797, 0.0
  %vm1054 = vcmp.ge.f32.partialorder %v798, 0.0
  %vm1055 = vcmp.ge.f32.partialorder %v799, 0.0
  %vm1056 = vcmp.ge.f32.partialorder %v800, 0.0
  %vm1057 = vcmp.ge.f32.partialorder %v801, 0.0
  %vm1058 = vcmp.ge.f32.partialorder %v802, 0.0
  %vm1059 = vcmp.ge.f32.partialorder %v803, 0.0
  %vm1060 = vcmp.ge.f32.partialorder %v804, 0.0
  %vm1061 = vcmp.ge.f32.partialorder %v805, 0.0
  %vm1062 = vcmp.ge.f32.partialorder %v806, 0.0
  %vm1063 = vcmp.ge.f32.partialorder %v807, 0.0
  %vm1064 = vcmp.ge.f32.partialorder %v808, 0.0
  %vm1065 = vcmp.ge.f32.partialorder %v809, 0.0
  %vm1066 = vcmp.ge.f32.partialorder %v810, 0.0
  %vm1067 = vcmp.ge.f32.partialorder %v811, 0.0
  %vm1068 = vcmp.ge.f32.partialorder %v812, 0.0
  %vm1069 = vcmp.ge.f32.partialorder %v813, 0.0
  %vm1070 = vcmp.ge.f32.partialorder %v814, 0.0
  %vm1071 = vcmp.ge.f32.partialorder %v815, 0.0
  %vm1072 = vcmp.ge.f32.partialorder %v816, 0.0
  %vm1073 = vcmp.ge.f32.partialorder %v817, 0.0
  %vm1074 = vcmp.ge.f32.partialorder %v818, 0.0
  %vm1075 = vcmp.ge.f32.partialorder %v819, 0.0
  %vm1076 = vcmp.ge.f32.partialorder %v820, 0.0
  %vm1077 = vcmp.ge.f32.partialorder %v821, 0.0
  %vm1078 = vcmp.ge.f32.partialorder %v822, 0.0
  %vm1079 = vcmp.ge.f32.partialorder %v823, 0.0
  %vm1080 = vcmp.ge.f32.partialorder %v824, 0.0
  %vm1081 = vcmp.ge.f32.partialorder %v825, 0.0
  %vm1082 = vcmp.ge.f32.partialorder %v826, 0.0
  %vm1083 = vcmp.ge.f32.partialorder %v827, 0.0
  %vm1084 = vcmp.ge.f32.partialorder %v828, 0.0
  %vm1085 = vcmp.ge.f32.partialorder %v829, 0.0
  %vm1086 = vcmp.ge.f32.partialorder %v830, 0.0
  %vm1087 = vcmp.ge.f32.partialorder %v831, 0.0
  %vm1088 = vcmp.ge.f32.partialorder %v832, 0.0
  %vm1089 = vcmp.ge.f32.partialorder %v833, 0.0
  %vm1090 = vcmp.ge.f32.partialorder %v834, 0.0
  %vm1091 = vcmp.ge.f32.partialorder %v835, 0.0
  %vm1092 = vcmp.ge.f32.partialorder %v836, 0.0
  %vm1093 = vcmp.ge.f32.partialorder %v837, 0.0
  %vm1094 = vcmp.ge.f32.partialorder %v838, 0.0
  %vm1095 = vcmp.ge.f32.partialorder %v839, 0.0
  %vm1096 = vcmp.ge.f32.partialorder %v840, 0.0
  %vm1097 = vcmp.ge.f32.partialorder %v841, 0.0
  %vm1098 = vcmp.ge.f32.partialorder %v842, 0.0
  %vm1099 = vcmp.ge.f32.partialorder %v843, 0.0
  %vm1100 = vcmp.ge.f32.partialorder %v844, 0.0
  %vm1101 = vcmp.ge.f32.partialorder %v845, 0.0
  %vm1102 = vcmp.ge.f32.partialorder %v846, 0.0
  %vm1103 = vcmp.ge.f32.partialorder %v847, 0.0
  %vm1104 = vcmp.ge.f32.partialorder %v848, 0.0
  %vm1105 = vcmp.ge.f32.partialorder %v849, 0.0
  %vm1106 = vcmp.ge.f32.partialorder %v850, 0.0
  %vm1107 = vcmp.ge.f32.partialorder %v851, 0.0
  %vm1108 = vcmp.ge.f32.partialorder %v852, 0.0
  %vm1109 = vcmp.ge.f32.partialorder %v853, 0.0
  %vm1110 = vcmp.ge.f32.partialorder %v854, 0.0
  %vm1111 = vcmp.ge.f32.partialorder %v855, 0.0
  %vm1112 = vcmp.ge.f32.partialorder %v856, 0.0
  %vm1113 = vcmp.ge.f32.partialorder %v857, 0.0
  %vm1114 = vcmp.ge.f32.partialorder %v858, 0.0
  %vm1115 = vcmp.ge.f32.partialorder %v859, 0.0
  %vm1116 = vcmp.ge.f32.partialorder %v860, 0.0
  %vm1117 = vcmp.ge.f32.partialorder %v861, 0.0
  %vm1118 = vcmp.ge.f32.partialorder %v862, 0.0
  %vm1119 = vcmp.ge.f32.partialorder %v863, 0.0
  %vm1120 = vcmp.ge.f32.partialorder %v864, 0.0
  %vm1121 = vcmp.ge.f32.partialorder %v865, 0.0
  %vm1122 = vcmp.ge.f32.partialorder %v866, 0.0
  %vm1123 = vcmp.ge.f32.partialorder %v867, 0.0
  %vm1124 = vcmp.ge.f32.partialorder %v868, 0.0
  %vm1125 = vcmp.ge.f32.partialorder %v869, 0.0
  %vm1126 = vcmp.ge.f32.partialorder %v870, 0.0
  %vm1127 = vcmp.ge.f32.partialorder %v871, 0.0
  %vm1128 = vcmp.ge.f32.partialorder %v872, 0.0
  %vm1129 = vcmp.ge.f32.partialorder %v873, 0.0
  %vm1130 = vcmp.ge.f32.partialorder %v874, 0.0
  %vm1131 = vcmp.ge.f32.partialorder %v875, 0.0
  %vm1132 = vcmp.ge.f32.partialorder %v876, 0.0
  %vm1133 = vcmp.ge.f32.partialorder %v877, 0.0
  %vm1134 = vcmp.ge.f32.partialorder %v878, 0.0
  %vm1135 = vcmp.ge.f32.partialorder %v879, 0.0
  %vm1136 = vcmp.ge.f32.partialorder %v880, 0.0
  %vm1137 = vcmp.ge.f32.partialorder %v881, 0.0
  %vm1138 = vcmp.ge.f32.partialorder %v882, 0.0
  %vm1139 = vcmp.ge.f32.partialorder %v883, 0.0
  %vm1140 = vcmp.ge.f32.partialorder %v884, 0.0
  %vm1141 = vcmp.ge.f32.partialorder %v885, 0.0
  %vm1142 = vcmp.ge.f32.partialorder %v886, 0.0
  %vm1143 = vcmp.ge.f32.partialorder %v887, 0.0
  %vm1144 = vcmp.ge.f32.partialorder %v888, 0.0
  %vm1145 = vcmp.ge.f32.partialorder %v889, 0.0
  %vm1146 = vcmp.ge.f32.partialorder %v890, 0.0
  %vm1147 = vcmp.ge.f32.partialorder %v891, 0.0
  %vm1148 = vcmp.ge.f32.partialorder %v892, 0.0
  %vm1149 = vcmp.ge.f32.partialorder %v893, 0.0
  %vm1150 = vcmp.ge.f32.partialorder %v894, 0.0
  %vm1151 = vcmp.ge.f32.partialorder %v895, 0.0
  %vm1152 = vcmp.ge.f32.partialorder %v896, 0.0
  %vm1153 = vcmp.ge.f32.partialorder %v897, 0.0
  %vm1154 = vcmp.ge.f32.partialorder %v898, 0.0
  %vm1155 = vcmp.ge.f32.partialorder %v899, 0.0
  %vm1156 = vcmp.ge.f32.partialorder %v900, 0.0
  %vm1157 = vcmp.ge.f32.partialorder %v901, 0.0
  %vm1158 = vcmp.ge.f32.partialorder %v902, 0.0
  %vm1159 = vcmp.ge.f32.partialorder %v903, 0.0
  %vm1160 = vcmp.ge.f32.partialorder %v904, 0.0
  %vm1161 = vcmp.ge.f32.partialorder %v905, 0.0
  %vm1162 = vcmp.ge.f32.partialorder %v906, 0.0
  %vm1163 = vcmp.ge.f32.partialorder %v907, 0.0
  %vm1164 = vcmp.ge.f32.partialorder %v908, 0.0
  %vm1165 = vcmp.ge.f32.partialorder %v909, 0.0
  %vm1166 = vcmp.ge.f32.partialorder %v910, 0.0
  %vm1167 = vcmp.ge.f32.partialorder %v911, 0.0
  %vm1168 = vcmp.ge.f32.partialorder %v912, 0.0
  %vm1169 = vcmp.ge.f32.partialorder %v913, 0.0
  %vm1170 = vcmp.ge.f32.partialorder %v914, 0.0
  %vm1171 = vcmp.ge.f32.partialorder %v915, 0.0
  %vm1172 = vcmp.ge.f32.partialorder %v916, 0.0
  %vm1173 = vcmp.ge.f32.partialorder %v917, 0.0
  %vm1174 = vcmp.ge.f32.partialorder %v918, 0.0
  %vm1175 = vcmp.ge.f32.partialorder %v919, 0.0
  %vm1176 = vcmp.ge.f32.partialorder %v920, 0.0
  %vm1177 = vcmp.ge.f32.partialorder %v921, 0.0
  %v1178 = vmul.f32 %v666, 0.01
  %v1179 = vmul.f32 %v667, 0.01
  %v1180 = vmul.f32 %v668, 0.01
  %v1181 = vmul.f32 %v669, 0.01
  %v1182 = vmul.f32 %v670, 0.01
  %v1183 = vmul.f32 %v671, 0.01
  %v1184 = vmul.f32 %v672, 0.01
  %v1185 = vmul.f32 %v673, 0.01
  %v1186 = vmul.f32 %v674, 0.01
  %v1187 = vmul.f32 %v675, 0.01
  %v1188 = vmul.f32 %v676, 0.01
  %v1189 = vmul.f32 %v677, 0.01
  %v1190 = vmul.f32 %v678, 0.01
  %v1191 = vmul.f32 %v679, 0.01
  %v1192 = vmul.f32 %v680, 0.01
  %v1193 = vmul.f32 %v681, 0.01
  %v1194 = vmul.f32 %v682, 0.01
  %v1195 = vmul.f32 %v683, 0.01
  %v1196 = vmul.f32 %v684, 0.01
  %v1197 = vmul.f32 %v685, 0.01
  %v1198 = vmul.f32 %v686, 0.01
  %v1199 = vmul.f32 %v687, 0.01
  %v1200 = vmul.f32 %v688, 0.01
  %v1201 = vmul.f32 %v689, 0.01
  %v1202 = vmul.f32 %v690, 0.01
  %v1203 = vmul.f32 %v691, 0.01
  %v1204 = vmul.f32 %v692, 0.01
  %v1205 = vmul.f32 %v693, 0.01
  %v1206 = vmul.f32 %v694, 0.01
  %v1207 = vmul.f32 %v695, 0.01
  %v1208 = vmul.f32 %v696, 0.01
  %v1209 = vmul.f32 %v697, 0.01
  %v1210 = vmul.f32 %v698, 0.01
  %v1211 = vmul.f32 %v699, 0.01
  %v1212 = vmul.f32 %v700, 0.01
  %v1213 = vmul.f32 %v701, 0.01
  %v1214 = vmul.f32 %v702, 0.01
  %v1215 = vmul.f32 %v703, 0.01
  %v1216 = vmul.f32 %v704, 0.01
  %v1217 = vmul.f32 %v705, 0.01
  %v1218 = vmul.f32 %v706, 0.01
  %v1219 = vmul.f32 %v707, 0.01
  %v1220 = vmul.f32 %v708, 0.01
  %v1221 = vmul.f32 %v709, 0.01
  %v1222 = vmul.f32 %v710, 0.01
  %v1223 = vmul.f32 %v711, 0.01
  %v1224 = vmul.f32 %v712, 0.01
  %v1225 = vmul.f32 %v713, 0.01
  %v1226 = vmul.f32 %v714, 0.01
  %v1227 = vmul.f32 %v715, 0.01
  %v1228 = vmul.f32 %v716, 0.01
  %v1229 = vmul.f32 %v717, 0.01
  %v1230 = vmul.f32 %v718, 0.01
  %v1231 = vmul.f32 %v719, 0.01
  %v1232 = vmul.f32 %v720, 0.01
  %v1233 = vmul.f32 %v721, 0.01
  %v1234 = vmul.f32 %v722, 0.01
  %v1235 = vmul.f32 %v723, 0.01
  %v1236 = vmul.f32 %v724, 0.01
  %v1237 = vmul.f32 %v725, 0.01
  %v1238 = vmul.f32 %v726, 0.01
  %v1239 = vmul.f32 %v727, 0.01
  %v1240 = vmul.f32 %v728, 0.01
  %v1241 = vmul.f32 %v729, 0.01
  %v1242 = vmul.f32 %v730, 0.01
  %v1243 = vmul.f32 %v731, 0.01
  %v1244 = vmul.f32 %v732, 0.01
  %v1245 = vmul.f32 %v733, 0.01
  %v1246 = vmul.f32 %v734, 0.01
  %v1247 = vmul.f32 %v735, 0.01
  %v1248 = vmul.f32 %v736, 0.01
  %v1249 = vmul.f32 %v737, 0.01
  %v1250 = vmul.f32 %v738, 0.01
  %v1251 = vmul.f32 %v739, 0.01
  %v1252 = vmul.f32 %v740, 0.01
  %v1253 = vmul.f32 %v741, 0.01
  %v1254 = vmul.f32 %v742, 0.01
  %v1255 = vmul.f32 %v743, 0.01
  %v1256 = vmul.f32 %v744, 0.01
  %v1257 = vmul.f32 %v745, 0.01
  %v1258 = vmul.f32 %v746, 0.01
  %v1259 = vmul.f32 %v747, 0.01
  %v1260 = vmul.f32 %v748, 0.01
  %v1261 = vmul.f32 %v749, 0.01
  %v1262 = vmul.f32 %v750, 0.01
  %v1263 = vmul.f32 %v751, 0.01
  %v1264 = vmul.f32 %v752, 0.01
  %v1265 = vmul.f32 %v753, 0.01
  %v1266 = vmul.f32 %v754, 0.01
  %v1267 = vmul.f32 %v755, 0.01
  %v1268 = vmul.f32 %v756, 0.01
  %v1269 = vmul.f32 %v757, 0.01
  %v1270 = vmul.f32 %v758, 0.01
  %v1271 = vmul.f32 %v759, 0.01
  %v1272 = vmul.f32 %v760, 0.01
  %v1273 = vmul.f32 %v761, 0.01
  %v1274 = vmul.f32 %v762, 0.01
  %v1275 = vmul.f32 %v763, 0.01
  %v1276 = vmul.f32 %v764, 0.01
  %v1277 = vmul.f32 %v765, 0.01
  %v1278 = vmul.f32 %v766, 0.01
  %v1279 = vmul.f32 %v767, 0.01
  %v1280 = vmul.f32 %v768, 0.01
  %v1281 = vmul.f32 %v769, 0.01
  %v1282 = vmul.f32 %v770, 0.01
  %v1283 = vmul.f32 %v771, 0.01
  %v1284 = vmul.f32 %v772, 0.01
  %v1285 = vmul.f32 %v773, 0.01
  %v1286 = vmul.f32 %v774, 0.01
  %v1287 = vmul.f32 %v775, 0.01
  %v1288 = vmul.f32 %v776, 0.01
  %v1289 = vmul.f32 %v777, 0.01
  %v1290 = vmul.f32 %v778, 0.01
  %v1291 = vmul.f32 %v779, 0.01
  %v1292 = vmul.f32 %v780, 0.01
  %v1293 = vmul.f32 %v781, 0.01
  %v1294 = vmul.f32 %v782, 0.01
  %v1295 = vmul.f32 %v783, 0.01
  %v1296 = vmul.f32 %v784, 0.01
  %v1297 = vmul.f32 %v785, 0.01
  %v1298 = vmul.f32 %v786, 0.01
  %v1299 = vmul.f32 %v787, 0.01
  %v1300 = vmul.f32 %v788, 0.01
  %v1301 = vmul.f32 %v789, 0.01
  %v1302 = vmul.f32 %v790, 0.01
  %v1303 = vmul.f32 %v791, 0.01
  %v1304 = vmul.f32 %v792, 0.01
  %v1305 = vmul.f32 %v793, 0.01
  %v1306 = vmul.f32 %v794, 0.01
  %v1307 = vmul.f32 %v795, 0.01
  %v1308 = vmul.f32 %v796, 0.01
  %v1309 = vmul.f32 %v797, 0.01
  %v1310 = vmul.f32 %v798, 0.01
  %v1311 = vmul.f32 %v799, 0.01
  %v1312 = vmul.f32 %v800, 0.01
  %v1313 = vmul.f32 %v801, 0.01
  %v1314 = vmul.f32 %v802, 0.01
  %v1315 = vmul.f32 %v803, 0.01
  %v1316 = vmul.f32 %v804, 0.01
  %v1317 = vmul.f32 %v805, 0.01
  %v1318 = vmul.f32 %v806, 0.01
  %v1319 = vmul.f32 %v807, 0.01
  %v1320 = vmul.f32 %v808, 0.01
  %v1321 = vmul.f32 %v809, 0.01
  %v1322 = vmul.f32 %v810, 0.01
  %v1323 = vmul.f32 %v811, 0.01
  %v1324 = vmul.f32 %v812, 0.01
  %v1325 = vmul.f32 %v813, 0.01
  %v1326 = vmul.f32 %v814, 0.01
  %v1327 = vmul.f32 %v815, 0.01
  %v1328 = vmul.f32 %v816, 0.01
  %v1329 = vmul.f32 %v817, 0.01
  %v1330 = vmul.f32 %v818, 0.01
  %v1331 = vmul.f32 %v819, 0.01
  %v1332 = vmul.f32 %v820, 0.01
  %v1333 = vmul.f32 %v821, 0.01
  %v1334 = vmul.f32 %v822, 0.01
  %v1335 = vmul.f32 %v823, 0.01
  %v1336 = vmul.f32 %v824, 0.01
  %v1337 = vmul.f32 %v825, 0.01
  %v1338 = vmul.f32 %v826, 0.01
  %v1339 = vmul.f32 %v827, 0.01
  %v1340 = vmul.f32 %v828, 0.01
  %v1341 = vmul.f32 %v829, 0.01
  %v1342 = vmul.f32 %v830, 0.01
  %v1343 = vmul.f32 %v831, 0.01
  %v1344 = vmul.f32 %v832, 0.01
  %v1345 = vmul.f32 %v833, 0.01
  %v1346 = vmul.f32 %v834, 0.01
  %v1347 = vmul.f32 %v835, 0.01
  %v1348 = vmul.f32 %v836, 0.01
  %v1349 = vmul.f32 %v837, 0.01
  %v1350 = vmul.f32 %v838, 0.01
  %v1351 = vmul.f32 %v839, 0.01
  %v1352 = vmul.f32 %v840, 0.01
  %v1353 = vmul.f32 %v841, 0.01
  %v1354 = vmul.f32 %v842, 0.01
  %v1355 = vmul.f32 %v843, 0.01
  %v1356 = vmul.f32 %v844, 0.01
  %v1357 = vmul.f32 %v845, 0.01
  %v1358 = vmul.f32 %v846, 0.01
  %v1359 = vmul.f32 %v847, 0.01
  %v1360 = vmul.f32 %v848, 0.01
  %v1361 = vmul.f32 %v849, 0.01
  %v1362 = vmul.f32 %v850, 0.01
  %v1363 = vmul.f32 %v851, 0.01
  %v1364 = vmul.f32 %v852, 0.01
  %v1365 = vmul.f32 %v853, 0.01
  %v1366 = vmul.f32 %v854, 0.01
  %v1367 = vmul.f32 %v855, 0.01
  %v1368 = vmul.f32 %v856, 0.01
  %v1369 = vmul.f32 %v857, 0.01
  %v1370 = vmul.f32 %v858, 0.01
  %v1371 = vmul.f32 %v859, 0.01
  %v1372 = vmul.f32 %v860, 0.01
  %v1373 = vmul.f32 %v861, 0.01
  %v1374 = vmul.f32 %v862, 0.01
  %v1375 = vmul.f32 %v863, 0.01
  %v1376 = vmul.f32 %v864, 0.01
  %v1377 = vmul.f32 %v865, 0.01
  %v1378 = vmul.f32 %v866, 0.01
  %v1379 = vmul.f32 %v867, 0.01
  %v1380 = vmul.f32 %v868, 0.01
  %v1381 = vmul.f32 %v869, 0.01
  %v1382 = vmul.f32 %v870, 0.01
  %v1383 = vmul.f32 %v871, 0.01
  %v1384 = vmul.f32 %v872, 0.01
  %v1385 = vmul.f32 %v873, 0.01
  %v1386 = vmul.f32 %v874, 0.01
  %v1387 = vmul.f32 %v875, 0.01
  %v1388 = vmul.f32 %v876, 0.01
  %v1389 = vmul.f32 %v877, 0.01
  %v1390 = vmul.f32 %v878, 0.01
  %v1391 = vmul.f32 %v879, 0.01
  %v1392 = vmul.f32 %v880, 0.01
  %v1393 = vmul.f32 %v881, 0.01
  %v1394 = vmul.f32 %v882, 0.01
  %v1395 = vmul.f32 %v883, 0.01
  %v1396 = vmul.f32 %v884, 0.01
  %v1397 = vmul.f32 %v885, 0.01
  %v1398 = vmul.f32 %v886, 0.01
  %v1399 = vmul.f32 %v887, 0.01
  %v1400 = vmul.f32 %v888, 0.01
  %v1401 = vmul.f32 %v889, 0.01
  %v1402 = vmul.f32 %v890, 0.01
  %v1403 = vmul.f32 %v891, 0.01
  %v1404 = vmul.f32 %v892, 0.01
  %v1405 = vmul.f32 %v893, 0.01
  %v1406 = vmul.f32 %v894, 0.01
  %v1407 = vmul.f32 %v895, 0.01
  %v1408 = vmul.f32 %v896, 0.01
  %v1409 = vmul.f32 %v897, 0.01
  %v1410 = vmul.f32 %v898, 0.01
  %v1411 = vmul.f32 %v899, 0.01
  %v1412 = vmul.f32 %v900, 0.01
  %v1413 = vmul.f32 %v901, 0.01
  %v1414 = vmul.f32 %v902, 0.01
  %v1415 = vmul.f32 %v903, 0.01
  %v1416 = vmul.f32 %v904, 0.01
  %v1417 = vmul.f32 %v905, 0.01
  %v1418 = vmul.f32 %v906, 0.01
  %v1419 = vmul.f32 %v907, 0.01
  %v1420 = vmul.f32 %v908, 0.01
  %v1421 = vmul.f32 %v909, 0.01
  %v1422 = vmul.f32 %v910, 0.01
  %v1423 = vmul.f32 %v911, 0.01
  %v1424 = vmul.f32 %v912, 0.01
  %v1425 = vmul.f32 %v913, 0.01
  %v1426 = vmul.f32 %v914, 0.01
  %v1427 = vmul.f32 %v915, 0.01
  %v1428 = vmul.f32 %v916, 0.01
  %v1429 = vmul.f32 %v917, 0.01
  %v1430 = vmul.f32 %v918, 0.01
  %v1431 = vmul.f32 %v919, 0.01
  %v1432 = vmul.f32 %v920, 0.01
  %v1433 = vmul.f32 %v921, 0.01
  %v1434 = vsel %vm922, %v666, %v1178
  %v1435 = vsel %vm923, %v667, %v1179
  %v1436 = vsel %vm924, %v668, %v1180
  %v1437 = vsel %vm925, %v669, %v1181
  %v1438 = vsel %vm926, %v670, %v1182
  %v1439 = vsel %vm927, %v671, %v1183
  %v1440 = vsel %vm928, %v672, %v1184
  %v1441 = vsel %vm929, %v673, %v1185
  %v1442 = vsel %vm930, %v674, %v1186
  %v1443 = vsel %vm931, %v675, %v1187
  %v1444 = vsel %vm932, %v676, %v1188
  %v1445 = vsel %vm933, %v677, %v1189
  %v1446 = vsel %vm934, %v678, %v1190
  %v1447 = vsel %vm935, %v679, %v1191
  %v1448 = vsel %vm936, %v680, %v1192
  %v1449 = vsel %vm937, %v681, %v1193
  %v1450 = vsel %vm938, %v682, %v1194
  %v1451 = vsel %vm939, %v683, %v1195
  %v1452 = vsel %vm940, %v684, %v1196
  %v1453 = vsel %vm941, %v685, %v1197
  %v1454 = vsel %vm942, %v686, %v1198
  %v1455 = vsel %vm943, %v687, %v1199
  %v1456 = vsel %vm944, %v688, %v1200
  %v1457 = vsel %vm945, %v689, %v1201
  %v1458 = vsel %vm946, %v690, %v1202
  %v1459 = vsel %vm947, %v691, %v1203
  %v1460 = vsel %vm948, %v692, %v1204
  %v1461 = vsel %vm949, %v693, %v1205
  %v1462 = vsel %vm950, %v694, %v1206
  %v1463 = vsel %vm951, %v695, %v1207
  %v1464 = vsel %vm952, %v696, %v1208
  %v1465 = vsel %vm953, %v697, %v1209
  %v1466 = vsel %vm954, %v698, %v1210
  %v1467 = vsel %vm955, %v699, %v1211
  %v1468 = vsel %vm956, %v700, %v1212
  %v1469 = vsel %vm957, %v701, %v1213
  %v1470 = vsel %vm958, %v702, %v1214
  %v1471 = vsel %vm959, %v703, %v1215
  %v1472 = vsel %vm960, %v704, %v1216
  %v1473 = vsel %vm961, %v705, %v1217
  %v1474 = vsel %vm962, %v706, %v1218
  %v1475 = vsel %vm963, %v707, %v1219
  %v1476 = vsel %vm964, %v708, %v1220
  %v1477 = vsel %vm965, %v709, %v1221
  %v1478 = vsel %vm966, %v710, %v1222
  %v1479 = vsel %vm967, %v711, %v1223
  %v1480 = vsel %vm968, %v712, %v1224
  %v1481 = vsel %vm969, %v713, %v1225
  %v1482 = vsel %vm970, %v714, %v1226
  %v1483 = vsel %vm971, %v715, %v1227
  %v1484 = vsel %vm972, %v716, %v1228
  %v1485 = vsel %vm973, %v717, %v1229
  %v1486 = vsel %vm974, %v718, %v1230
  %v1487 = vsel %vm975, %v719, %v1231
  %v1488 = vsel %vm976, %v720, %v1232
  %v1489 = vsel %vm977, %v721, %v1233
  %v1490 = vsel %vm978, %v722, %v1234
  %v1491 = vsel %vm979, %v723, %v1235
  %v1492 = vsel %vm980, %v724, %v1236
  %v1493 = vsel %vm981, %v725, %v1237
  %v1494 = vsel %vm982, %v726, %v1238
  %v1495 = vsel %vm983, %v727, %v1239
  %v1496 = vsel %vm984, %v728, %v1240
  %v1497 = vsel %vm985, %v729, %v1241
  %v1498 = vsel %vm986, %v730, %v1242
  %v1499 = vsel %vm987, %v731, %v1243
  %v1500 = vsel %vm988, %v732, %v1244
  %v1501 = vsel %vm989, %v733, %v1245
  %v1502 = vsel %vm990, %v734, %v1246
  %v1503 = vsel %vm991, %v735, %v1247
  %v1504 = vsel %vm992, %v736, %v1248
  %v1505 = vsel %vm993, %v737, %v1249
  %v1506 = vsel %vm994, %v738, %v1250
  %v1507 = vsel %vm995, %v739, %v1251
  %v1508 = vsel %vm996, %v740, %v1252
  %v1509 = vsel %vm997, %v741, %v1253
  %v1510 = vsel %vm998, %v742, %v1254
  %v1511 = vsel %vm999, %v743, %v1255
  %v1512 = vsel %vm1000, %v744, %v1256
  %v1513 = vsel %vm1001, %v745, %v1257
  %v1514 = vsel %vm1002, %v746, %v1258
  %v1515 = vsel %vm1003, %v747, %v1259
  %v1516 = vsel %vm1004, %v748, %v1260
  %v1517 = vsel %vm1005, %v749, %v1261
  %v1518 = vsel %vm1006, %v750, %v1262
  %v1519 = vsel %vm1007, %v751, %v1263
  %v1520 = vsel %vm1008, %v752, %v1264
  %v1521 = vsel %vm1009, %v753, %v1265
  %v1522 = vsel %vm1010, %v754, %v1266
  %v1523 = vsel %vm1011, %v755, %v1267
  %v1524 = vsel %vm1012, %v756, %v1268
  %v1525 = vsel %vm1013, %v757, %v1269
  %v1526 = vsel %vm1014, %v758, %v1270
  %v1527 = vsel %vm1015, %v759, %v1271
  %v1528 = vsel %vm1016, %v760, %v1272
  %v1529 = vsel %vm1017, %v761, %v1273
  %v1530 = vsel %vm1018, %v762, %v1274
  %v1531 = vsel %vm1019, %v763, %v1275
  %v1532 = vsel %vm1020, %v764, %v1276
  %v1533 = vsel %vm1021, %v765, %v1277
  %v1534 = vsel %vm1022, %v766, %v1278
  %v1535 = vsel %vm1023, %v767, %v1279
  %v1536 = vsel %vm1024, %v768, %v1280
  %v1537 = vsel %vm1025, %v769, %v1281
  %v1538 = vsel %vm1026, %v770, %v1282
  %v1539 = vsel %vm1027, %v771, %v1283
  %v1540 = vsel %vm1028, %v772, %v1284
  %v1541 = vsel %vm1029, %v773, %v1285
  %v1542 = vsel %vm1030, %v774, %v1286
  %v1543 = vsel %vm1031, %v775, %v1287
  %v1544 = vsel %vm1032, %v776, %v1288
  %v1545 = vsel %vm1033, %v777, %v1289
  %v1546 = vsel %vm1034, %v778, %v1290
  %v1547 = vsel %vm1035, %v779, %v1291
  %v1548 = vsel %vm1036, %v780, %v1292
  %v1549 = vsel %vm1037, %v781, %v1293
  %v1550 = vsel %vm1038, %v782, %v1294
  %v1551 = vsel %vm1039, %v783, %v1295
  %v1552 = vsel %vm1040, %v784, %v1296
  %v1553 = vsel %vm1041, %v785, %v1297
  %v1554 = vsel %vm1042, %v786, %v1298
  %v1555 = vsel %vm1043, %v787, %v1299
  %v1556 = vsel %vm1044, %v788, %v1300
  %v1557 = vsel %vm1045, %v789, %v1301
  %v1558 = vsel %vm1046, %v790, %v1302
  %v1559 = vsel %vm1047, %v791, %v1303
  %v1560 = vsel %vm1048, %v792, %v1304
  %v1561 = vsel %vm1049, %v793, %v1305
  %v1562 = vsel %vm1050, %v794, %v1306
  %v1563 = vsel %vm1051, %v795, %v1307
  %v1564 = vsel %vm1052, %v796, %v1308
  %v1565 = vsel %vm1053, %v797, %v1309
  %v1566 = vsel %vm1054, %v798, %v1310
  %v1567 = vsel %vm1055, %v799, %v1311
  %v1568 = vsel %vm1056, %v800, %v1312
  %v1569 = vsel %vm1057, %v801, %v1313
  %v1570 = vsel %vm1058, %v802, %v1314
  %v1571 = vsel %vm1059, %v803, %v1315
  %v1572 = vsel %vm1060, %v804, %v1316
  %v1573 = vsel %vm1061, %v805, %v1317
  %v1574 = vsel %vm1062, %v806, %v1318
  %v1575 = vsel %vm1063, %v807, %v1319
  %v1576 = vsel %vm1064, %v808, %v1320
  %v1577 = vsel %vm1065, %v809, %v1321
  %v1578 = vsel %vm1066, %v810, %v1322
  %v1579 = vsel %vm1067, %v811, %v1323
  %v1580 = vsel %vm1068, %v812, %v1324
  %v1581 = vsel %vm1069, %v813, %v1325
  %v1582 = vsel %vm1070, %v814, %v1326
  %v1583 = vsel %vm1071, %v815, %v1327
  %v1584 = vsel %vm1072, %v816, %v1328
  %v1585 = vsel %vm1073, %v817, %v1329
  %v1586 = vsel %vm1074, %v818, %v1330
  %v1587 = vsel %vm1075, %v819, %v1331
  %v1588 = vsel %vm1076, %v820, %v1332
  %v1589 = vsel %vm1077, %v821, %v1333
  %v1590 = vsel %vm1078, %v822, %v1334
  %v1591 = vsel %vm1079, %v823, %v1335
  %v1592 = vsel %vm1080, %v824, %v1336
  %v1593 = vsel %vm1081, %v825, %v1337
  %v1594 = vsel %vm1082, %v826, %v1338
  %v1595 = vsel %vm1083, %v827, %v1339
  %v1596 = vsel %vm1084, %v828, %v1340
  %v1597 = vsel %vm1085, %v829, %v1341
  %v1598 = vsel %vm1086, %v830, %v1342
  %v1599 = vsel %vm1087, %v831, %v1343
  %v1600 = vsel %vm1088, %v832, %v1344
  %v1601 = vsel %vm1089, %v833, %v1345
  %v1602 = vsel %vm1090, %v834, %v1346
  %v1603 = vsel %vm1091, %v835, %v1347
  %v1604 = vsel %vm1092, %v836, %v1348
  %v1605 = vsel %vm1093, %v837, %v1349
  %v1606 = vsel %vm1094, %v838, %v1350
  %v1607 = vsel %vm1095, %v839, %v1351
  %v1608 = vsel %vm1096, %v840, %v1352
  %v1609 = vsel %vm1097, %v841, %v1353
  %v1610 = vsel %vm1098, %v842, %v1354
  %v1611 = vsel %vm1099, %v843, %v1355
  %v1612 = vsel %vm1100, %v844, %v1356
  %v1613 = vsel %vm1101, %v845, %v1357
  %v1614 = vsel %vm1102, %v846, %v1358
  %v1615 = vsel %vm1103, %v847, %v1359
  %v1616 = vsel %vm1104, %v848, %v1360
  %v1617 = vsel %vm1105, %v849, %v1361
  %v1618 = vsel %vm1106, %v850, %v1362
  %v1619 = vsel %vm1107, %v851, %v1363
  %v1620 = vsel %vm1108, %v852, %v1364
  %v1621 = vsel %vm1109, %v853, %v1365
  %v1622 = vsel %vm1110, %v854, %v1366
  %v1623 = vsel %vm1111, %v855, %v1367
  %v1624 = vsel %vm1112, %v856, %v1368
  %v1625 = vsel %vm1113, %v857, %v1369
  %v1626 = vsel %vm1114, %v858, %v1370
  %v1627 = vsel %vm1115, %v859, %v1371
  %v1628 = vsel %vm1116, %v860, %v1372
  %v1629 = vsel %vm1117, %v861, %v1373
  %v1630 = vsel %vm1118, %v862, %v1374
  %v1631 = vsel %vm1119, %v863, %v1375
  %v1632 = vsel %vm1120, %v864, %v1376
  %v1633 = vsel %vm1121, %v865, %v1377
  %v1634 = vsel %vm1122, %v866, %v1378
  %v1635 = vsel %vm1123, %v867, %v1379
  %v1636 = vsel %vm1124, %v868, %v1380
  %v1637 = vsel %vm1125, %v869, %v1381
  %v1638 = vsel %vm1126, %v870, %v1382
  %v1639 = vsel %vm1127, %v871, %v1383
  %v1640 = vsel %vm1128, %v872, %v1384
  %v1641 = vsel %vm1129, %v873, %v1385
  %v1642 = vsel %vm1130, %v874, %v1386
  %v1643 = vsel %vm1131, %v875, %v1387
  %v1644 = vsel %vm1132, %v876, %v1388
  %v1645 = vsel %vm1133, %v877, %v1389
  %v1646 = vsel %vm1134, %v878, %v1390
  %v1647 = vsel %vm1135, %v879, %v1391
  %v1648 = vsel %vm1136, %v880, %v1392
  %v1649 = vsel %vm1137, %v881, %v1393
  %v1650 = vsel %vm1138, %v882, %v1394
  %v1651 = vsel %vm1139, %v883, %v1395
  %v1652 = vsel %vm1140, %v884, %v1396
  %v1653 = vsel %vm1141, %v885, %v1397
  %v1654 = vsel %vm1142, %v886, %v1398
  %v1655 = vsel %vm1143, %v887, %v1399
  %v1656 = vsel %vm1144, %v888, %v1400
  %v1657 = vsel %vm1145, %v889, %v1401
  %v1658 = vsel %vm1146, %v890, %v1402
  %v1659 = vsel %vm1147, %v891, %v1403
  %v1660 = vsel %vm1148, %v892, %v1404
  %v1661 = vsel %vm1149, %v893, %v1405
  %v1662 = vsel %vm1150, %v894, %v1406
  %v1663 = vsel %vm1151, %v895, %v1407
  %v1664 = vsel %vm1152, %v896, %v1408
  %v1665 = vsel %vm1153, %v897, %v1409
  %v1666 = vsel %vm1154, %v898, %v1410
  %v1667 = vsel %vm1155, %v899, %v1411
  %v1668 = vsel %vm1156, %v900, %v1412
  %v1669 = vsel %vm1157, %v901, %v1413
  %v1670 = vsel %vm1158, %v902, %v1414
  %v1671 = vsel %vm1159, %v903, %v1415
  %v1672 = vsel %vm1160, %v904, %v1416
  %v1673 = vsel %vm1161, %v905, %v1417
  %v1674 = vsel %vm1162, %v906, %v1418
  %v1675 = vsel %vm1163, %v907, %v1419
  %v1676 = vsel %vm1164, %v908, %v1420
  %v1677 = vsel %vm1165, %v909, %v1421
  %v1678 = vsel %vm1166, %v910, %v1422
  %v1679 = vsel %vm1167, %v911, %v1423
  %v1680 = vsel %vm1168, %v912, %v1424
  %v1681 = vsel %vm1169, %v913, %v1425
  %v1682 = vsel %vm1170, %v914, %v1426
  %v1683 = vsel %vm1171, %v915, %v1427
  %v1684 = vsel %vm1172, %v916, %v1428
  %v1685 = vsel %vm1173, %v917, %v1429
  %v1686 = vsel %vm1174, %v918, %v1430
  %v1687 = vsel %vm1175, %v919, %v1431
  %v1688 = vsel %vm1176, %v920, %v1432
  %v1689 = vsel %vm1177, %v921, %v1433
  %1690 = vst [vmem:[%s3] sm:$0xff] %v1434
  %1691 = vst [vmem:[%s3 + $0x8] sm:$0xff] %v1435
  %1692 = vst [vmem:[%s3 + $0x10] sm:$0xff] %v1436
  %1693 = vst [vmem:[%s3 + $0x18] sm:$0xff] %v1437
  %1694 = vst [vmem:[%s3 + $0x20] sm:$0xff] %v1438
  %1695 = vst [vmem:[%s3 + $0x28] sm:$0xff] %v1439
  %1696 = vst [vmem:[%s3 + $0x30] sm:$0xff] %v1440
  %1697 = vst [vmem:[%s3 + $0x38] sm:$0xff] %v1441
  %1698 = vst [vmem:[%s3 + $0x40] sm:$0xff] %v1442
  %1699 = vst [vmem:[%s3 + $0x48] sm:$0xff] %v1443
  %1700 = vst [vmem:[%s3 + $0x50] sm:$0xff] %v1444
  %1701 = vst [vmem:[%s3 + $0x58] sm:$0xff] %v1445
  %1702 = vst [vmem:[%s3 + $0x60] sm:$0xff] %v1446
  %1703 = vst [vmem:[%s3 + $0x68] sm:$0xff] %v1447
  %1704 = vst [vmem:[%s3 + $0x70] sm:$0xff] %v1448
  %1705 = vst [vmem:[%s3 + $0x78] sm:$0xff] %v1449
  %1706 = vst [vmem:[%s3 + $0x80] sm:$0xff] %v1450
  %1707 = vst [vmem:[%s3 + $0x88] sm:$0xff] %v1451
  %1708 = vst [vmem:[%s3 + $0x90] sm:$0xff] %v1452
  %1709 = vst [vmem:[%s3 + $0x98] sm:$0xff] %v1453
  %1710 = vst [vmem:[%s3 + $0xa0] sm:$0xff] %v1454
  %1711 = vst [vmem:[%s3 + $0xa8] sm:$0xff] %v1455
  %1712 = vst [vmem:[%s3 + $0xb0] sm:$0xff] %v1456
  %1713 = vst [vmem:[%s3 + $0xb8] sm:$0xff] %v1457
  %1714 = vst [vmem:[%s3 + $0xc0] sm:$0xff] %v1458
  %1715 = vst [vmem:[%s3 + $0xc8] sm:$0xff] %v1459
  %1716 = vst [vmem:[%s3 + $0xd0] sm:$0xff] %v1460
  %1717 = vst [vmem:[%s3 + $0xd8] sm:$0xff] %v1461
  %1718 = vst [vmem:[%s3 + $0xe0] sm:$0xff] %v1462
  %1719 = vst [vmem:[%s3 + $0xe8] sm:$0xff] %v1463
  %1720 = vst [vmem:[%s3 + $0xf0] sm:$0xff] %v1464
  %1721 = vst [vmem:[%s3 + $0xf8] sm:$0xff] %v1465
  %1722 = vst [vmem:[%s3 + $0x100] sm:$0xff] %v1466
  %1723 = vst [vmem:[%s3 + $0x108] sm:$0xff] %v1467
  %1724 = vst [vmem:[%s3 + $0x110] sm:$0xff] %v1468
  %1725 = vst [vmem:[%s3 + $0x118] sm:$0xff] %v1469
  %1726 = vst [vmem:[%s3 + $0x120] sm:$0xff] %v1470
  %1727 = vst [vmem:[%s3 + $0x128] sm:$0xff] %v1471
  %1728 = vst [vmem:[%s3 + $0x130] sm:$0xff] %v1472
  %1729 = vst [vmem:[%s3 + $0x138] sm:$0xff] %v1473
  %1730 = vst [vmem:[%s3 + $0x140] sm:$0xff] %v1474
  %1731 = vst [vmem:[%s3 + $0x148] sm:$0xff] %v1475
  %1732 = vst [vmem:[%s3 + $0x150] sm:$0xff] %v1476
  %1733 = vst [vmem:[%s3 + $0x158] sm:$0xff] %v1477
  %1734 = vst [vmem:[%s3 + $0x160] sm:$0xff] %v1478
  %1735 = vst [vmem:[%s3 + $0x168] sm:$0xff] %v1479
  %1736 = vst [vmem:[%s3 + $0x170] sm:$0xff] %v1480
  %1737 = vst [vmem:[%s3 + $0x178] sm:$0xff] %v1481
  %1738 = vst [vmem:[%s3 + $0x180] sm:$0xff] %v1482
  %1739 = vst [vmem:[%s3 + $0x188] sm:$0xff] %v1483
  %1740 = vst [vmem:[%s3 + $0x190] sm:$0xff] %v1484
  %1741 = vst [vmem:[%s3 + $0x198] sm:$0xff] %v1485
  %1742 = vst [vmem:[%s3 + $0x1a0] sm:$0xff] %v1486
  %1743 = vst [vmem:[%s3 + $0x1a8] sm:$0xff] %v1487
  %1744 = vst [vmem:[%s3 + $0x1b0] sm:$0xff] %v1488
  %1745 = vst [vmem:[%s3 + $0x1b8] sm:$0xff] %v1489
  %1746 = vst [vmem:[%s3 + $0x1c0] sm:$0xff] %v1490
  %1747 = vst [vmem:[%s3 + $0x1c8] sm:$0xff] %v1491
  %1748 = vst [vmem:[%s3 + $0x1d0] sm:$0xff] %v1492
  %1749 = vst [vmem:[%s3 + $0x1d8] sm:$0xff] %v1493
  %1750 = vst [vmem:[%s3 + $0x1e0] sm:$0xff] %v1494
  %1751 = vst [vmem:[%s3 + $0x1e8] sm:$0xff] %v1495
  %1752 = vst [vmem:[%s3 + $0x1f0] sm:$0xff] %v1496
  %1753 = vst [vmem:[%s3 + $0x1f8] sm:$0xff] %v1497
  %1754 = vst [vmem:[%s3 + $0x200] sm:$0xff] %v1498
  %1755 = vst [vmem:[%s3 + $0x208] sm:$0xff] %v1499
  %1756 = vst [vmem:[%s3 + $0x210] sm:$0xff] %v1500
  %1757 = vst [vmem:[%s3 + $0x218] sm:$0xff] %v1501
  %1758 = vst [vmem:[%s3 + $0x220] sm:$0xff] %v1502
  %1759 = vst [vmem:[%s3 + $0x228] sm:$0xff] %v1503
  %1760 = vst [vmem:[%s3 + $0x230] sm:$0xff] %v1504
  %1761 = vst [vmem:[%s3 + $0x238] sm:$0xff] %v1505
  %1762 = vst [vmem:[%s3 + $0x240] sm:$0xff] %v1506
  %1763 = vst [vmem:[%s3 + $0x248] sm:$0xff] %v1507
  %1764 = vst [vmem:[%s3 + $0x250] sm:$0xff] %v1508
  %1765 = vst [vmem:[%s3 + $0x258] sm:$0xff] %v1509
  %1766 = vst [vmem:[%s3 + $0x260] sm:$0xff] %v1510
  %1767 = vst [vmem:[%s3 + $0x268] sm:$0xff] %v1511
  %1768 = vst [vmem:[%s3 + $0x270] sm:$0xff] %v1512
  %1769 = vst [vmem:[%s3 + $0x278] sm:$0xff] %v1513
  %1770 = vst [vmem:[%s3 + $0x280] sm:$0xff] %v1514
  %1771 = vst [vmem:[%s3 + $0x288] sm:$0xff] %v1515
  %1772 = vst [vmem:[%s3 + $0x290] sm:$0xff] %v1516
  %1773 = vst [vmem:[%s3 + $0x298] sm:$0xff] %v1517
  %1774 = vst [vmem:[%s3 + $0x2a0] sm:$0xff] %v1518
  %1775 = vst [vmem:[%s3 + $0x2a8] sm:$0xff] %v1519
  %1776 = vst [vmem:[%s3 + $0x2b0] sm:$0xff] %v1520
  %1777 = vst [vmem:[%s3 + $0x2b8] sm:$0xff] %v1521
  %1778 = vst [vmem:[%s3 + $0x2c0] sm:$0xff] %v1522
  %1779 = vst [vmem:[%s3 + $0x2c8] sm:$0xff] %v1523
  %1780 = vst [vmem:[%s3 + $0x2d0] sm:$0xff] %v1524
  %1781 = vst [vmem:[%s3 + $0x2d8] sm:$0xff] %v1525
  %1782 = vst [vmem:[%s3 + $0x2e0] sm:$0xff] %v1526
  %1783 = vst [vmem:[%s3 + $0x2e8] sm:$0xff] %v1527
  %1784 = vst [vmem:[%s3 + $0x2f0] sm:$0xff] %v1528
  %1785 = vst [vmem:[%s3 + $0x2f8] sm:$0xff] %v1529
  %1786 = vst [vmem:[%s3 + $0x300] sm:$0xff] %v1530
  %1787 = vst [vmem:[%s3 + $0x308] sm:$0xff] %v1531
  %1788 = vst [vmem:[%s3 + $0x310] sm:$0xff] %v1532
  %1789 = vst [vmem:[%s3 + $0x318] sm:$0xff] %v1533
  %1790 = vst [vmem:[%s3 + $0x320] sm:$0xff] %v1534
  %1791 = vst [vmem:[%s3 + $0x328] sm:$0xff] %v1535
  %1792 = vst [vmem:[%s3 + $0x330] sm:$0xff] %v1536
  %1793 = vst [vmem:[%s3 + $0x338] sm:$0xff] %v1537
  %1794 = vst [vmem:[%s3 + $0x340] sm:$0xff] %v1538
  %1795 = vst [vmem:[%s3 + $0x348] sm:$0xff] %v1539
  %1796 = vst [vmem:[%s3 + $0x350] sm:$0xff] %v1540
  %1797 = vst [vmem:[%s3 + $0x358] sm:$0xff] %v1541
  %1798 = vst [vmem:[%s3 + $0x360] sm:$0xff] %v1542
  %1799 = vst [vmem:[%s3 + $0x368] sm:$0xff] %v1543
  %1800 = vst [vmem:[%s3 + $0x370] sm:$0xff] %v1544
  %1801 = vst [vmem:[%s3 + $0x378] sm:$0xff] %v1545
  %1802 = vst [vmem:[%s3 + $0x380] sm:$0xff] %v1546
  %1803 = vst [vmem:[%s3 + $0x388] sm:$0xff] %v1547
  %1804 = vst [vmem:[%s3 + $0x390] sm:$0xff] %v1548
  %1805 = vst [vmem:[%s3 + $0x398] sm:$0xff] %v1549
  %1806 = vst [vmem:[%s3 + $0x3a0] sm:$0xff] %v1550
  %1807 = vst [vmem:[%s3 + $0x3a8] sm:$0xff] %v1551
  %1808 = vst [vmem:[%s3 + $0x3b0] sm:$0xff] %v1552
  %1809 = vst [vmem:[%s3 + $0x3b8] sm:$0xff] %v1553
  %1810 = vst [vmem:[%s3 + $0x3c0] sm:$0xff] %v1554
  %1811 = vst [vmem:[%s3 + $0x3c8] sm:$0xff] %v1555
  %1812 = vst [vmem:[%s3 + $0x3d0] sm:$0xff] %v1556
  %1813 = vst [vmem:[%s3 + $0x3d8] sm:$0xff] %v1557
  %1814 = vst [vmem:[%s3 + $0x3e0] sm:$0xff] %v1558
  %1815 = vst [vmem:[%s3 + $0x3e8] sm:$0xff] %v1559
  %1816 = vst [vmem:[%s3 + $0x3f0] sm:$0xff] %v1560
  %1817 = vst [vmem:[%s3 + $0x3f8] sm:$0xff] %v1561
  %1818 = vst [vmem:[%s3 + $0x400] sm:$0xff] %v1562
  %1819 = vst [vmem:[%s3 + $0x408] sm:$0xff] %v1563
  %1820 = vst [vmem:[%s3 + $0x410] sm:$0xff] %v1564
  %1821 = vst [vmem:[%s3 + $0x418] sm:$0xff] %v1565
  %1822 = vst [vmem:[%s3 + $0x420] sm:$0xff] %v1566
  %1823 = vst [vmem:[%s3 + $0x428] sm:$0xff] %v1567
  %1824 = vst [vmem:[%s3 + $0x430] sm:$0xff] %v1568
  %1825 = vst [vmem:[%s3 + $0x438] sm:$0xff] %v1569
  %1826 = vst [vmem:[%s3 + $0x440] sm:$0xff] %v1570
  %1827 = vst [vmem:[%s3 + $0x448] sm:$0xff] %v1571
  %1828 = vst [vmem:[%s3 + $0x450] sm:$0xff] %v1572
  %1829 = vst [vmem:[%s3 + $0x458] sm:$0xff] %v1573
  %1830 = vst [vmem:[%s3 + $0x460] sm:$0xff] %v1574
  %1831 = vst [vmem:[%s3 + $0x468] sm:$0xff] %v1575
  %1832 = vst [vmem:[%s3 + $0x470] sm:$0xff] %v1576
  %1833 = vst [vmem:[%s3 + $0x478] sm:$0xff] %v1577
  %1834 = vst [vmem:[%s3 + $0x480] sm:$0xff] %v1578
  %1835 = vst [vmem:[%s3 + $0x488] sm:$0xff] %v1579
  %1836 = vst [vmem:[%s3 + $0x490] sm:$0xff] %v1580
  %1837 = vst [vmem:[%s3 + $0x498] sm:$0xff] %v1581
  %1838 = vst [vmem:[%s3 + $0x4a0] sm:$0xff] %v1582
  %1839 = vst [vmem:[%s3 + $0x4a8] sm:$0xff] %v1583
  %1840 = vst [vmem:[%s3 + $0x4b0] sm:$0xff] %v1584
  %1841 = vst [vmem:[%s3 + $0x4b8] sm:$0xff] %v1585
  %1842 = vst [vmem:[%s3 + $0x4c0] sm:$0xff] %v1586
  %1843 = vst [vmem:[%s3 + $0x4c8] sm:$0xff] %v1587
  %1844 = vst [vmem:[%s3 + $0x4d0] sm:$0xff] %v1588
  %1845 = vst [vmem:[%s3 + $0x4d8] sm:$0xff] %v1589
  %1846 = vst [vmem:[%s3 + $0x4e0] sm:$0xff] %v1590
  %1847 = vst [vmem:[%s3 + $0x4e8] sm:$0xff] %v1591
  %1848 = vst [vmem:[%s3 + $0x4f0] sm:$0xff] %v1592
  %1849 = vst [vmem:[%s3 + $0x4f8] sm:$0xff] %v1593
  %1850 = vst [vmem:[%s3 + $0x500] sm:$0xff] %v1594
  %1851 = vst [vmem:[%s3 + $0x508] sm:$0xff] %v1595
  %1852 = vst [vmem:[%s3 + $0x510] sm:$0xff] %v1596
  %1853 = vst [vmem:[%s3 + $0x518] sm:$0xff] %v1597
  %1854 = vst [vmem:[%s3 + $0x520] sm:$0xff] %v1598
  %1855 = vst [vmem:[%s3 + $0x528] sm:$0xff] %v1599
  %1856 = vst [vmem:[%s3 + $0x530] sm:$0xff] %v1600
  %1857 = vst [vmem:[%s3 + $0x538] sm:$0xff] %v1601
  %1858 = vst [vmem:[%s3 + $0x540] sm:$0xff] %v1602
  %1859 = vst [vmem:[%s3 + $0x548] sm:$0xff] %v1603
  %1860 = vst [vmem:[%s3 + $0x550] sm:$0xff] %v1604
  %1861 = vst [vmem:[%s3 + $0x558] sm:$0xff] %v1605
  %1862 = vst [vmem:[%s3 + $0x560] sm:$0xff] %v1606
  %1863 = vst [vmem:[%s3 + $0x568] sm:$0xff] %v1607
  %1864 = vst [vmem:[%s3 + $0x570] sm:$0xff] %v1608
  %1865 = vst [vmem:[%s3 + $0x578] sm:$0xff] %v1609
  %1866 = vst [vmem:[%s3 + $0x580] sm:$0xff] %v1610
  %1867 = vst [vmem:[%s3 + $0x588] sm:$0xff] %v1611
  %1868 = vst [vmem:[%s3 + $0x590] sm:$0xff] %v1612
  %1869 = vst [vmem:[%s3 + $0x598] sm:$0xff] %v1613
  %1870 = vst [vmem:[%s3 + $0x5a0] sm:$0xff] %v1614
  %1871 = vst [vmem:[%s3 + $0x5a8] sm:$0xff] %v1615
  %1872 = vst [vmem:[%s3 + $0x5b0] sm:$0xff] %v1616
  %1873 = vst [vmem:[%s3 + $0x5b8] sm:$0xff] %v1617
  %1874 = vst [vmem:[%s3 + $0x5c0] sm:$0xff] %v1618
  %1875 = vst [vmem:[%s3 + $0x5c8] sm:$0xff] %v1619
  %1876 = vst [vmem:[%s3 + $0x5d0] sm:$0xff] %v1620
  %1877 = vst [vmem:[%s3 + $0x5d8] sm:$0xff] %v1621
  %1878 = vst [vmem:[%s3 + $0x5e0] sm:$0xff] %v1622
  %1879 = vst [vmem:[%s3 + $0x5e8] sm:$0xff] %v1623
  %1880 = vst [vmem:[%s3 + $0x5f0] sm:$0xff] %v1624
  %1881 = vst [vmem:[%s3 + $0x5f8] sm:$0xff] %v1625
  %1882 = vst [vmem:[%s3 + $0x600] sm:$0xff] %v1626
  %1883 = vst [vmem:[%s3 + $0x608] sm:$0xff] %v1627
  %1884 = vst [vmem:[%s3 + $0x610] sm:$0xff] %v1628
  %1885 = vst [vmem:[%s3 + $0x618] sm:$0xff] %v1629
  %1886 = vst [vmem:[%s3 + $0x620] sm:$0xff] %v1630
  %1887 = vst [vmem:[%s3 + $0x628] sm:$0xff] %v1631
  %1888 = vst [vmem:[%s3 + $0x630] sm:$0xff] %v1632
  %1889 = vst [vmem:[%s3 + $0x638] sm:$0xff] %v1633
  %1890 = vst [vmem:[%s3 + $0x640] sm:$0xff] %v1634
  %1891 = vst [vmem:[%s3 + $0x648] sm:$0xff] %v1635
  %1892 = vst [vmem:[%s3 + $0x650] sm:$0xff] %v1636
  %1893 = vst [vmem:[%s3 + $0x658] sm:$0xff] %v1637
  %1894 = vst [vmem:[%s3 + $0x660] sm:$0xff] %v1638
  %1895 = vst [vmem:[%s3 + $0x668] sm:$0xff] %v1639
  %1896 = vst [vmem:[%s3 + $0x670] sm:$0xff] %v1640
  %1897 = vst [vmem:[%s3 + $0x678] sm:$0xff] %v1641
  %1898 = vst [vmem:[%s3 + $0x680] sm:$0xff] %v1642
  %1899 = vst [vmem:[%s3 + $0x688] sm:$0xff] %v1643
  %1900 = vst [vmem:[%s3 + $0x690] sm:$0xff] %v1644
  %1901 = vst [vmem:[%s3 + $0x698] sm:$0xff] %v1645
  %1902 = vst [vmem:[%s3 + $0x6a0] sm:$0xff] %v1646
  %1903 = vst [vmem:[%s3 + $0x6a8] sm:$0xff] %v1647
  %1904 = vst [vmem:[%s3 + $0x6b0] sm:$0xff] %v1648
  %1905 = vst [vmem:[%s3 + $0x6b8] sm:$0xff] %v1649
  %1906 = vst [vmem:[%s3 + $0x6c0] sm:$0xff] %v1650
  %1907 = vst [vmem:[%s3 + $0x6c8] sm:$0xff] %v1651
  %1908 = vst [vmem:[%s3 + $0x6d0] sm:$0xff] %v1652
  %1909 = vst [vmem:[%s3 + $0x6d8] sm:$0xff] %v1653
  %1910 = vst [vmem:[%s3 + $0x6e0] sm:$0xff] %v1654
  %1911 = vst [vmem:[%s3 + $0x6e8] sm:$0xff] %v1655
  %1912 = vst [vmem:[%s3 + $0x6f0] sm:$0xff] %v1656
  %1913 = vst [vmem:[%s3 + $0x6f8] sm:$0xff] %v1657
  %1914 = vst [vmem:[%s3 + $0x700] sm:$0xff] %v1658
  %1915 = vst [vmem:[%s3 + $0x708] sm:$0xff] %v1659
  %1916 = vst [vmem:[%s3 + $0x710] sm:$0xff] %v1660
  %1917 = vst [vmem:[%s3 + $0x718] sm:$0xff] %v1661
  %1918 = vst [vmem:[%s3 + $0x720] sm:$0xff] %v1662
  %1919 = vst [vmem:[%s3 + $0x728] sm:$0xff] %v1663
  %1920 = vst [vmem:[%s3 + $0x730] sm:$0xff] %v1664
  %1921 = vst [vmem:[%s3 + $0x738] sm:$0xff] %v1665
  %1922 = vst [vmem:[%s3 + $0x740] sm:$0xff] %v1666
  %1923 = vst [vmem:[%s3 + $0x748] sm:$0xff] %v1667
  %1924 = vst [vmem:[%s3 + $0x750] sm:$0xff] %v1668
  %1925 = vst [vmem:[%s3 + $0x758] sm:$0xff] %v1669
  %1926 = vst [vmem:[%s3 + $0x760] sm:$0xff] %v1670
  %1927 = vst [vmem:[%s3 + $0x768] sm:$0xff] %v1671
  %1928 = vst [vmem:[%s3 + $0x770] sm:$0xff] %v1672
  %1929 = vst [vmem:[%s3 + $0x778] sm:$0xff] %v1673
  %1930 = vst [vmem:[%s3 + $0x780] sm:$0xff] %v1674
  %1931 = vst [vmem:[%s3 + $0x788] sm:$0xff] %v1675
  %1932 = vst [vmem:[%s3 + $0x790] sm:$0xff] %v1676
  %1933 = vst [vmem:[%s3 + $0x798] sm:$0xff] %v1677
  %1934 = vst [vmem:[%s3 + $0x7a0] sm:$0xff] %v1678
  %1935 = vst [vmem:[%s3 + $0x7a8] sm:$0xff] %v1679
  %1936 = vst [vmem:[%s3 + $0x7b0] sm:$0xff] %v1680
  %1937 = vst [vmem:[%s3 + $0x7b8] sm:$0xff] %v1681
  %1938 = vst [vmem:[%s3 + $0x7c0] sm:$0xff] %v1682
  %1939 = vst [vmem:[%s3 + $0x7c8] sm:$0xff] %v1683
  %1940 = vst [vmem:[%s3 + $0x7d0] sm:$0xff] %v1684
  %1941 = vst [vmem:[%s3 + $0x7d8] sm:$0xff] %v1685
  %1942 = vst [vmem:[%s3 + $0x7e0] sm:$0xff] %v1686
  %1943 = vst [vmem:[%s3 + $0x7e8] sm:$0xff] %v1687
  %1944 = vst [vmem:[%s3 + $0x7f0] sm:$0xff] %v1688
  %1945 = vst [vmem:[%s3 + $0x7f8] sm:$0xff] %v1689
  // Predicated region
  $region14: #{deconv4x4_forward.3} parent=0 // pred_check
    _
  $region15: #{deconv4x4_forward.3} parent=0 // pred_check_branch
    %1947 = sbr.rel (0) target = $region17
  $region16: #{deconv4x4_forward.3} parent=0 // pred_region
    _
  $region17: #{deconv4x4_forward.3} parent=0 // pred_fallthru
    _
  // Predicated region
  $region18: #{deconv4x4_forward.3} parent=0 // pred_check
    _
  $region19: #{deconv4x4_forward.3} parent=0 // pred_check_branch
    %1949 = sbr.rel (0) target = $region21
  $region20: #{deconv4x4_forward.3} parent=0 // pred_region
    _
  $region21: #{deconv4x4_forward.3} parent=0 // pred_fallthru
    _

</llo_original>
